<compile_context>
chip_gen: v7x
topology: tpu7x:2x2x1
jax: 0.10.0
libtpu: 0.0.40
codegen_flags: <defaults>
</compile_context>

<pallas_src>
import functools

import jax
import jax.numpy as jnp
from jax.experimental import pallas as pl
from jax.experimental.pallas import tpu as pltpu


# ---------------------------------------------------------------------------
# Generation-aware VMEM limit (leave ~25% headroom for compiler scratch and
# pipeline buffers).  ~48 MiB on v7x (64 MiB/TC), ~96 MiB on v5e/v6e.
# ---------------------------------------------------------------------------
def _vmem_limit_bytes():
    cap = 64 * 1024 * 1024  # conservative fallback, safe on every generation
    try:
        info = pltpu.get_tpu_info()
        cap_attr = getattr(info, "vmem_capacity_bytes", None)
        if cap_attr:
            cap = int(cap_attr)
    except Exception:
        pass
    return int(cap * 3 // 4)


_VMEM_LIMIT_BYTES = _vmem_limit_bytes()


def _pick_tile(dim, target, align):
    """Largest `align`-multiple divisor of `dim` that is <= target, else full dim."""
    if dim <= target:
        return dim
    start = (target // align) * align
    for cand in range(start, 0, -align):
        if dim % cand == 0:
            return cand
    return dim  # full extent is always a legal block


# ---------------------------------------------------------------------------
# Tiled, pipelined matmul kernel:  (M, K) @ (K, N) -> (M, N), f32 accumulate.
# ---------------------------------------------------------------------------
def _matmul_kernel(x_ref, w_ref, o_ref, acc_ref):
    @pl.when(pl.program_id(2) == 0)
    def _init():
        acc_ref[...] = jnp.zeros_like(acc_ref)

    acc_ref[...] += jnp.dot(
        x_ref[...], w_ref[...], preferred_element_type=jnp.float32
    )

    @pl.when(pl.program_id(2) == pl.num_programs(2) - 1)
    def _finalize():
        o_ref[...] = acc_ref[...].astype(o_ref.dtype)


def pallas_matmul(x, w, *, out_dtype=None, tm=512, tn=512, tk=512):
    M, K = x.shape
    K2, N = w.shape
    assert K == K2
    out_dtype = out_dtype or x.dtype
    # (8, 128) alignment: sublane dim -> 8, lane dims -> 128 (or full extent).
    tm = _pick_tile(M, tm, 8)
    tn = _pick_tile(N, tn, 128)
    tk = _pick_tile(K, tk, 128)
    grid = (M // tm, N // tn, K // tk)
    return pl.pallas_call(
        _matmul_kernel,
        out_shape=jax.ShapeDtypeStruct((M, N), out_dtype),
        grid_spec=pltpu.PrefetchScalarGridSpec(
            num_scalar_prefetch=0,
            grid=grid,
            in_specs=[
                pl.BlockSpec((tm, tk), lambda i, j, k: (i, k)),
                pl.BlockSpec((tk, tn), lambda i, j, k: (k, j)),
            ],
            out_specs=pl.BlockSpec((tm, tn), lambda i, j, k: (i, j)),
            scratch_shapes=[pltpu.VMEM((tm, tn), jnp.float32)],
        ),
        compiler_params=pltpu.CompilerParams(
            dimension_semantics=("parallel", "parallel", "arbitrary"),
            vmem_limit_bytes=_VMEM_LIMIT_BYTES,
        ),
    )(x, w)


# ---------------------------------------------------------------------------
# Flash attention with the output projection fused into the epilogue.
#
# Input  qkv   : (B, L, 3E) laid out per torch's reshape(B, L, H, 3A):
#                head h -> q cols [3hA, 3hA+A), k cols [3hA+A, 3hA+2A),
#                          v cols [3hA+2A, 3hA+3A)   (block units of A below).
#        w_out : (E, E)  (transposed nn.Linear weight, rows [hA,(h+1)A) = head h)
# Output       : (B, L, E) = softmax(qK^T)V @ w_out   (heads already merged).
#
# Grid: (B, L//tq, H, L//tkv); H and the kv axis are reductions (output block
# index is constant across them), so the (tq, E) f32 out_acc scratch
# accumulates head contributions and is only written back once per (b, iq).
# ---------------------------------------------------------------------------
def _fused_attn_kernel(q_ref, k_ref, v_ref, w_ref, o_ref,
                       m_sc, l_sc, acc_sc, out_acc):
    h = pl.program_id(2)
    ik = pl.program_id(3)
    nh = pl.num_programs(2)
    nk = pl.num_programs(3)

    @pl.when(jnp.logical_and(h == 0, ik == 0))
    def _init_out():
        out_acc[...] = jnp.zeros_like(out_acc)

    @pl.when(ik == 0)
    def _init_state():
        m_sc[...] = jnp.full_like(m_sc, -jnp.inf)
        l_sc[...] = jnp.zeros_like(l_sc)
        acc_sc[...] = jnp.zeros_like(acc_sc)

    q = q_ref[0]                  # (tq, A)  bf16, softmax scale pre-folded
    k = k_ref[0]                  # (tkv, A) bf16
    v = v_ref[0]                  # (tkv, A) bf16

    # Contract the last dim of BOTH operands -> no k.T materialization.
    s = jax.lax.dot_general(
        q, k,
        dimension_numbers=(((1,), (1,)), ((), ())),
        preferred_element_type=jnp.float32,
    )                              # (tq, tkv) f32

    m_prev = m_sc[...]
    m_new = jnp.maximum(m_prev, jnp.max(s, axis=-1, keepdims=True))
    alpha = jnp.exp(m_prev - m_new)
    p = jnp.exp(s - m_new)
    l_sc[...] = alpha * l_sc[...] + jnp.sum(p, axis=-1, keepdims=True)
    acc_sc[...] = alpha * acc_sc[...] + jnp.dot(
        p.astype(v.dtype), v, preferred_element_type=jnp.float32
    )
    m_sc[...] = m_new

    # Per-head epilogue: normalize and immediately project through this head's
    # (A, E) slab of w_out, accumulating into the (tq, E) output accumulator.
    @pl.when(ik == nk - 1)
    def _head_epilogue():
        inv_l = 1.0 / l_sc[...]                               # exact; (tq,1)
        vals = (acc_sc[...] * inv_l).astype(w_ref.dtype)      # (tq, A) bf16
        out_acc[...] += jnp.dot(
            vals, w_ref[...], preferred_element_type=jnp.float32
        )

    @pl.when(jnp.logical_and(h == nh - 1, ik == nk - 1))
    def _finalize():
        o_ref[0] = out_acc[...].astype(o_ref.dtype)


def pallas_attention_outproj(qkv, w_out_t, H, *, out_dtype, tq=512, tkv=512):
    B, L, threeE = qkv.shape
    E = threeE // 3
    assert E % H == 0
    A = E // H
    # Lane-dense head blocks.
    # TODO(synk): group multiple heads per block when A < 128.
    assert A % 128 == 0, "head dim must be a multiple of 128 for lane-dense blocks"
    tq = _pick_tile(L, tq, 8)
    tkv = _pick_tile(L, tkv, 128)

    grid = (B, L // tq, H, L // tkv)
    q_spec = pl.BlockSpec((1, tq, A), lambda b, iq, h, ik: (b, iq, 3 * h))
    k_spec = pl.BlockSpec((1, tkv, A), lambda b, iq, h, ik: (b, ik, 3 * h + 1))
    v_spec = pl.BlockSpec((1, tkv, A), lambda b, iq, h, ik: (b, ik, 3 * h + 2))
    w_spec = pl.BlockSpec((A, E), lambda b, iq, h, ik: (h, 0))
    o_spec = pl.BlockSpec((1, tq, E), lambda b, iq, h, ik: (b, iq, 0))

    return pl.pallas_call(
        _fused_attn_kernel,
        out_shape=jax.ShapeDtypeStruct((B, L, E), out_dtype),
        grid_spec=pltpu.PrefetchScalarGridSpec(
            num_scalar_prefetch=0,
            grid=grid,
            in_specs=[q_spec, k_spec, v_spec, w_spec],
            out_specs=o_spec,
            scratch_shapes=[
                pltpu.VMEM((tq, 1), jnp.float32),   # running max m
                pltpu.VMEM((tq, 1), jnp.float32),   # running denom l
                pltpu.VMEM((tq, A), jnp.float32),   # per-head value accumulator
                pltpu.VMEM((tq, E), jnp.float32),   # fused out-proj accumulator
            ],
        ),
        compiler_params=pltpu.CompilerParams(
            dimension_semantics=("parallel", "parallel", "arbitrary", "arbitrary"),
            vmem_limit_bytes=_VMEM_LIMIT_BYTES,
        ),
    )(qkv, qkv, qkv, w_out_t)


# ---------------------------------------------------------------------------
# Full forward pass of SDPAttention.
# ---------------------------------------------------------------------------
def sdp_attention_forward(embeddings, w_qkv_t, w_out_t, H,
                          *, compute_dtype=jnp.bfloat16):
    """embeddings: (B, L, E); w_qkv_t: (E, 3E); w_out_t: (E, E)."""
    B, L, E = embeddings.shape
    assert E % H == 0
    A = E // H
    scale = float(A) ** (-0.5)
    out_dtype = embeddings.dtype

    # Fold the softmax scale into the Q columns of the QKV weight (one-time,
    # O(E*3E) wrapper work; removes the per-kv-step q*scale VPU multiply).
    col = jnp.arange(3 * E)
    is_q_col = (col % (3 * A)) < A
    w_qkv_scaled = jnp.where(is_q_col[None, :], w_qkv_t * scale, w_qkv_t)

    # bf16 operands for the MXU (f32 accumulation inside the kernels).
    x = embeddings.reshape(B * L, E).astype(compute_dtype)
    w1 = w_qkv_scaled.astype(compute_dtype)
    w2 = w_out_t.astype(compute_dtype)

    # 1) QKV projection (tiled / pipelined matmul). Reshape is free (no copy).
    qkv = pallas_matmul(x, w1, out_dtype=compute_dtype)       # (B*L, 3E)
    qkv = qkv.reshape(B, L, 3 * E)

    # 2) Flash attention with the output projection fused into its epilogue.
    out = pallas_attention_outproj(qkv, w2, H, out_dtype=out_dtype)  # (B, L, E)
    return out


# ---------------------------------------------------------------------------
# Pure-JAX reference (mirrors the PyTorch forward) for a sanity check.
# ---------------------------------------------------------------------------
def sdp_attention_reference(embeddings, w_qkv_t, w_out_t, H):
    B, L, E = embeddings.shape
    A = E // H
    scale = float(A) ** (-0.5)
    qkv = embeddings @ w_qkv_t
    qkv = qkv.reshape(B, L, H, 3 * A).transpose(0, 2, 1, 3)
    q, k, v = jnp.split(qkv, 3, axis=-1)
    attn = (q @ jnp.swapaxes(k, -2, -1)) * scale
    attn = jax.nn.softmax(attn, axis=-1)
    values = attn @ v
    values = values.transpose(0, 2, 1, 3).reshape(B, L, E)
    return values @ w_out_t


if __name__ == "__main__":
    # Small but TPU-friendly shapes: head dim A = E // H = 128 (lane-dense).
    B, L, E, H = 2, 128, 256, 2

    key = jax.random.PRNGKey(0)
    k_x, k_qkv, k_out = jax.random.split(key, 3)

    x = jax.random.normal(k_x, (B, L, E), dtype=jnp.float32)
    # nn.Linear(E, 3E).weight has shape (3E, E); store transposed -> (E, 3E).
    w_qkv_t = (jax.random.normal(k_qkv, (E, 3 * E), dtype=jnp.float32)
               * (1.0 / jnp.sqrt(E)))
    # nn.Linear(E, E).weight has shape (E, E); store transposed -> (E, E).
    w_out_t = (jax.random.normal(k_out, (E, E), dtype=jnp.float32)
               * (1.0 / jnp.sqrt(E)))

    forward = jax.jit(functools.partial(sdp_attention_forward, H=H))
    out = forward(x, w_qkv_t, w_out_t)
    out = jax.block_until_ready(out)

    # Reference in f32 built from the bf16-rounded inputs (so the comparison
    # isolates the kernel's bf16 intermediates, not the input quantization).
    def _bf16_round(a):
        return a.astype(jnp.bfloat16).astype(jnp.float32)

    ref = sdp_attention_reference(_bf16_round(x), _bf16_round(w_qkv_t),
                                  _bf16_round(w_out_t), H)

    assert out.shape == (B, L, E)
    # Tolerance covers bf16 intermediate rounding (qkv store, p/values MXU
    # operands); the softmax epilogue uses an exact reciprocal.
    assert jnp.allclose(out, ref, atol=2e-2, rtol=2e-2), "mismatch vs reference"

    print("KERNEL_OK")
</pallas_src>

<mosaic_0001>
module attributes {stable_mosaic.version = 11 : i64} {
  func.func @_matmul_kernel(%arg0: i32, %arg1: i32, %arg2: i32, %arg3: memref<256x256xbf16, #tpu.memory_space<vmem>>, %arg4: memref<256x384xbf16, #tpu.memory_space<vmem>>, %arg5: memref<256x384xbf16, #tpu.memory_space<vmem>>, %arg6: memref<256x384xf32, #tpu.memory_space<vmem>>) attributes {dimension_semantics = [#tpu.dimension_semantics<parallel>, #tpu.dimension_semantics<parallel>, #tpu.dimension_semantics<arbitrary>], iteration_bounds = array<i64: 1, 2, 1>, scalar_prefetch = 0 : i64, scratch_operands = 1 : i64, tpu.core_type = #tpu.core_type<tc>, window_params = [{transform_indices = @transform_0, window_bounds = array<i64: 256, 256>}, {transform_indices = @transform_1, window_bounds = array<i64: 256, 384>}, {transform_indices = @transform_2, window_bounds = array<i64: 256, 384>}]} {
    %c0_i32 = arith.constant 0 : i32
    %0 = arith.cmpi eq, %arg2, %c0_i32 : i32
    %1 = arith.extui %0 : i1 to i32
    %c0_i32_0 = arith.constant 0 : i32
    %2 = arith.cmpi ne, %1, %c0_i32_0 : i32
    scf.if %2 {
      %cst_10 = arith.constant 0.000000e+00 : f32
      %12 = vector.broadcast %cst_10 : f32 to vector<256x384xf32>
      %c0_11 = arith.constant 0 : index
      %c0_12 = arith.constant 0 : index
      %13 = vector.load %arg6[%c0_11, %c0_12] : memref<256x384xf32, #tpu.memory_space<vmem>>, vector<256x384xf32>
      tpu.vector_store %arg6[%c0_11, %c0_12], %12 {strides = array<i32>} : memref<256x384xf32, #tpu.memory_space<vmem>>, vector<256x384xf32>,
    } else {
    }
    %c0 = arith.constant 0 : index
    %c0_1 = arith.constant 0 : index
    %3 = vector.load %arg6[%c0, %c0_1] : memref<256x384xf32, #tpu.memory_space<vmem>>, vector<256x384xf32>
    %c0_2 = arith.constant 0 : index
    %c0_3 = arith.constant 0 : index
    %4 = vector.load %arg3[%c0_2, %c0_3] : memref<256x256xbf16, #tpu.memory_space<vmem>>, vector<256x256xbf16>
    %c0_4 = arith.constant 0 : index
    %c0_5 = arith.constant 0 : index
    %5 = vector.load %arg4[%c0_4, %c0_5] : memref<256x384xbf16, #tpu.memory_space<vmem>>, vector<256x384xbf16>
    %cst = arith.constant dense<0.000000e+00> : vector<256x384xf32>
    %6 = tpu.matmul %4, %5, %cst {dimension_numbers = #tpu.dot_dimension_numbers<[1], [0], [0], [1], [0, 0, 1, 1], [], []>} : vector<256x256xbf16>, vector<256x384xbf16>, vector<256x384xf32> -> vector<256x384xf32>
    %7 = arith.addf %3, %6 : vector<256x384xf32>
    %c0_6 = arith.constant 0 : index
    %c0_7 = arith.constant 0 : index
    %8 = vector.load %arg6[%c0_6, %c0_7] : memref<256x384xf32, #tpu.memory_space<vmem>>, vector<256x384xf32>
    tpu.vector_store %arg6[%c0_6, %c0_7], %7 {strides = array<i32>} : memref<256x384xf32, #tpu.memory_space<vmem>>, vector<256x384xf32>,
    %c0_i32_8 = arith.constant 0 : i32
    %9 = arith.cmpi eq, %arg2, %c0_i32_8 : i32
    %10 = arith.extui %9 : i1 to i32
    %c0_i32_9 = arith.constant 0 : i32
    %11 = arith.cmpi ne, %10, %c0_i32_9 : i32
    scf.if %11 {
      %c0_10 = arith.constant 0 : index
      %c0_11 = arith.constant 0 : index
      %12 = vector.load %arg6[%c0_10, %c0_11] : memref<256x384xf32, #tpu.memory_space<vmem>>, vector<256x384xf32>
      %13 = arith.truncf %12 : vector<256x384xf32> to vector<256x384xbf16>
      %c0_12 = arith.constant 0 : index
      %c0_13 = arith.constant 0 : index
      %14 = vector.load %arg5[%c0_12, %c0_13] : memref<256x384xbf16, #tpu.memory_space<vmem>>, vector<256x384xbf16>
      tpu.vector_store %arg5[%c0_12, %c0_13], %13 {strides = array<i32>} : memref<256x384xbf16, #tpu.memory_space<vmem>>, vector<256x384xbf16>,
    } else {
    }
    return
  }
  func.func @transform_0(%arg0: i32, %arg1: i32, %arg2: i32) -> (i32, i32) {
    %c0_i32 = arith.constant 0 : i32
    return %arg0, %arg2 : i32, i32
  }
  func.func @transform_1(%arg0: i32, %arg1: i32, %arg2: i32) -> (i32, i32) {
    %c0_i32 = arith.constant 0 : i32
    return %arg2, %arg1 : i32, i32
  }
  func.func @transform_2(%arg0: i32, %arg1: i32, %arg2: i32) -> (i32, i32) {
    %c0_i32 = arith.constant 0 : i32
    return %arg0, %arg1 : i32, i32
  }
}

module attributes {stable_mosaic.version = 11 : i64} {
  func.func @_fused_attn_kernel(%arg0: i32, %arg1: i32, %arg2: i32, %arg3: i32, %arg4: memref<1x128x128xbf16, #tpu.memory_space<vmem>>, %arg5: memref<1x128x128xbf16, #tpu.memory_space<vmem>>, %arg6: memref<1x128x128xbf16, #tpu.memory_space<vmem>>, %arg7: memref<128x256xbf16, #tpu.memory_space<vmem>>, %arg8: memref<1x128x256xf32, #tpu.memory_space<vmem>>, %arg9: memref<128x1xf32, #tpu.memory_space<vmem>>, %arg10: memref<128x1xf32, #tpu.memory_space<vmem>>, %arg11: memref<128x128xf32, #tpu.memory_space<vmem>>, %arg12: memref<128x256xf32, #tpu.memory_space<vmem>>) attributes {dimension_semantics = [#tpu.dimension_semantics<parallel>, #tpu.dimension_semantics<parallel>, #tpu.dimension_semantics<arbitrary>, #tpu.dimension_semantics<arbitrary>], iteration_bounds = array<i64: 2, 1, 2, 1>, scalar_prefetch = 0 : i64, scratch_operands = 4 : i64, tpu.core_type = #tpu.core_type<tc>, window_params = [{transform_indices = @transform_0, window_bounds = array<i64: 1, 128, 128>}, {transform_indices = @transform_1, window_bounds = array<i64: 1, 128, 128>}, {transform_indices = @transform_2, window_bounds = array<i64: 1, 128, 128>}, {transform_indices = @transform_3, window_bounds = array<i64: 128, 256>}, {transform_indices = @transform_4, window_bounds = array<i64: 1, 128, 256>}]} {
    %c0_i32 = arith.constant 0 : i32
    %0 = arith.cmpi eq, %arg2, %c0_i32 : i32
    %c0_i32_0 = arith.constant 0 : i32
    %1 = arith.cmpi eq, %arg3, %c0_i32_0 : i32
    %2 = arith.andi %0, %1 : i1
    %3 = arith.extui %2 : i1 to i32
    %c0_i32_1 = arith.constant 0 : i32
    %4 = arith.cmpi ne, %3, %c0_i32_1 : i32
    scf.if %4 {
      %cst_31 = arith.constant 0.000000e+00 : f32
      %46 = vector.broadcast %cst_31 : f32 to vector<128x256xf32>
      %c0_32 = arith.constant 0 : index
      %c0_33 = arith.constant 0 : index
      %47 = vector.load %arg12[%c0_32, %c0_33] : memref<128x256xf32, #tpu.memory_space<vmem>>, vector<128x256xf32>
      tpu.vector_store %arg12[%c0_32, %c0_33], %46 {strides = array<i32>} : memref<128x256xf32, #tpu.memory_space<vmem>>, vector<128x256xf32>,
    } else {
    }
    %c0_i32_2 = arith.constant 0 : i32
    %5 = arith.cmpi eq, %arg3, %c0_i32_2 : i32
    %6 = arith.extui %5 : i1 to i32
    %c0_i32_3 = arith.constant 0 : i32
    %7 = arith.cmpi ne, %6, %c0_i32_3 : i32
    scf.if %7 {
      %cst_31 = arith.constant 0xFF800000 : f32
      %46 = vector.broadcast %cst_31 : f32 to vector<128x1xf32>
      %c0_32 = arith.constant 0 : index
      %c0_33 = arith.constant 0 : index
      %47 = vector.load %arg9[%c0_32, %c0_33] : memref<128x1xf32, #tpu.memory_space<vmem>>, vector<128x1xf32>
      tpu.vector_store %arg9[%c0_32, %c0_33], %46 {strides = array<i32>} : memref<128x1xf32, #tpu.memory_space<vmem>>, vector<128x1xf32>,
      %cst_34 = arith.constant 0.000000e+00 : f32
      %48 = vector.broadcast %cst_34 : f32 to vector<128x1xf32>
      %c0_35 = arith.constant 0 : index
      %c0_36 = arith.constant 0 : index
      %49 = vector.load %arg10[%c0_35, %c0_36] : memref<128x1xf32, #tpu.memory_space<vmem>>, vector<128x1xf32>
      tpu.vector_store %arg10[%c0_35, %c0_36], %48 {strides = array<i32>} : memref<128x1xf32, #tpu.memory_space<vmem>>, vector<128x1xf32>,
      %cst_37 = arith.constant 0.000000e+00 : f32
      %50 = vector.broadcast %cst_37 : f32 to vector<128x128xf32>
      %c0_38 = arith.constant 0 : index
      %c0_39 = arith.constant 0 : index
      %51 = vector.load %arg11[%c0_38, %c0_39] : memref<128x128xf32, #tpu.memory_space<vmem>>, vector<128x128xf32>
      tpu.vector_store %arg11[%c0_38, %c0_39], %50 {strides = array<i32>} : memref<128x128xf32, #tpu.memory_space<vmem>>, vector<128x128xf32>,
    } else {
    }
    %c0 = arith.constant 0 : index
    %c0_4 = arith.constant 0 : index
    %c0_5 = arith.constant 0 : index
    %8 = vector.load %arg4[%c0, %c0_4, %c0_5] : memref<1x128x128xbf16, #tpu.memory_space<vmem>>, vector<1x128x128xbf16>
    %9 = vector.shape_cast %8 : vector<1x128x128xbf16> to vector<128x128xbf16>
    %c0_6 = arith.constant 0 : index
    %c0_7 = arith.constant 0 : index
    %c0_8 = arith.constant 0 : index
    %10 = vector.load %arg5[%c0_6, %c0_7, %c0_8] : memref<1x128x128xbf16, #tpu.memory_space<vmem>>, vector<1x128x128xbf16>
    %11 = vector.shape_cast %10 : vector<1x128x128xbf16> to vector<128x128xbf16>
    %c0_9 = arith.constant 0 : index
    %c0_10 = arith.constant 0 : index
    %c0_11 = arith.constant 0 : index
    %12 = vector.load %arg6[%c0_9, %c0_10, %c0_11] : memref<1x128x128xbf16, #tpu.memory_space<vmem>>, vector<1x128x128xbf16>
    %13 = vector.shape_cast %12 : vector<1x128x128xbf16> to vector<128x128xbf16>
    %cst = arith.constant dense<0.000000e+00> : vector<128x128xf32>
    %14 = tpu.matmul %9, %11, %cst {dimension_numbers = #tpu.dot_dimension_numbers<[1], [1], [0], [0], [0, 0, 1, 0], [], []>} : vector<128x128xbf16>, vector<128x128xbf16>, vector<128x128xf32> -> vector<128x128xf32>
    %c0_12 = arith.constant 0 : index
    %c0_13 = arith.constant 0 : index
    %15 = vector.load %arg9[%c0_12, %c0_13] : memref<128x1xf32, #tpu.memory_space<vmem>>, vector<128x1xf32>
    %cst_14 = arith.constant dense<0xFF800000> : vector<128xf32>
    %16 = vector.multi_reduction <maximumf>, %14, %cst_14 [1] : vector<128x128xf32> to vector<128xf32>
    %17 = vector.shape_cast %16 : vector<128xf32> to vector<128x1xf32>
    %18 = arith.maximumf %15, %17 : vector<128x1xf32>
    %19 = arith.subf %15, %18 : vector<128x1xf32>
    %20 = math.exp %19 : vector<128x1xf32>
    %21 = vector.broadcast %18 : vector<128x1xf32> to vector<128x128xf32>
    %22 = arith.subf %14, %21 : vector<128x128xf32>
    %23 = math.exp %22 : vector<128x128xf32>
    %c0_15 = arith.constant 0 : index
    %c0_16 = arith.constant 0 : index
    %24 = vector.load %arg10[%c0_15, %c0_16] : memref<128x1xf32, #tpu.memory_space<vmem>>, vector<128x1xf32>
    %25 = arith.mulf %20, %24 : vector<128x1xf32>
    %cst_17 = arith.constant dense<0.000000e+00> : vector<128xf32>
    %26 = vector.multi_reduction <add>, %23, %cst_17 [1] : vector<128x128xf32> to vector<128xf32>
    %27 = vector.shape_cast %26 : vector<128xf32> to vector<128x1xf32>
    %28 = arith.addf %25, %27 : vector<128x1xf32>
    %c0_18 = arith.constant 0 : index
    %c0_19 = arith.constant 0 : index
    %29 = vector.load %arg10[%c0_18, %c0_19] : memref<128x1xf32, #tpu.memory_space<vmem>>, vector<128x1xf32>
    tpu.vector_store %arg10[%c0_18, %c0_19], %28 {strides = array<i32>} : memref<128x1xf32, #tpu.memory_space<vmem>>, vector<128x1xf32>,
    %c0_20 = arith.constant 0 : index
    %c0_21 = arith.constant 0 : index
    %30 = vector.load %arg11[%c0_20, %c0_21] : memref<128x128xf32, #tpu.memory_space<vmem>>, vector<128x128xf32>
    %31 = vector.broadcast %20 : vector<128x1xf32> to vector<128x128xf32>
    %32 = arith.mulf %31, %30 : vector<128x128xf32>
    %33 = arith.truncf %23 : vector<128x128xf32> to vector<128x128xbf16>
    %cst_22 = arith.constant dense<0.000000e+00> : vector<128x128xf32>
    %34 = tpu.matmul %33, %13, %cst_22 {dimension_numbers = #tpu.dot_dimension_numbers<[1], [0], [0], [1], [0, 0, 1, 1], [], []>} : vector<128x128xbf16>, vector<128x128xbf16>, vector<128x128xf32> -> vector<128x128xf32>
    %35 = arith.addf %32, %34 : vector<128x128xf32>
    %c0_23 = arith.constant 0 : index
    %c0_24 = arith.constant 0 : index
    %36 = vector.load %arg11[%c0_23, %c0_24] : memref<128x128xf32, #tpu.memory_space<vmem>>, vector<128x128xf32>
    tpu.vector_store %arg11[%c0_23, %c0_24], %35 {strides = array<i32>} : memref<128x128xf32, #tpu.memory_space<vmem>>, vector<128x128xf32>,
    %c0_25 = arith.constant 0 : index
    %c0_26 = arith.constant 0 : index
    %37 = vector.load %arg9[%c0_25, %c0_26] : memref<128x1xf32, #tpu.memory_space<vmem>>, vector<128x1xf32>
    tpu.vector_store %arg9[%c0_25, %c0_26], %18 {strides = array<i32>} : memref<128x1xf32, #tpu.memory_space<vmem>>, vector<128x1xf32>,
    %c0_i32_27 = arith.constant 0 : i32
    %38 = arith.cmpi eq, %arg3, %c0_i32_27 : i32
    %39 = arith.extui %38 : i1 to i32
    %c0_i32_28 = arith.constant 0 : i32
    %40 = arith.cmpi ne, %39, %c0_i32_28 : i32
    scf.if %40 {
      %c0_31 = arith.constant 0 : index
      %c0_32 = arith.constant 0 : index
      %46 = vector.load %arg10[%c0_31, %c0_32] : memref<128x1xf32, #tpu.memory_space<vmem>>, vector<128x1xf32>
      %cst_33 = arith.constant 1.000000e+00 : f32
      %47 = vector.broadcast %cst_33 : f32 to vector<128x1xf32>
      %48 = arith.divf %47, %46 : vector<128x1xf32>
      %c0_34 = arith.constant 0 : index
      %c0_35 = arith.constant 0 : index
      %49 = vector.load %arg11[%c0_34, %c0_35] : memref<128x128xf32, #tpu.memory_space<vmem>>, vector<128x128xf32>
      %50 = vector.broadcast %48 : vector<128x1xf32> to vector<128x128xf32>
      %51 = arith.mulf %49, %50 : vector<128x128xf32>
      %52 = arith.truncf %51 : vector<128x128xf32> to vector<128x128xbf16>
      %c0_36 = arith.constant 0 : index
      %c0_37 = arith.constant 0 : index
      %53 = vector.load %arg12[%c0_36, %c0_37] : memref<128x256xf32, #tpu.memory_space<vmem>>, vector<128x256xf32>
      %c0_38 = arith.constant 0 : index
      %c0_39 = arith.constant 0 : index
      %54 = vector.load %arg7[%c0_38, %c0_39] : memref<128x256xbf16, #tpu.memory_space<vmem>>, vector<128x256xbf16>
      %cst_40 = arith.constant dense<0.000000e+00> : vector<128x256xf32>
      %55 = tpu.matmul %52, %54, %cst_40 {dimension_numbers = #tpu.dot_dimension_numbers<[1], [0], [0], [1], [0, 0, 1, 1], [], []>} : vector<128x128xbf16>, vector<128x256xbf16>, vector<128x256xf32> -> vector<128x256xf32>
      %56 = arith.addf %53, %55 : vector<128x256xf32>
      %c0_41 = arith.constant 0 : index
      %c0_42 = arith.constant 0 : index
      %57 = vector.load %arg12[%c0_41, %c0_42] : memref<128x256xf32, #tpu.memory_space<vmem>>, vector<128x256xf32>
      tpu.vector_store %arg12[%c0_41, %c0_42], %56 {strides = array<i32>} : memref<128x256xf32, #tpu.memory_space<vmem>>, vector<128x256xf32>,
    } else {
    }
    %c1_i32 = arith.constant 1 : i32
    %41 = arith.cmpi eq, %arg2, %c1_i32 : i32
    %c0_i32_29 = arith.constant 0 : i32
    %42 = arith.cmpi eq, %arg3, %c0_i32_29 : i32
    %43 = arith.andi %41, %42 : i1
    %44 = arith.extui %43 : i1 to i32
    %c0_i32_30 = arith.constant 0 : i32
    %45 = arith.cmpi ne, %44, %c0_i32_30 : i32
    scf.if %45 {
      %c0_31 = arith.constant 0 : index
      %c0_32 = arith.constant 0 : index
      %46 = vector.load %arg12[%c0_31, %c0_32] : memref<128x256xf32, #tpu.memory_space<vmem>>, vector<128x256xf32>
      %c0_33 = arith.constant 0 : index
      %c0_34 = arith.constant 0 : index
      %c0_35 = arith.constant 0 : index
      %47 = vector.load %arg8[%c0_33, %c0_34, %c0_35] : memref<1x128x256xf32, #tpu.memory_space<vmem>>, vector<1x128x256xf32>
      %48 = vector.shape_cast %47 : vector<1x128x256xf32> to vector<128x256xf32>
      %49 = vector.shape_cast %46 : vector<128x256xf32> to vector<1x128x256xf32>
      tpu.vector_store %arg8[%c0_33, %c0_34, %c0_35], %49 {strides = array<i32>} : memref<1x128x256xf32, #tpu.memory_space<vmem>>, vector<1x128x256xf32>,
    } else {
    }
    return
  }
  func.func @transform_0(%arg0: i32, %arg1: i32, %arg2: i32, %arg3: i32) -> (i32, i32, i32) {
    %c3_i32 = arith.constant 3 : i32
    %0 = arith.muli %c3_i32, %arg2 : i32
    %c0_i32 = arith.constant 0 : i32
    return %arg0, %arg1, %0 : i32, i32, i32
  }
  func.func @transform_1(%arg0: i32, %arg1: i32, %arg2: i32, %arg3: i32) -> (i32, i32, i32) {
    %c3_i32 = arith.constant 3 : i32
    %0 = arith.muli %c3_i32, %arg2 : i32
    %c1_i32 = arith.constant 1 : i32
    %1 = arith.addi %0, %c1_i32 : i32
    %c0_i32 = arith.constant 0 : i32
    return %arg0, %arg3, %1 : i32, i32, i32
  }
  func.func @transform_2(%arg0: i32, %arg1: i32, %arg2: i32, %arg3: i32) -> (i32, i32, i32) {
    %c3_i32 = arith.constant 3 : i32
    %0 = arith.muli %c3_i32, %arg2 : i32
    %c2_i32 = arith.constant 2 : i32
    %1 = arith.addi %0, %c2_i32 : i32
    %c0_i32 = arith.constant 0 : i32
    return %arg0, %arg3, %1 : i32, i32, i32
  }
  func.func @transform_3(%arg0: i32, %arg1: i32, %arg2: i32, %arg3: i32) -> (i32, i32) {
    %c0_i32 = arith.constant 0 : i32
    %c0_i32_0 = arith.constant 0 : i32
    return %arg2, %c0_i32 : i32, i32
  }
  func.func @transform_4(%arg0: i32, %arg1: i32, %arg2: i32, %arg3: i32) -> (i32, i32, i32) {
    %c0_i32 = arith.constant 0 : i32
    %c0_i32_0 = arith.constant 0 : i32
    return %arg0, %arg1, %c0_i32 : i32, i32, i32
  }
}

</mosaic_0001>

<llo_original>
// kernel: sdp_attention_forward.3
$region0: #{sdp_attention_forward.3}
  #allocation0 [shape = 'u32[]', space=smem, size = 0x4, offset = 0x4, fixed_abs, tag = 'smem constant byte address 0x4 - core index']
  #allocation1 [shape = 'u32[144,128]{1,0:T(1,128)}', space=vmem, size = 0x12000, scoped, tag = 'internal scratch']
  #allocation2 [shape = 'f32[128,1]{1,0:T(8,128)}', space=vmem, size = 0x10000, scoped, tag = 'scratch operand']
  #allocation3 [shape = 'f32[128,1]{1,0:T(8,128)}', space=vmem, size = 0x10000, scoped, tag = 'scratch operand']
  #allocation4 [shape = 'f32[128,128]{1,0:T(8,128)}', space=vmem, size = 0x10000, scoped, tag = 'scratch operand']
  #allocation5 [shape = 'f32[128,256]{1,0:T(8,128)}', space=vmem, size = 0x20000, scoped, tag = 'scratch operand']
  %s0 = inlined_call_operand.vmem [shape: bf16[2,128,768], index: 0, kind: input, shape index: {}, may-alias: {0,1,2}]
  %s1 = inlined_call_operand.vmem [shape: bf16[2,128,768], index: 1, kind: input, shape index: {}, may-alias: {0,1,2}]
  %s2 = inlined_call_operand.vmem [shape: bf16[2,128,768], index: 2, kind: input, shape index: {}, may-alias: {0,1,2}]
  %s3 = inlined_call_operand.vmem [shape: bf16[256,256], index: 3, kind: input, shape index: {}]
  %s4 = inlined_call_operand.hbm [shape: f32[2,128,256], index: 4, kind: output, shape index: {}]
  %s5 = sld [smem:[#allocation0]]
  $region188: #{sdp_attention_forward.3} parent=0
    _
  %s7 = ssub.s32 1, %s5
  %s8 = scalar_select 0, %s7, %s5
  $region1: #{sdp_attention_forward.3} parent=0
    #allocation6 [shape = 'u8[65536]{0}', space=vmem, size = 0x10000, scoped, tag = 'input window, operand 0']
    #allocation7 [shape = 'u8[65536]{0}', space=vmem, size = 0x10000, scoped, tag = 'input window, operand 1']
    #allocation8 [shape = 'u8[65536]{0}', space=vmem, size = 0x10000, scoped, tag = 'input window, operand 2']
    #allocation9 [shape = 'u8[262144]{0}', space=vmem, size = 0x40000, scoped, tag = 'output window, operand 0']
    #allocation10 [shape = 's32[2]{0}', space=sflag, size = 0x8, scoped, tag = 'scoped memory for sdp_attention_forward.3']
    %9 = vsyncpa [#allocation10], 0
    %s10 = scalar_lea.sflag [#allocation10], 1
    %11 = vsyncpa %s10, 0
    loop: start=0, step=1, limit=6
    $region2: #{sdp_attention_forward.3} parent=1 // loop_pre_header
      _
    $region3: #{sdp_attention_forward.3} parent=1 // loop_header
      %s13 = sphi 0, %s17
      %p14 = scmp.ge.s32.totalorder %s13, 6
      %s20 = sphi 0, %s46
      %s21 = sphi 0, %s42
      %s22 = sphi 0, %s38
      %s23 = sphi 0, %s34
      %s24 = sphi 0, %s20
      %s25 = sphi 0, %s21
      %s26 = sphi 0, %s22
      %s27 = sphi 0, %s23
      %s28 = sphi 0, %s24
      %s29 = sphi 0, %s25
      %s30 = sphi 0, %s26
      %s31 = sphi 0, %s27
      %s55 = sphi 0, %s57
      %s58 = sphi 0, %s55
      %s59 = sphi 0, %s58
      %s75 = sphi 0, %s59
      %s89 = sphi 0, %s91
      %s92 = sphi 0, %s89
      %s93 = sphi 0, %s92
      %s109 = sphi 0, %s93
      %s123 = sphi 0, %s125
      %s126 = sphi 0, %s123
      %s127 = sphi 0, %s126
      %s143 = sphi 0, %s127
      %s149 = sphi 0, %s151
      %s152 = sphi 0, %s149
      %s153 = sphi 0, %s152
      %s169 = sphi 0, %s153
      %s177 = sphi 0, %s179
      %s180 = sphi 0, %s177
      %s181 = sphi 0, %s180
      %s197 = sphi 0, %s181
    $region4: #{sdp_attention_forward.3} parent=1 // loop_header_branch
      %16 = sbr.rel (%p14) target = $region8
    $region5: #{sdp_attention_forward.3} parent=1 // loop_body
      %s18 = ssub.s32 %s13, 1
      %s19 = ssub.s32 %s13, 2
      %s32 = sadd.s32 1, %s23
      %p33 = scmp.ge.s32.totalorder %s32, 1
      %s34 = scalar_select %p33, 0, %s32
      %s35 = sadd.s32 1, %s22
      %s36 = scalar_select %p33, %s35, %s22
      %p37 = scmp.ge.s32.totalorder %s36, 2
      %s38 = scalar_select %p37, 0, %s36
      %s39 = sadd.s32 1, %s21
      %s40 = scalar_select %p37, %s39, %s21
      %p41 = scmp.ge.s32.totalorder %s40, 1
      %s42 = scalar_select %p41, 0, %s40
      %s43 = sadd.s32 1, %s20
      %s44 = scalar_select %p41, %s43, %s20
      %p45 = scmp.ge.s32.totalorder %s44, 2
      %s46 = scalar_select %p45, 0, %s44
      %s47 = smul.u32 %s22, 3
      %s48 = smul.u32 %s38, 3
      %s49 = ssub.s32 %s20, %s46
      %s50 = ssub.s32 %s21, %s42
      %s51 = sor.u32 %s49, %s50
      %s52 = ssub.s32 %s47, %s48
      %s53 = sor.u32 %s51, %s52
      %p54 = scmp.eq.s32.totalorder %s53, 0
      %s56 = sadd.s32 %s55, 1
      %s57 = scalar_select %p54, %s55, %s56
      %p60 = pneg %p54
      %p61 = scmp.eq.s32.totalorder %s13, 3
      %p62 = por %p60, %p61
      %p63 = scmp.ne.s32.totalorder %s55, %s58
      %p64 = scmp.eq.s32.totalorder %s13, 0
      %p65 = por %p63, %p64
      %p66 = scmp.ne.s32.totalorder %s55, %s58
      %p67 = scmp.eq.s32.totalorder %s18, 3
      %p68 = por %p66, %p67
      %p69 = scmp.ne.s32.totalorder %s58, %s59
      %p70 = scmp.eq.s32.totalorder %s18, 0
      %p71 = por %p69, %p70
      %p72 = scmp.ne.s32.totalorder %s58, %s59
      %p73 = scmp.eq.s32.totalorder %s19, 3
      %p74 = por %p72, %p73
      %p76 = scmp.ne.s32.totalorder %s59, %s75
      %p77 = scmp.eq.s32.totalorder %s19, 0
      %p78 = por %p76, %p77
      %s79 = smul.u32 %s22, 3
      %s80 = sadd.s32 %s79, 1
      %s81 = smul.u32 %s38, 3
      %s82 = sadd.s32 %s81, 1
      %s83 = ssub.s32 %s20, %s46
      %s84 = ssub.s32 %s23, %s34
      %s85 = sor.u32 %s83, %s84
      %s86 = ssub.s32 %s80, %s82
      %s87 = sor.u32 %s85, %s86
      %p88 = scmp.eq.s32.totalorder %s87, 0
      %s90 = sadd.s32 %s89, 1
      %s91 = scalar_select %p88, %s89, %s90
      %p94 = pneg %p88
      %p95 = scmp.eq.s32.totalorder %s13, 3
      %p96 = por %p94, %p95
      %p97 = scmp.ne.s32.totalorder %s89, %s92
      %p98 = scmp.eq.s32.totalorder %s13, 0
      %p99 = por %p97, %p98
      %p100 = scmp.ne.s32.totalorder %s89, %s92
      %p101 = scmp.eq.s32.totalorder %s18, 3
      %p102 = por %p100, %p101
      %p103 = scmp.ne.s32.totalorder %s92, %s93
      %p104 = scmp.eq.s32.totalorder %s18, 0
      %p105 = por %p103, %p104
      %p106 = scmp.ne.s32.totalorder %s92, %s93
      %p107 = scmp.eq.s32.totalorder %s19, 3
      %p108 = por %p106, %p107
      %p110 = scmp.ne.s32.totalorder %s93, %s109
      %p111 = scmp.eq.s32.totalorder %s19, 0
      %p112 = por %p110, %p111
      %s113 = smul.u32 %s22, 3
      %s114 = sadd.s32 %s113, 2
      %s115 = smul.u32 %s38, 3
      %s116 = sadd.s32 %s115, 2
      %s117 = ssub.s32 %s20, %s46
      %s118 = ssub.s32 %s23, %s34
      %s119 = sor.u32 %s117, %s118
      %s120 = ssub.s32 %s114, %s116
      %s121 = sor.u32 %s119, %s120
      %p122 = scmp.eq.s32.totalorder %s121, 0
      %s124 = sadd.s32 %s123, 1
      %s125 = scalar_select %p122, %s123, %s124
      %p128 = pneg %p122
      %p129 = scmp.eq.s32.totalorder %s13, 3
      %p130 = por %p128, %p129
      %p131 = scmp.ne.s32.totalorder %s123, %s126
      %p132 = scmp.eq.s32.totalorder %s13, 0
      %p133 = por %p131, %p132
      %p134 = scmp.ne.s32.totalorder %s123, %s126
      %p135 = scmp.eq.s32.totalorder %s18, 3
      %p136 = por %p134, %p135
      %p137 = scmp.ne.s32.totalorder %s126, %s127
      %p138 = scmp.eq.s32.totalorder %s18, 0
      %p139 = por %p137, %p138
      %p140 = scmp.ne.s32.totalorder %s126, %s127
      %p141 = scmp.eq.s32.totalorder %s19, 3
      %p142 = por %p140, %p141
      %p144 = scmp.ne.s32.totalorder %s127, %s143
      %p145 = scmp.eq.s32.totalorder %s19, 0
      %p146 = por %p144, %p145
      %s147 = ssub.s32 %s22, %s38
      %p148 = scmp.eq.s32.totalorder %s147, 0
      %s150 = sadd.s32 %s149, 1
      %s151 = scalar_select %p148, %s149, %s150
      %p154 = pneg %p148
      %p155 = scmp.eq.s32.totalorder %s13, 3
      %p156 = por %p154, %p155
      %p157 = scmp.ne.s32.totalorder %s149, %s152
      %p158 = scmp.eq.s32.totalorder %s13, 0
      %p159 = por %p157, %p158
      %p160 = scmp.ne.s32.totalorder %s149, %s152
      %p161 = scmp.eq.s32.totalorder %s18, 3
      %p162 = por %p160, %p161
      %p163 = scmp.ne.s32.totalorder %s152, %s153
      %p164 = scmp.eq.s32.totalorder %s18, 0
      %p165 = por %p163, %p164
      %p166 = scmp.ne.s32.totalorder %s152, %s153
      %p167 = scmp.eq.s32.totalorder %s19, 3
      %p168 = por %p166, %p167
      %p170 = scmp.ne.s32.totalorder %s153, %s169
      %p171 = scmp.eq.s32.totalorder %s19, 0
      %p172 = por %p170, %p171
      %s173 = ssub.s32 %s20, %s46
      %s174 = ssub.s32 %s21, %s42
      %s175 = sor.u32 %s173, %s174
      %p176 = scmp.eq.s32.totalorder %s175, 0
      %s178 = sadd.s32 %s177, 1
      %s179 = scalar_select %p176, %s177, %s178
      %p182 = pneg %p176
      %p183 = scmp.eq.s32.totalorder %s13, 3
      %p184 = por %p182, %p183
      %p185 = scmp.ne.s32.totalorder %s177, %s180
      %p186 = scmp.eq.s32.totalorder %s13, 0
      %p187 = por %p185, %p186
      %p188 = scmp.ne.s32.totalorder %s177, %s180
      %p189 = scmp.eq.s32.totalorder %s18, 3
      %p190 = por %p188, %p189
      %p191 = scmp.ne.s32.totalorder %s180, %s181
      %p192 = scmp.eq.s32.totalorder %s18, 0
      %p193 = por %p191, %p192
      %p194 = scmp.ne.s32.totalorder %s180, %s181
      %p195 = scmp.eq.s32.totalorder %s19, 3
      %p196 = por %p194, %p195
      %p198 = scmp.ne.s32.totalorder %s181, %s197
      %p199 = scmp.eq.s32.totalorder %s19, 0
      %p200 = por %p198, %p199
      %p201 = scmp.le.s32.totalorder 1, %s13
      %p202 = scmp.lt.s32.totalorder %s13, 5
      %p203 = pnand %p201, %p202
      %p204 = pneg %p203
      // Predicated region
      $region9: #{sdp_attention_forward.3} parent=5 // pred_check
        _
      $region10: #{sdp_attention_forward.3} parent=5 // pred_check_branch
        %206 = sbr.rel (%p203) target = $region12
      $region11: #{sdp_attention_forward.3} parent=5 // pred_region
        %s207 = ssub.s32 %s13, 1
      $region12: #{sdp_attention_forward.3} parent=5 // pred_fallthru
        _
      %p208 = scmp.lt.s32.totalorder %s13, 4
      // Predicated region
      $region13: #{sdp_attention_forward.3} parent=5 // pred_check
        %p209 = pneg %p208
      $region14: #{sdp_attention_forward.3} parent=5 // pred_check_branch
        %211 = sbr.rel (%p209) target = $region16
      $region15: #{sdp_attention_forward.3} parent=5 // pred_region
        // Predicated region
        $region17: #{sdp_attention_forward.3} parent=15 // pred_check
          %p212 = pneg %p65
        $region18: #{sdp_attention_forward.3} parent=15 // pred_check_branch
          %214 = sbr.rel (%p212) target = $region20
        $region19: #{sdp_attention_forward.3} parent=15 // pred_region
          %s215 = sand.u32 %s55, 1
          %s216 = sand.u32 %s55, 1
          %s217 = smul.addr %s216, 64
          %s218 = scalar_lea.vmem [#allocation6], %s217
          %s219 = smul.u32 %s22, 3
          %s220 = smul.u32 16, %s21
          %s221 = smul.addr %s220, 6
          %s222 = sadd.s32 %s219, %s221
          %s223 = smul.addr %s20, 96
          %s224 = sadd.s32 %s222, %s223
          %s225 = smul.addr %s224, 4
          %s226 = scalar_lea.vmem %s0, %s225
          // Predicated region
          $region21: #{sdp_attention_forward.3} parent=19 // pred_check
            _
          $region22: #{sdp_attention_forward.3} parent=19 // pred_check_branch
            %228 = sbr.rel (0) target = $region24
          $region23: #{sdp_attention_forward.3} parent=19 // pred_region
            // Predicated region
            $region25: #{sdp_attention_forward.3} parent=23 // pred_check
              _
            $region26: #{sdp_attention_forward.3} parent=23 // pred_check_branch
              %230 = sbr.rel target = $region28
            $region27: #{sdp_attention_forward.3} parent=23 // pred_region
              // Predicated region
              $region40: #{sdp_attention_forward.3} parent=27 // pred_check
                _
              $region41: #{sdp_attention_forward.3} parent=27 // pred_check_branch
                %275 = sbr.rel (0) target = $region43
              $region42: #{sdp_attention_forward.3} parent=27 // pred_region
                loop: start=0, step=1, limit=1
                $region44: #{sdp_attention_forward.3} parent=42 // loop_pre_header
                  _
                $region45: #{sdp_attention_forward.3} parent=42 // loop_header
                  %s277 = sphi 0, %s281
                  %p278 = scmp.ge.s32.totalorder %s277, 1
                  %s282 = sphi %s226, %s226
                  %s283 = sphi %s218, %s218
                $region46: #{sdp_attention_forward.3} parent=42 // loop_header_branch
                  %280 = sbr.rel (%p278) target = $region50
                $region47: #{sdp_attention_forward.3} parent=42 // loop_body
                  _
                $region48: #{sdp_attention_forward.3} parent=42 // loop_footer
                  %s281 = sadd.s32 1, %s277
                $region49: #{sdp_attention_forward.3} parent=42 // loop_footer_branch
                  %276 = sbr.rel target = $region45
                $region50: #{sdp_attention_forward.3} parent=42 // loop_exit
                  _
                loop: start=0, step=1, limit=1
                $region51: #{sdp_attention_forward.3} parent=42 // loop_pre_header
                  _
                $region52: #{sdp_attention_forward.3} parent=42 // loop_header
                  %s286 = sphi 0, %s290
                  %p287 = scmp.ge.s32.totalorder %s286, 1
                  %s291 = sphi %s226, %s226
                  %s292 = sphi %s218, %s218
                $region53: #{sdp_attention_forward.3} parent=42 // loop_header_branch
                  %289 = sbr.rel (%p287) target = $region57
                $region54: #{sdp_attention_forward.3} parent=42 // loop_body
                  %v293 = vld [vmem:[%s291] sm:$0xf]
                  %294 = vst [vmem:[%s292] sm:$0xf] %v293
                  %v295 = vld [vmem:[%s291 + $0x18] sm:$0xf]
                  %296 = vst [vmem:[%s292 + $0x4] sm:$0xf] %v295
                  %v297 = vld [vmem:[%s291 + $0x30] sm:$0xf]
                  %298 = vst [vmem:[%s292 + $0x8] sm:$0xf] %v297
                  %v299 = vld [vmem:[%s291 + $0x48] sm:$0xf]
                  %300 = vst [vmem:[%s292 + $0xc] sm:$0xf] %v299
                  %v301 = vld [vmem:[%s291 + $0x60] sm:$0xf]
                  %302 = vst [vmem:[%s292 + $0x10] sm:$0xf] %v301
                  %v303 = vld [vmem:[%s291 + $0x78] sm:$0xf]
                  %304 = vst [vmem:[%s292 + $0x14] sm:$0xf] %v303
                  %v305 = vld [vmem:[%s291 + $0x90] sm:$0xf]
                  %306 = vst [vmem:[%s292 + $0x18] sm:$0xf] %v305
                  %v307 = vld [vmem:[%s291 + $0xa8] sm:$0xf]
                  %308 = vst [vmem:[%s292 + $0x1c] sm:$0xf] %v307
                  %v309 = vld [vmem:[%s291 + $0xc0] sm:$0xf]
                  %310 = vst [vmem:[%s292 + $0x20] sm:$0xf] %v309
                  %v311 = vld [vmem:[%s291 + $0xd8] sm:$0xf]
                  %312 = vst [vmem:[%s292 + $0x24] sm:$0xf] %v311
                  %v313 = vld [vmem:[%s291 + $0xf0] sm:$0xf]
                  %314 = vst [vmem:[%s292 + $0x28] sm:$0xf] %v313
                  %v315 = vld [vmem:[%s291 + $0x108] sm:$0xf]
                  %316 = vst [vmem:[%s292 + $0x2c] sm:$0xf] %v315
                  %v317 = vld [vmem:[%s291 + $0x120] sm:$0xf]
                  %318 = vst [vmem:[%s292 + $0x30] sm:$0xf] %v317
                  %v319 = vld [vmem:[%s291 + $0x138] sm:$0xf]
                  %320 = vst [vmem:[%s292 + $0x34] sm:$0xf] %v319
                  %v321 = vld [vmem:[%s291 + $0x150] sm:$0xf]
                  %322 = vst [vmem:[%s292 + $0x38] sm:$0xf] %v321
                  %v323 = vld [vmem:[%s291 + $0x168] sm:$0xf]
                  %324 = vst [vmem:[%s292 + $0x3c] sm:$0xf] %v323
                $region55: #{sdp_attention_forward.3} parent=42 // loop_footer
                  %s290 = sadd.s32 1, %s286
                $region56: #{sdp_attention_forward.3} parent=42 // loop_footer_branch
                  %285 = sbr.rel target = $region52
                $region57: #{sdp_attention_forward.3} parent=42 // loop_exit
                  _
              $region43: #{sdp_attention_forward.3} parent=27 // pred_fallthru
                _
            $region28: #{sdp_attention_forward.3} parent=23 // pred_fallthru
              _
            // Predicated region
            $region29: #{sdp_attention_forward.3} parent=23 // pred_check
              _
            $region30: #{sdp_attention_forward.3} parent=23 // pred_check_branch
              %232 = sbr.rel (0) target = $region32
            $region31: #{sdp_attention_forward.3} parent=23 // pred_region
              loop: start=0, step=1, limit=1
              $region33: #{sdp_attention_forward.3} parent=31 // loop_pre_header
                _
              $region34: #{sdp_attention_forward.3} parent=31 // loop_header
                %s235 = sphi 0, %s239
                %p236 = scmp.ge.s32.totalorder %s235, 1
                %s240 = sphi %s226, %s226
                %s241 = sphi %s218, %s218
              $region35: #{sdp_attention_forward.3} parent=31 // loop_header_branch
                %238 = sbr.rel (%p236) target = $region39
              $region36: #{sdp_attention_forward.3} parent=31 // loop_body
                %v242 = vld [vmem:[%s240] sm:$0xf]
                %243 = vst [vmem:[%s241] sm:$0xf] %v242
                %v244 = vld [vmem:[%s240 + $0x18] sm:$0xf]
                %245 = vst [vmem:[%s241 + $0x4] sm:$0xf] %v244
                %v246 = vld [vmem:[%s240 + $0x30] sm:$0xf]
                %247 = vst [vmem:[%s241 + $0x8] sm:$0xf] %v246
                %v248 = vld [vmem:[%s240 + $0x48] sm:$0xf]
                %249 = vst [vmem:[%s241 + $0xc] sm:$0xf] %v248
                %v250 = vld [vmem:[%s240 + $0x60] sm:$0xf]
                %251 = vst [vmem:[%s241 + $0x10] sm:$0xf] %v250
                %v252 = vld [vmem:[%s240 + $0x78] sm:$0xf]
                %253 = vst [vmem:[%s241 + $0x14] sm:$0xf] %v252
                %v254 = vld [vmem:[%s240 + $0x90] sm:$0xf]
                %255 = vst [vmem:[%s241 + $0x18] sm:$0xf] %v254
                %v256 = vld [vmem:[%s240 + $0xa8] sm:$0xf]
                %257 = vst [vmem:[%s241 + $0x1c] sm:$0xf] %v256
                %v258 = vld [vmem:[%s240 + $0xc0] sm:$0xf]
                %259 = vst [vmem:[%s241 + $0x20] sm:$0xf] %v258
                %v260 = vld [vmem:[%s240 + $0xd8] sm:$0xf]
                %261 = vst [vmem:[%s241 + $0x24] sm:$0xf] %v260
                %v262 = vld [vmem:[%s240 + $0xf0] sm:$0xf]
                %263 = vst [vmem:[%s241 + $0x28] sm:$0xf] %v262
                %v264 = vld [vmem:[%s240 + $0x108] sm:$0xf]
                %265 = vst [vmem:[%s241 + $0x2c] sm:$0xf] %v264
                %v266 = vld [vmem:[%s240 + $0x120] sm:$0xf]
                %267 = vst [vmem:[%s241 + $0x30] sm:$0xf] %v266
                %v268 = vld [vmem:[%s240 + $0x138] sm:$0xf]
                %269 = vst [vmem:[%s241 + $0x34] sm:$0xf] %v268
                %v270 = vld [vmem:[%s240 + $0x150] sm:$0xf]
                %271 = vst [vmem:[%s241 + $0x38] sm:$0xf] %v270
                %v272 = vld [vmem:[%s240 + $0x168] sm:$0xf]
                %273 = vst [vmem:[%s241 + $0x3c] sm:$0xf] %v272
              $region37: #{sdp_attention_forward.3} parent=31 // loop_footer
                %s239 = sadd.s32 1, %s235
              $region38: #{sdp_attention_forward.3} parent=31 // loop_footer_branch
                %234 = sbr.rel target = $region34
              $region39: #{sdp_attention_forward.3} parent=31 // loop_exit
                _
            $region32: #{sdp_attention_forward.3} parent=23 // pred_fallthru
              _
          $region24: #{sdp_attention_forward.3} parent=19 // pred_fallthru
            _
          %325 = vnop
        $region20: #{sdp_attention_forward.3} parent=15 // pred_fallthru
          _
        // Predicated region
        $region58: #{sdp_attention_forward.3} parent=15 // pred_check
          %p326 = pneg %p99
        $region59: #{sdp_attention_forward.3} parent=15 // pred_check_branch
          %328 = sbr.rel (%p326) target = $region61
        $region60: #{sdp_attention_forward.3} parent=15 // pred_region
          %s329 = sand.u32 %s89, 1
          %s330 = sand.u32 %s89, 1
          %s331 = smul.addr %s330, 64
          %s332 = scalar_lea.vmem [#allocation7], %s331
          %s333 = smul.u32 %s22, 3
          %s334 = sadd.s32 %s333, 1
          %s335 = smul.u32 16, %s23
          %s336 = smul.addr %s335, 6
          %s337 = sadd.s32 %s334, %s336
          %s338 = smul.addr %s20, 96
          %s339 = sadd.s32 %s337, %s338
          %s340 = smul.addr %s339, 4
          %s341 = scalar_lea.vmem %s1, %s340
          // Predicated region
          $region62: #{sdp_attention_forward.3} parent=60 // pred_check
            _
          $region63: #{sdp_attention_forward.3} parent=60 // pred_check_branch
            %343 = sbr.rel (0) target = $region65
          $region64: #{sdp_attention_forward.3} parent=60 // pred_region
            // Predicated region
            $region66: #{sdp_attention_forward.3} parent=64 // pred_check
              _
            $region67: #{sdp_attention_forward.3} parent=64 // pred_check_branch
              %345 = sbr.rel target = $region69
            $region68: #{sdp_attention_forward.3} parent=64 // pred_region
              // Predicated region
              $region81: #{sdp_attention_forward.3} parent=68 // pred_check
                _
              $region82: #{sdp_attention_forward.3} parent=68 // pred_check_branch
                %390 = sbr.rel (0) target = $region84
              $region83: #{sdp_attention_forward.3} parent=68 // pred_region
                loop: start=0, step=1, limit=1
                $region85: #{sdp_attention_forward.3} parent=83 // loop_pre_header
                  _
                $region86: #{sdp_attention_forward.3} parent=83 // loop_header
                  %s392 = sphi 0, %s396
                  %p393 = scmp.ge.s32.totalorder %s392, 1
                  %s397 = sphi %s341, %s341
                  %s398 = sphi %s332, %s332
                $region87: #{sdp_attention_forward.3} parent=83 // loop_header_branch
                  %395 = sbr.rel (%p393) target = $region91
                $region88: #{sdp_attention_forward.3} parent=83 // loop_body
                  _
                $region89: #{sdp_attention_forward.3} parent=83 // loop_footer
                  %s396 = sadd.s32 1, %s392
                $region90: #{sdp_attention_forward.3} parent=83 // loop_footer_branch
                  %391 = sbr.rel target = $region86
                $region91: #{sdp_attention_forward.3} parent=83 // loop_exit
                  _
                loop: start=0, step=1, limit=1
                $region92: #{sdp_attention_forward.3} parent=83 // loop_pre_header
                  _
                $region93: #{sdp_attention_forward.3} parent=83 // loop_header
                  %s401 = sphi 0, %s405
                  %p402 = scmp.ge.s32.totalorder %s401, 1
                  %s406 = sphi %s341, %s341
                  %s407 = sphi %s332, %s332
                $region94: #{sdp_attention_forward.3} parent=83 // loop_header_branch
                  %404 = sbr.rel (%p402) target = $region98
                $region95: #{sdp_attention_forward.3} parent=83 // loop_body
                  %v408 = vld [vmem:[%s406] sm:$0xf]
                  %409 = vst [vmem:[%s407] sm:$0xf] %v408
                  %v410 = vld [vmem:[%s406 + $0x18] sm:$0xf]
                  %411 = vst [vmem:[%s407 + $0x4] sm:$0xf] %v410
                  %v412 = vld [vmem:[%s406 + $0x30] sm:$0xf]
                  %413 = vst [vmem:[%s407 + $0x8] sm:$0xf] %v412
                  %v414 = vld [vmem:[%s406 + $0x48] sm:$0xf]
                  %415 = vst [vmem:[%s407 + $0xc] sm:$0xf] %v414
                  %v416 = vld [vmem:[%s406 + $0x60] sm:$0xf]
                  %417 = vst [vmem:[%s407 + $0x10] sm:$0xf] %v416
                  %v418 = vld [vmem:[%s406 + $0x78] sm:$0xf]
                  %419 = vst [vmem:[%s407 + $0x14] sm:$0xf] %v418
                  %v420 = vld [vmem:[%s406 + $0x90] sm:$0xf]
                  %421 = vst [vmem:[%s407 + $0x18] sm:$0xf] %v420
                  %v422 = vld [vmem:[%s406 + $0xa8] sm:$0xf]
                  %423 = vst [vmem:[%s407 + $0x1c] sm:$0xf] %v422
                  %v424 = vld [vmem:[%s406 + $0xc0] sm:$0xf]
                  %425 = vst [vmem:[%s407 + $0x20] sm:$0xf] %v424
                  %v426 = vld [vmem:[%s406 + $0xd8] sm:$0xf]
                  %427 = vst [vmem:[%s407 + $0x24] sm:$0xf] %v426
                  %v428 = vld [vmem:[%s406 + $0xf0] sm:$0xf]
                  %429 = vst [vmem:[%s407 + $0x28] sm:$0xf] %v428
                  %v430 = vld [vmem:[%s406 + $0x108] sm:$0xf]
                  %431 = vst [vmem:[%s407 + $0x2c] sm:$0xf] %v430
                  %v432 = vld [vmem:[%s406 + $0x120] sm:$0xf]
                  %433 = vst [vmem:[%s407 + $0x30] sm:$0xf] %v432
                  %v434 = vld [vmem:[%s406 + $0x138] sm:$0xf]
                  %435 = vst [vmem:[%s407 + $0x34] sm:$0xf] %v434
                  %v436 = vld [vmem:[%s406 + $0x150] sm:$0xf]
                  %437 = vst [vmem:[%s407 + $0x38] sm:$0xf] %v436
                  %v438 = vld [vmem:[%s406 + $0x168] sm:$0xf]
                  %439 = vst [vmem:[%s407 + $0x3c] sm:$0xf] %v438
                $region96: #{sdp_attention_forward.3} parent=83 // loop_footer
                  %s405 = sadd.s32 1, %s401
                $region97: #{sdp_attention_forward.3} parent=83 // loop_footer_branch
                  %400 = sbr.rel target = $region93
                $region98: #{sdp_attention_forward.3} parent=83 // loop_exit
                  _
              $region84: #{sdp_attention_forward.3} parent=68 // pred_fallthru
                _
            $region69: #{sdp_attention_forward.3} parent=64 // pred_fallthru
              _
            // Predicated region
            $region70: #{sdp_attention_forward.3} parent=64 // pred_check
              _
            $region71: #{sdp_attention_forward.3} parent=64 // pred_check_branch
              %347 = sbr.rel (0) target = $region73
            $region72: #{sdp_attention_forward.3} parent=64 // pred_region
              loop: start=0, step=1, limit=1
              $region74: #{sdp_attention_forward.3} parent=72 // loop_pre_header
                _
              $region75: #{sdp_attention_forward.3} parent=72 // loop_header
                %s350 = sphi 0, %s354
                %p351 = scmp.ge.s32.totalorder %s350, 1
                %s355 = sphi %s341, %s341
                %s356 = sphi %s332, %s332
              $region76: #{sdp_attention_forward.3} parent=72 // loop_header_branch
                %353 = sbr.rel (%p351) target = $region80
              $region77: #{sdp_attention_forward.3} parent=72 // loop_body
                %v357 = vld [vmem:[%s355] sm:$0xf]
                %358 = vst [vmem:[%s356] sm:$0xf] %v357
                %v359 = vld [vmem:[%s355 + $0x18] sm:$0xf]
                %360 = vst [vmem:[%s356 + $0x4] sm:$0xf] %v359
                %v361 = vld [vmem:[%s355 + $0x30] sm:$0xf]
                %362 = vst [vmem:[%s356 + $0x8] sm:$0xf] %v361
                %v363 = vld [vmem:[%s355 + $0x48] sm:$0xf]
                %364 = vst [vmem:[%s356 + $0xc] sm:$0xf] %v363
                %v365 = vld [vmem:[%s355 + $0x60] sm:$0xf]
                %366 = vst [vmem:[%s356 + $0x10] sm:$0xf] %v365
                %v367 = vld [vmem:[%s355 + $0x78] sm:$0xf]
                %368 = vst [vmem:[%s356 + $0x14] sm:$0xf] %v367
                %v369 = vld [vmem:[%s355 + $0x90] sm:$0xf]
                %370 = vst [vmem:[%s356 + $0x18] sm:$0xf] %v369
                %v371 = vld [vmem:[%s355 + $0xa8] sm:$0xf]
                %372 = vst [vmem:[%s356 + $0x1c] sm:$0xf] %v371
                %v373 = vld [vmem:[%s355 + $0xc0] sm:$0xf]
                %374 = vst [vmem:[%s356 + $0x20] sm:$0xf] %v373
                %v375 = vld [vmem:[%s355 + $0xd8] sm:$0xf]
                %376 = vst [vmem:[%s356 + $0x24] sm:$0xf] %v375
                %v377 = vld [vmem:[%s355 + $0xf0] sm:$0xf]
                %378 = vst [vmem:[%s356 + $0x28] sm:$0xf] %v377
                %v379 = vld [vmem:[%s355 + $0x108] sm:$0xf]
                %380 = vst [vmem:[%s356 + $0x2c] sm:$0xf] %v379
                %v381 = vld [vmem:[%s355 + $0x120] sm:$0xf]
                %382 = vst [vmem:[%s356 + $0x30] sm:$0xf] %v381
                %v383 = vld [vmem:[%s355 + $0x138] sm:$0xf]
                %384 = vst [vmem:[%s356 + $0x34] sm:$0xf] %v383
                %v385 = vld [vmem:[%s355 + $0x150] sm:$0xf]
                %386 = vst [vmem:[%s356 + $0x38] sm:$0xf] %v385
                %v387 = vld [vmem:[%s355 + $0x168] sm:$0xf]
                %388 = vst [vmem:[%s356 + $0x3c] sm:$0xf] %v387
              $region78: #{sdp_attention_forward.3} parent=72 // loop_footer
                %s354 = sadd.s32 1, %s350
              $region79: #{sdp_attention_forward.3} parent=72 // loop_footer_branch
                %349 = sbr.rel target = $region75
              $region80: #{sdp_attention_forward.3} parent=72 // loop_exit
                _
            $region73: #{sdp_attention_forward.3} parent=64 // pred_fallthru
              _
          $region65: #{sdp_attention_forward.3} parent=60 // pred_fallthru
            _
          %440 = vnop
        $region61: #{sdp_attention_forward.3} parent=15 // pred_fallthru
          _
        // Predicated region
        $region99: #{sdp_attention_forward.3} parent=15 // pred_check
          %p441 = pneg %p133
        $region100: #{sdp_attention_forward.3} parent=15 // pred_check_branch
          %443 = sbr.rel (%p441) target = $region102
        $region101: #{sdp_attention_forward.3} parent=15 // pred_region
          %s444 = sand.u32 %s123, 1
          %s445 = sand.u32 %s123, 1
          %s446 = smul.addr %s445, 64
          %s447 = scalar_lea.vmem [#allocation8], %s446
          %s448 = smul.u32 %s22, 3
          %s449 = sadd.s32 %s448, 2
          %s450 = smul.u32 16, %s23
          %s451 = smul.addr %s450, 6
          %s452 = sadd.s32 %s449, %s451
          %s453 = smul.addr %s20, 96
          %s454 = sadd.s32 %s452, %s453
          %s455 = smul.addr %s454, 4
          %s456 = scalar_lea.vmem %s2, %s455
          // Predicated region
          $region103: #{sdp_attention_forward.3} parent=101 // pred_check
            _
          $region104: #{sdp_attention_forward.3} parent=101 // pred_check_branch
            %458 = sbr.rel (0) target = $region106
          $region105: #{sdp_attention_forward.3} parent=101 // pred_region
            // Predicated region
            $region107: #{sdp_attention_forward.3} parent=105 // pred_check
              _
            $region108: #{sdp_attention_forward.3} parent=105 // pred_check_branch
              %460 = sbr.rel target = $region110
            $region109: #{sdp_attention_forward.3} parent=105 // pred_region
              // Predicated region
              $region122: #{sdp_attention_forward.3} parent=109 // pred_check
                _
              $region123: #{sdp_attention_forward.3} parent=109 // pred_check_branch
                %505 = sbr.rel (0) target = $region125
              $region124: #{sdp_attention_forward.3} parent=109 // pred_region
                loop: start=0, step=1, limit=1
                $region126: #{sdp_attention_forward.3} parent=124 // loop_pre_header
                  _
                $region127: #{sdp_attention_forward.3} parent=124 // loop_header
                  %s507 = sphi 0, %s511
                  %p508 = scmp.ge.s32.totalorder %s507, 1
                  %s512 = sphi %s456, %s456
                  %s513 = sphi %s447, %s447
                $region128: #{sdp_attention_forward.3} parent=124 // loop_header_branch
                  %510 = sbr.rel (%p508) target = $region132
                $region129: #{sdp_attention_forward.3} parent=124 // loop_body
                  _
                $region130: #{sdp_attention_forward.3} parent=124 // loop_footer
                  %s511 = sadd.s32 1, %s507
                $region131: #{sdp_attention_forward.3} parent=124 // loop_footer_branch
                  %506 = sbr.rel target = $region127
                $region132: #{sdp_attention_forward.3} parent=124 // loop_exit
                  _
                loop: start=0, step=1, limit=1
                $region133: #{sdp_attention_forward.3} parent=124 // loop_pre_header
                  _
                $region134: #{sdp_attention_forward.3} parent=124 // loop_header
                  %s516 = sphi 0, %s520
                  %p517 = scmp.ge.s32.totalorder %s516, 1
                  %s521 = sphi %s456, %s456
                  %s522 = sphi %s447, %s447
                $region135: #{sdp_attention_forward.3} parent=124 // loop_header_branch
                  %519 = sbr.rel (%p517) target = $region139
                $region136: #{sdp_attention_forward.3} parent=124 // loop_body
                  %v523 = vld [vmem:[%s521] sm:$0xf]
                  %524 = vst [vmem:[%s522] sm:$0xf] %v523
                  %v525 = vld [vmem:[%s521 + $0x18] sm:$0xf]
                  %526 = vst [vmem:[%s522 + $0x4] sm:$0xf] %v525
                  %v527 = vld [vmem:[%s521 + $0x30] sm:$0xf]
                  %528 = vst [vmem:[%s522 + $0x8] sm:$0xf] %v527
                  %v529 = vld [vmem:[%s521 + $0x48] sm:$0xf]
                  %530 = vst [vmem:[%s522 + $0xc] sm:$0xf] %v529
                  %v531 = vld [vmem:[%s521 + $0x60] sm:$0xf]
                  %532 = vst [vmem:[%s522 + $0x10] sm:$0xf] %v531
                  %v533 = vld [vmem:[%s521 + $0x78] sm:$0xf]
                  %534 = vst [vmem:[%s522 + $0x14] sm:$0xf] %v533
                  %v535 = vld [vmem:[%s521 + $0x90] sm:$0xf]
                  %536 = vst [vmem:[%s522 + $0x18] sm:$0xf] %v535
                  %v537 = vld [vmem:[%s521 + $0xa8] sm:$0xf]
                  %538 = vst [vmem:[%s522 + $0x1c] sm:$0xf] %v537
                  %v539 = vld [vmem:[%s521 + $0xc0] sm:$0xf]
                  %540 = vst [vmem:[%s522 + $0x20] sm:$0xf] %v539
                  %v541 = vld [vmem:[%s521 + $0xd8] sm:$0xf]
                  %542 = vst [vmem:[%s522 + $0x24] sm:$0xf] %v541
                  %v543 = vld [vmem:[%s521 + $0xf0] sm:$0xf]
                  %544 = vst [vmem:[%s522 + $0x28] sm:$0xf] %v543
                  %v545 = vld [vmem:[%s521 + $0x108] sm:$0xf]
                  %546 = vst [vmem:[%s522 + $0x2c] sm:$0xf] %v545
                  %v547 = vld [vmem:[%s521 + $0x120] sm:$0xf]
                  %548 = vst [vmem:[%s522 + $0x30] sm:$0xf] %v547
                  %v549 = vld [vmem:[%s521 + $0x138] sm:$0xf]
                  %550 = vst [vmem:[%s522 + $0x34] sm:$0xf] %v549
                  %v551 = vld [vmem:[%s521 + $0x150] sm:$0xf]
                  %552 = vst [vmem:[%s522 + $0x38] sm:$0xf] %v551
                  %v553 = vld [vmem:[%s521 + $0x168] sm:$0xf]
                  %554 = vst [vmem:[%s522 + $0x3c] sm:$0xf] %v553
                $region137: #{sdp_attention_forward.3} parent=124 // loop_footer
                  %s520 = sadd.s32 1, %s516
                $region138: #{sdp_attention_forward.3} parent=124 // loop_footer_branch
                  %515 = sbr.rel target = $region134
                $region139: #{sdp_attention_forward.3} parent=124 // loop_exit
                  _
              $region125: #{sdp_attention_forward.3} parent=109 // pred_fallthru
                _
            $region110: #{sdp_attention_forward.3} parent=105 // pred_fallthru
              _
            // Predicated region
            $region111: #{sdp_attention_forward.3} parent=105 // pred_check
              _
            $region112: #{sdp_attention_forward.3} parent=105 // pred_check_branch
              %462 = sbr.rel (0) target = $region114
            $region113: #{sdp_attention_forward.3} parent=105 // pred_region
              loop: start=0, step=1, limit=1
              $region115: #{sdp_attention_forward.3} parent=113 // loop_pre_header
                _
              $region116: #{sdp_attention_forward.3} parent=113 // loop_header
                %s465 = sphi 0, %s469
                %p466 = scmp.ge.s32.totalorder %s465, 1
                %s470 = sphi %s456, %s456
                %s471 = sphi %s447, %s447
              $region117: #{sdp_attention_forward.3} parent=113 // loop_header_branch
                %468 = sbr.rel (%p466) target = $region121
              $region118: #{sdp_attention_forward.3} parent=113 // loop_body
                %v472 = vld [vmem:[%s470] sm:$0xf]
                %473 = vst [vmem:[%s471] sm:$0xf] %v472
                %v474 = vld [vmem:[%s470 + $0x18] sm:$0xf]
                %475 = vst [vmem:[%s471 + $0x4] sm:$0xf] %v474
                %v476 = vld [vmem:[%s470 + $0x30] sm:$0xf]
                %477 = vst [vmem:[%s471 + $0x8] sm:$0xf] %v476
                %v478 = vld [vmem:[%s470 + $0x48] sm:$0xf]
                %479 = vst [vmem:[%s471 + $0xc] sm:$0xf] %v478
                %v480 = vld [vmem:[%s470 + $0x60] sm:$0xf]
                %481 = vst [vmem:[%s471 + $0x10] sm:$0xf] %v480
                %v482 = vld [vmem:[%s470 + $0x78] sm:$0xf]
                %483 = vst [vmem:[%s471 + $0x14] sm:$0xf] %v482
                %v484 = vld [vmem:[%s470 + $0x90] sm:$0xf]
                %485 = vst [vmem:[%s471 + $0x18] sm:$0xf] %v484
                %v486 = vld [vmem:[%s470 + $0xa8] sm:$0xf]
                %487 = vst [vmem:[%s471 + $0x1c] sm:$0xf] %v486
                %v488 = vld [vmem:[%s470 + $0xc0] sm:$0xf]
                %489 = vst [vmem:[%s471 + $0x20] sm:$0xf] %v488
                %v490 = vld [vmem:[%s470 + $0xd8] sm:$0xf]
                %491 = vst [vmem:[%s471 + $0x24] sm:$0xf] %v490
                %v492 = vld [vmem:[%s470 + $0xf0] sm:$0xf]
                %493 = vst [vmem:[%s471 + $0x28] sm:$0xf] %v492
                %v494 = vld [vmem:[%s470 + $0x108] sm:$0xf]
                %495 = vst [vmem:[%s471 + $0x2c] sm:$0xf] %v494
                %v496 = vld [vmem:[%s470 + $0x120] sm:$0xf]
                %497 = vst [vmem:[%s471 + $0x30] sm:$0xf] %v496
                %v498 = vld [vmem:[%s470 + $0x138] sm:$0xf]
                %499 = vst [vmem:[%s471 + $0x34] sm:$0xf] %v498
                %v500 = vld [vmem:[%s470 + $0x150] sm:$0xf]
                %501 = vst [vmem:[%s471 + $0x38] sm:$0xf] %v500
                %v502 = vld [vmem:[%s470 + $0x168] sm:$0xf]
                %503 = vst [vmem:[%s471 + $0x3c] sm:$0xf] %v502
              $region119: #{sdp_attention_forward.3} parent=113 // loop_footer
                %s469 = sadd.s32 1, %s465
              $region120: #{sdp_attention_forward.3} parent=113 // loop_footer_branch
                %464 = sbr.rel target = $region116
              $region121: #{sdp_attention_forward.3} parent=113 // loop_exit
                _
            $region114: #{sdp_attention_forward.3} parent=105 // pred_fallthru
              _
          $region106: #{sdp_attention_forward.3} parent=101 // pred_fallthru
            _
          %555 = vnop
        $region102: #{sdp_attention_forward.3} parent=15 // pred_fallthru
          _
        // Predicated region
        $region140: #{sdp_attention_forward.3} parent=15 // pred_check
          %p556 = pneg %p159
        $region141: #{sdp_attention_forward.3} parent=15 // pred_check_branch
          %558 = sbr.rel (%p556) target = $region143
        $region142: #{sdp_attention_forward.3} parent=15 // pred_region
          %s559 = smul.u32 16, %s22
          %p560 = scmp.lt.s32.totalorder %s559, 31
          %s561 = scalar_select %p560, %s559, 31
          %s562 = smul.addr %s561, 2
          %s563 = smul.addr %s562, 4
          %s564 = scalar_lea.vmem %s3, %s563
          %s565 = smul.u32 16, %s22
        $region143: #{sdp_attention_forward.3} parent=15 // pred_fallthru
          _
      $region16: #{sdp_attention_forward.3} parent=5 // pred_fallthru
        _
      %p566 = scmp.le.s32.totalorder 1, %s13
      %p567 = scmp.lt.s32.totalorder %s13, 5
      %p568 = pnand %p566, %p567
      %p569 = pneg %p568
      // Predicated region
      $region144: #{sdp_attention_forward.3} parent=5 // pred_check
        _
      $region145: #{sdp_attention_forward.3} parent=5 // pred_check_branch
        %571 = sbr.rel (%p568) target = $region147
      $region146: #{sdp_attention_forward.3} parent=5 // pred_region
        %s572 = ssub.s32 %s13, 1
        %s573 = sand.u32 %s58, 1
        %s574 = sand.u32 %s58, 1
        %s575 = smul.addr %s574, 64
        %s576 = scalar_lea.vmem [#allocation6], %s575
        // Predicated region
        $region148: #{sdp_attention_forward.3} parent=146 // pred_check
          %p577 = pneg %p71
        $region149: #{sdp_attention_forward.3} parent=146 // pred_check_branch
          %579 = sbr.rel (%p577) target = $region151
        $region150: #{sdp_attention_forward.3} parent=146 // pred_region
          _
        $region151: #{sdp_attention_forward.3} parent=146 // pred_fallthru
          _
        %s580 = sand.u32 %s92, 1
        %s581 = sand.u32 %s92, 1
        %s582 = smul.addr %s581, 64
        %s583 = scalar_lea.vmem [#allocation7], %s582
        // Predicated region
        $region152: #{sdp_attention_forward.3} parent=146 // pred_check
          %p584 = pneg %p105
        $region153: #{sdp_attention_forward.3} parent=146 // pred_check_branch
          %586 = sbr.rel (%p584) target = $region155
        $region154: #{sdp_attention_forward.3} parent=146 // pred_region
          _
        $region155: #{sdp_attention_forward.3} parent=146 // pred_fallthru
          _
        %s587 = sand.u32 %s126, 1
        %s588 = sand.u32 %s126, 1
        %s589 = smul.addr %s588, 64
        %s590 = scalar_lea.vmem [#allocation8], %s589
        // Predicated region
        $region156: #{sdp_attention_forward.3} parent=146 // pred_check
          %p591 = pneg %p139
        $region157: #{sdp_attention_forward.3} parent=146 // pred_check_branch
          %593 = sbr.rel (%p591) target = $region159
        $region158: #{sdp_attention_forward.3} parent=146 // pred_region
          _
        $region159: #{sdp_attention_forward.3} parent=146 // pred_fallthru
          _
        %s594 = sand.u32 %s58, 1
        %s595 = sand.u32 %s58, 1
        %s596 = smul.addr %s595, 64
        %s597 = scalar_lea.vmem [#allocation6], %s596
        %p598 = pneg %p71
        %p599 = pneg %p68
        %s600 = sand.u32 %s92, 1
        %s601 = sand.u32 %s92, 1
        %s602 = smul.addr %s601, 64
        %s603 = scalar_lea.vmem [#allocation7], %s602
        %p604 = pneg %p105
        %p605 = pneg %p102
        %s606 = sand.u32 %s126, 1
        %s607 = sand.u32 %s126, 1
        %s608 = smul.addr %s607, 64
        %s609 = scalar_lea.vmem [#allocation8], %s608
        %p610 = pneg %p139
        %p611 = pneg %p136
        %s612 = smul.u32 16, %s26
        %p613 = scmp.lt.s32.totalorder %s612, 31
        %s614 = scalar_select %p613, %s612, 31
        %s615 = smul.addr %s614, 2
        %s616 = smul.addr %s615, 4
        %s617 = scalar_lea.vmem %s3, %s616
        %p618 = pneg %p165
        %p619 = pneg %p162
        %p620 = pneg %p193
        %p621 = pneg %p190
        %s622 = sand.u32 %s180, 1
        %s623 = scalar_lea.sflag [#allocation10], %s622
        %s624 = sand.u32 %s180, 1
        %s625 = smul.addr %s624, 256
        %s626 = scalar_lea.vmem [#allocation9], %s625
        %s627 = smul.u32 %s26, 3
        %s628 = smul.u32 16, %s25
        %s629 = smul.u32 %s26, 3
        %s630 = sadd.s32 %s629, 1
        %s631 = smul.u32 16, %s27
        %s632 = smul.u32 %s26, 3
        %s633 = sadd.s32 %s632, 2
        %s634 = smul.u32 16, %s27
        %s635 = smul.u32 16, %s26
        %p636 = scmp.lt.s32.totalorder %s635, 31
        %s637 = scalar_select %p636, %s635, 31
        %s638 = smul.addr %s637, 2
        %s639 = smul.addr %s638, 4
        %s640 = scalar_lea.vmem %s3, %s639
        %s641 = smul.u32 16, %s26
        %s642 = smul.u32 16, %s25
        %p644 = scmp.eq.s32.totalorder %s26, 0
        %p645 = scmp.eq.s32.totalorder %s27, 0
        %p646 = pnand %p644, %p645
        %p647 = pneg %p646
        // Predicated region
        $region160: #{sdp_attention_forward.3} parent=146 // pred_check
          _
        $region161: #{sdp_attention_forward.3} parent=146 // pred_check_branch
          %649 = sbr.rel (%p646) target = $region163
        $region162: #{sdp_attention_forward.3} parent=146 // pred_region
          %650 = vst [vmem:[#allocation5] sm:$0xff] 0.0
          %651 = vst [vmem:[#allocation5 + $0x8] sm:$0xff] 0.0
          %652 = vst [vmem:[#allocation5 + $0x10] sm:$0xff] 0.0
          %653 = vst [vmem:[#allocation5 + $0x18] sm:$0xff] 0.0
          %654 = vst [vmem:[#allocation5 + $0x20] sm:$0xff] 0.0
          %655 = vst [vmem:[#allocation5 + $0x28] sm:$0xff] 0.0
          %656 = vst [vmem:[#allocation5 + $0x30] sm:$0xff] 0.0
          %657 = vst [vmem:[#allocation5 + $0x38] sm:$0xff] 0.0
          %658 = vst [vmem:[#allocation5 + $0x40] sm:$0xff] 0.0
          %659 = vst [vmem:[#allocation5 + $0x48] sm:$0xff] 0.0
          %660 = vst [vmem:[#allocation5 + $0x50] sm:$0xff] 0.0
          %661 = vst [vmem:[#allocation5 + $0x58] sm:$0xff] 0.0
          %662 = vst [vmem:[#allocation5 + $0x60] sm:$0xff] 0.0
          %663 = vst [vmem:[#allocation5 + $0x68] sm:$0xff] 0.0
          %664 = vst [vmem:[#allocation5 + $0x70] sm:$0xff] 0.0
          %665 = vst [vmem:[#allocation5 + $0x78] sm:$0xff] 0.0
          %666 = vst [vmem:[#allocation5 + $0x80] sm:$0xff] 0.0
          %667 = vst [vmem:[#allocation5 + $0x88] sm:$0xff] 0.0
          %668 = vst [vmem:[#allocation5 + $0x90] sm:$0xff] 0.0
          %669 = vst [vmem:[#allocation5 + $0x98] sm:$0xff] 0.0
          %670 = vst [vmem:[#allocation5 + $0xa0] sm:$0xff] 0.0
          %671 = vst [vmem:[#allocation5 + $0xa8] sm:$0xff] 0.0
          %672 = vst [vmem:[#allocation5 + $0xb0] sm:$0xff] 0.0
          %673 = vst [vmem:[#allocation5 + $0xb8] sm:$0xff] 0.0
          %674 = vst [vmem:[#allocation5 + $0xc0] sm:$0xff] 0.0
          %675 = vst [vmem:[#allocation5 + $0xc8] sm:$0xff] 0.0
          %676 = vst [vmem:[#allocation5 + $0xd0] sm:$0xff] 0.0
          %677 = vst [vmem:[#allocation5 + $0xd8] sm:$0xff] 0.0
          %678 = vst [vmem:[#allocation5 + $0xe0] sm:$0xff] 0.0
          %679 = vst [vmem:[#allocation5 + $0xe8] sm:$0xff] 0.0
          %680 = vst [vmem:[#allocation5 + $0xf0] sm:$0xff] 0.0
          %681 = vst [vmem:[#allocation5 + $0xf8] sm:$0xff] 0.0
        $region163: #{sdp_attention_forward.3} parent=146 // pred_fallthru
          _
        // Predicated region
        $region164: #{sdp_attention_forward.3} parent=146 // pred_check
          %p682 = pneg %p645
        $region165: #{sdp_attention_forward.3} parent=146 // pred_check_branch
          %684 = sbr.rel (%p682) target = $region167
        $region166: #{sdp_attention_forward.3} parent=146 // pred_region
          %vm685 = vcmask 7168
          %686 = vst.msk [vmem:[#allocation2] sm:$0xff] %vm685, -inf
          %687 = vst.msk [vmem:[#allocation2 + $0x8] sm:$0xff] %vm685, -inf
          %688 = vst.msk [vmem:[#allocation2 + $0x10] sm:$0xff] %vm685, -inf
          %689 = vst.msk [vmem:[#allocation2 + $0x18] sm:$0xff] %vm685, -inf
          %690 = vst.msk [vmem:[#allocation2 + $0x20] sm:$0xff] %vm685, -inf
          %691 = vst.msk [vmem:[#allocation2 + $0x28] sm:$0xff] %vm685, -inf
          %692 = vst.msk [vmem:[#allocation2 + $0x30] sm:$0xff] %vm685, -inf
          %693 = vst.msk [vmem:[#allocation2 + $0x38] sm:$0xff] %vm685, -inf
          %694 = vst.msk [vmem:[#allocation2 + $0x40] sm:$0xff] %vm685, -inf
          %695 = vst.msk [vmem:[#allocation2 + $0x48] sm:$0xff] %vm685, -inf
          %696 = vst.msk [vmem:[#allocation2 + $0x50] sm:$0xff] %vm685, -inf
          %697 = vst.msk [vmem:[#allocation2 + $0x58] sm:$0xff] %vm685, -inf
          %698 = vst.msk [vmem:[#allocation2 + $0x60] sm:$0xff] %vm685, -inf
          %699 = vst.msk [vmem:[#allocation2 + $0x68] sm:$0xff] %vm685, -inf
          %700 = vst.msk [vmem:[#allocation2 + $0x70] sm:$0xff] %vm685, -inf
          %701 = vst.msk [vmem:[#allocation2 + $0x78] sm:$0xff] %vm685, -inf
          %702 = vst.msk [vmem:[#allocation3] sm:$0xff] %vm685, 0.0
          %703 = vst.msk [vmem:[#allocation3 + $0x8] sm:$0xff] %vm685, 0.0
          %704 = vst.msk [vmem:[#allocation3 + $0x10] sm:$0xff] %vm685, 0.0
          %705 = vst.msk [vmem:[#allocation3 + $0x18] sm:$0xff] %vm685, 0.0
          %706 = vst.msk [vmem:[#allocation3 + $0x20] sm:$0xff] %vm685, 0.0
          %707 = vst.msk [vmem:[#allocation3 + $0x28] sm:$0xff] %vm685, 0.0
          %708 = vst.msk [vmem:[#allocation3 + $0x30] sm:$0xff] %vm685, 0.0
          %709 = vst.msk [vmem:[#allocation3 + $0x38] sm:$0xff] %vm685, 0.0
          %710 = vst.msk [vmem:[#allocation3 + $0x40] sm:$0xff] %vm685, 0.0
          %711 = vst.msk [vmem:[#allocation3 + $0x48] sm:$0xff] %vm685, 0.0
          %712 = vst.msk [vmem:[#allocation3 + $0x50] sm:$0xff] %vm685, 0.0
          %713 = vst.msk [vmem:[#allocation3 + $0x58] sm:$0xff] %vm685, 0.0
          %714 = vst.msk [vmem:[#allocation3 + $0x60] sm:$0xff] %vm685, 0.0
          %715 = vst.msk [vmem:[#allocation3 + $0x68] sm:$0xff] %vm685, 0.0
          %716 = vst.msk [vmem:[#allocation3 + $0x70] sm:$0xff] %vm685, 0.0
          %717 = vst.msk [vmem:[#allocation3 + $0x78] sm:$0xff] %vm685, 0.0
          %718 = vst [vmem:[#allocation4] sm:$0xff] 0.0
          %719 = vst [vmem:[#allocation4 + $0x8] sm:$0xff] 0.0
          %720 = vst [vmem:[#allocation4 + $0x10] sm:$0xff] 0.0
          %721 = vst [vmem:[#allocation4 + $0x18] sm:$0xff] 0.0
          %722 = vst [vmem:[#allocation4 + $0x20] sm:$0xff] 0.0
          %723 = vst [vmem:[#allocation4 + $0x28] sm:$0xff] 0.0
          %724 = vst [vmem:[#allocation4 + $0x30] sm:$0xff] 0.0
          %725 = vst [vmem:[#allocation4 + $0x38] sm:$0xff] 0.0
          %726 = vst [vmem:[#allocation4 + $0x40] sm:$0xff] 0.0
          %727 = vst [vmem:[#allocation4 + $0x48] sm:$0xff] 0.0
          %728 = vst [vmem:[#allocation4 + $0x50] sm:$0xff] 0.0
          %729 = vst [vmem:[#allocation4 + $0x58] sm:$0xff] 0.0
          %730 = vst [vmem:[#allocation4 + $0x60] sm:$0xff] 0.0
          %731 = vst [vmem:[#allocation4 + $0x68] sm:$0xff] 0.0
          %732 = vst [vmem:[#allocation4 + $0x70] sm:$0xff] 0.0
          %733 = vst [vmem:[#allocation4 + $0x78] sm:$0xff] 0.0
        $region167: #{sdp_attention_forward.3} parent=146 // pred_fallthru
          _
        %v734 = vld [vmem:[%s576] sm:$0xf]
        %v735 = vld [vmem:[%s576 + $0x4] sm:$0xf]
        %v736 = vld [vmem:[%s576 + $0x8] sm:$0xf]
        %v737 = vld [vmem:[%s576 + $0xc] sm:$0xf]
        %v738 = vld [vmem:[%s576 + $0x10] sm:$0xf]
        %v739 = vld [vmem:[%s576 + $0x14] sm:$0xf]
        %v740 = vld [vmem:[%s576 + $0x18] sm:$0xf]
        %v741 = vld [vmem:[%s576 + $0x1c] sm:$0xf]
        %v742 = vld [vmem:[%s576 + $0x20] sm:$0xf]
        %v743 = vld [vmem:[%s576 + $0x24] sm:$0xf]
        %v744 = vld [vmem:[%s576 + $0x28] sm:$0xf]
        %v745 = vld [vmem:[%s576 + $0x2c] sm:$0xf]
        %v746 = vld [vmem:[%s576 + $0x30] sm:$0xf]
        %v747 = vld [vmem:[%s576 + $0x34] sm:$0xf]
        %v748 = vld [vmem:[%s576 + $0x38] sm:$0xf]
        %v749 = vld [vmem:[%s576 + $0x3c] sm:$0xf]
        %v750 = vld [vmem:[%s583] sm:$0xf]
        %v751 = vld [vmem:[%s583 + $0x4] sm:$0xf]
        %v752 = vld [vmem:[%s583 + $0x8] sm:$0xf]
        %v753 = vld [vmem:[%s583 + $0xc] sm:$0xf]
        %v754 = vld [vmem:[%s583 + $0x10] sm:$0xf]
        %v755 = vld [vmem:[%s583 + $0x14] sm:$0xf]
        %v756 = vld [vmem:[%s583 + $0x18] sm:$0xf]
        %v757 = vld [vmem:[%s583 + $0x1c] sm:$0xf]
        %v758 = vld [vmem:[%s583 + $0x20] sm:$0xf]
        %v759 = vld [vmem:[%s583 + $0x24] sm:$0xf]
        %v760 = vld [vmem:[%s583 + $0x28] sm:$0xf]
        %v761 = vld [vmem:[%s583 + $0x2c] sm:$0xf]
        %v762 = vld [vmem:[%s583 + $0x30] sm:$0xf]
        %v763 = vld [vmem:[%s583 + $0x34] sm:$0xf]
        %v764 = vld [vmem:[%s583 + $0x38] sm:$0xf]
        %v765 = vld [vmem:[%s583 + $0x3c] sm:$0xf]
        %v766 = vld [vmem:[%s590] sm:$0xf]
        %v767 = vld [vmem:[%s590 + $0x4] sm:$0xf]
        %v768 = vld [vmem:[%s590 + $0x8] sm:$0xf]
        %v769 = vld [vmem:[%s590 + $0xc] sm:$0xf]
        %v770 = vld [vmem:[%s590 + $0x10] sm:$0xf]
        %v771 = vld [vmem:[%s590 + $0x14] sm:$0xf]
        %v772 = vld [vmem:[%s590 + $0x18] sm:$0xf]
        %v773 = vld [vmem:[%s590 + $0x1c] sm:$0xf]
        %v774 = vld [vmem:[%s590 + $0x20] sm:$0xf]
        %v775 = vld [vmem:[%s590 + $0x24] sm:$0xf]
        %v776 = vld [vmem:[%s590 + $0x28] sm:$0xf]
        %v777 = vld [vmem:[%s590 + $0x2c] sm:$0xf]
        %v778 = vld [vmem:[%s590 + $0x30] sm:$0xf]
        %v779 = vld [vmem:[%s590 + $0x34] sm:$0xf]
        %v780 = vld [vmem:[%s590 + $0x38] sm:$0xf]
        %v781 = vld [vmem:[%s590 + $0x3c] sm:$0xf]
        %v798 = vunpack.c.l.b16 %v734
        %v799 = vunpack.c.l.b16 %v735
        %v800 = vunpack.c.l.b16 %v736
        %v801 = vunpack.c.l.b16 %v737
        %v802 = vunpack.c.l.b16 %v738
        %v803 = vunpack.c.l.b16 %v739
        %v804 = vunpack.c.l.b16 %v740
        %v805 = vunpack.c.l.b16 %v741
        %v806 = vunpack.c.l.b16 %v742
        %v807 = vunpack.c.l.b16 %v743
        %v808 = vunpack.c.l.b16 %v744
        %v809 = vunpack.c.l.b16 %v745
        %v810 = vunpack.c.l.b16 %v746
        %v811 = vunpack.c.l.b16 %v747
        %v812 = vunpack.c.l.b16 %v748
        %v813 = vunpack.c.l.b16 %v749
        %v814 = vpack.c.b16 %v799, %v798
        %v815 = vpack.c.b16 %v801, %v800
        %v816 = vpack.c.b16 %v803, %v802
        %v817 = vpack.c.b16 %v805, %v804
        %v818 = vpack.c.b16 %v807, %v806
        %v819 = vpack.c.b16 %v809, %v808
        %v820 = vpack.c.b16 %v811, %v810
        %v821 = vpack.c.b16 %v813, %v812
        %v846 = vunpack.c.l.b16 %v750
        %v847 = vunpack.c.l.b16 %v751
        %v848 = vunpack.c.l.b16 %v752
        %v849 = vunpack.c.l.b16 %v753
        %v850 = vunpack.c.l.b16 %v754
        %v851 = vunpack.c.l.b16 %v755
        %v852 = vunpack.c.l.b16 %v756
        %v853 = vunpack.c.l.b16 %v757
        %v854 = vunpack.c.l.b16 %v758
        %v855 = vunpack.c.l.b16 %v759
        %v856 = vunpack.c.l.b16 %v760
        %v857 = vunpack.c.l.b16 %v761
        %v858 = vunpack.c.l.b16 %v762
        %v859 = vunpack.c.l.b16 %v763
        %v860 = vunpack.c.l.b16 %v764
        %v861 = vunpack.c.l.b16 %v765
        %v862 = vpack.c.b16 %v847, %v846
        %v863 = vpack.c.b16 %v849, %v848
        %v864 = vpack.c.b16 %v851, %v850
        %v865 = vpack.c.b16 %v853, %v852
        %v866 = vpack.c.b16 %v855, %v854
        %v867 = vpack.c.b16 %v857, %v856
        %v868 = vpack.c.b16 %v859, %v858
        %v869 = vpack.c.b16 %v861, %v860
        %878 = vmatprep.subr.bf16.mxu0 0
        %879 = vmatpush1.bf16.xpose.msra.mxu0 %v862
        %880 = vmatprep.subr.bf16.mxu0 0
        %881 = vmatpush1.bf16.xpose.msra.mxu0 %v863
        %882 = vmatprep.subr.bf16.mxu0 0
        %883 = vmatpush1.bf16.xpose.msra.mxu0 %v864
        %884 = vmatprep.subr.bf16.mxu0 0
        %885 = vmatpush1.bf16.xpose.msra.mxu0 %v865
        %886 = vmatprep.subr.bf16.mxu0 0
        %887 = vmatpush1.bf16.xpose.msra.mxu0 %v866
        %888 = vmatprep.subr.bf16.mxu0 0
        %889 = vmatpush1.bf16.xpose.msra.mxu0 %v867
        %890 = vmatprep.subr.bf16.mxu0 0
        %891 = vmatpush1.bf16.xpose.msra.mxu0 %v868
        %892 = vmatprep.subr.bf16.mxu0 0
        %893 = vmatpush1.bf16.xpose.msra.mxu0 %v869
        %894 = vmatprep.subr.bf16.mxu0 0
        %895 = vmatpush1.bf16.xpose.msra.mxu0 0
        %896 = vmatprep.subr.bf16.mxu0 0
        %897 = vmatpush1.bf16.xpose.msra.mxu0 0
        %898 = vmatprep.subr.bf16.mxu0 0
        %899 = vmatpush1.bf16.xpose.msra.mxu0 0
        %900 = vmatprep.subr.bf16.mxu0 0
        %901 = vmatpush1.bf16.xpose.msra.mxu0 0
        %902 = vmatprep.subr.bf16.mxu0 0
        %903 = vmatpush1.bf16.xpose.msra.mxu0 0
        %904 = vmatprep.subr.bf16.mxu0 0
        %905 = vmatpush1.bf16.xpose.msra.mxu0 0
        %906 = vmatprep.subr.bf16.mxu0 0
        %907 = vmatpush1.bf16.xpose.msra.mxu0 0
        %908 = vmatprep.subr.bf16.mxu0 0
        %909 = vmatpush1.bf16.xpose.msra.mxu0 0
        %910 = vmatprep.mubr.bf16.mxu0 0
        %911 = vmatmul.mubr.bf16.gmra.mrb[0].mxu0 %v814
        %v912 = vpop.f32.mrb[0].mxu0
        %v913 = vadd.f32 0.0, %v912
        %v914 = vpop.f32.mrb[0].mxu0
        %v915 = vpop.f32.mrb[0].mxu0
        %v916 = vadd.f32 0.0, %v915
        %v917 = vpop.f32.mrb[0].mxu0
        %918 = vmatprep.mubr.bf16.mxu0 0
        %919 = vmatmul.mubr.bf16.gmra.mrb[0].mxu0 %v815
        %v920 = vpop.f32.mrb[0].mxu0
        %v921 = vadd.f32 0.0, %v920
        %v922 = vpop.f32.mrb[0].mxu0
        %v923 = vpop.f32.mrb[0].mxu0
        %v924 = vadd.f32 0.0, %v923
        %v925 = vpop.f32.mrb[0].mxu0
        %926 = vmatprep.mubr.bf16.mxu0 0
        %927 = vmatmul.mubr.bf16.gmra.mrb[0].mxu0 %v816
        %v928 = vpop.f32.mrb[0].mxu0
        %v929 = vadd.f32 0.0, %v928
        %v930 = vpop.f32.mrb[0].mxu0
        %v931 = vpop.f32.mrb[0].mxu0
        %v932 = vadd.f32 0.0, %v931
        %v933 = vpop.f32.mrb[0].mxu0
        %934 = vmatprep.mubr.bf16.mxu0 0
        %935 = vmatmul.mubr.bf16.gmra.mrb[0].mxu0 %v817
        %v936 = vpop.f32.mrb[0].mxu0
        %v937 = vadd.f32 0.0, %v936
        %v938 = vpop.f32.mrb[0].mxu0
        %v939 = vpop.f32.mrb[0].mxu0
        %v940 = vadd.f32 0.0, %v939
        %v941 = vpop.f32.mrb[0].mxu0
        %942 = vmatprep.mubr.bf16.mxu0 0
        %943 = vmatmul.mubr.bf16.gmra.mrb[0].mxu0 %v818
        %v944 = vpop.f32.mrb[0].mxu0
        %v945 = vadd.f32 0.0, %v944
        %v946 = vpop.f32.mrb[0].mxu0
        %v947 = vpop.f32.mrb[0].mxu0
        %v948 = vadd.f32 0.0, %v947
        %v949 = vpop.f32.mrb[0].mxu0
        %950 = vmatprep.mubr.bf16.mxu0 0
        %951 = vmatmul.mubr.bf16.gmra.mrb[0].mxu0 %v819
        %v952 = vpop.f32.mrb[0].mxu0
        %v953 = vadd.f32 0.0, %v952
        %v954 = vpop.f32.mrb[0].mxu0
        %v955 = vpop.f32.mrb[0].mxu0
        %v956 = vadd.f32 0.0, %v955
        %v957 = vpop.f32.mrb[0].mxu0
        %958 = vmatprep.mubr.bf16.mxu0 0
        %959 = vmatmul.mubr.bf16.gmra.mrb[0].mxu0 %v820
        %v960 = vpop.f32.mrb[0].mxu0
        %v961 = vadd.f32 0.0, %v960
        %v962 = vpop.f32.mrb[0].mxu0
        %v963 = vpop.f32.mrb[0].mxu0
        %v964 = vadd.f32 0.0, %v963
        %v965 = vpop.f32.mrb[0].mxu0
        %966 = vmatprep.mubr.bf16.mxu0 0
        %967 = vmatmul.mubr.bf16.gmra.mrb[0].mxu0 %v821
        %v968 = vpop.f32.mrb[0].mxu0
        %v969 = vadd.f32 0.0, %v968
        %v970 = vpop.f32.mrb[0].mxu0
        %v971 = vpop.f32.mrb[0].mxu0
        %v972 = vadd.f32 0.0, %v971
        %v973 = vpop.f32.mrb[0].mxu0
        %974 = vdwg.mxu0
        %v975 = vld [vmem:[#allocation2] sm:$0xff]
        %v976 = vld [vmem:[#allocation2 + $0x8] sm:$0xff]
        %v977 = vld [vmem:[#allocation2 + $0x10] sm:$0xff]
        %v978 = vld [vmem:[#allocation2 + $0x18] sm:$0xff]
        %v979 = vld [vmem:[#allocation2 + $0x20] sm:$0xff]
        %v980 = vld [vmem:[#allocation2 + $0x28] sm:$0xff]
        %v981 = vld [vmem:[#allocation2 + $0x30] sm:$0xff]
        %v982 = vld [vmem:[#allocation2 + $0x38] sm:$0xff]
        %v983 = vld [vmem:[#allocation2 + $0x40] sm:$0xff]
        %v984 = vld [vmem:[#allocation2 + $0x48] sm:$0xff]
        %v985 = vld [vmem:[#allocation2 + $0x50] sm:$0xff]
        %v986 = vld [vmem:[#allocation2 + $0x58] sm:$0xff]
        %v987 = vld [vmem:[#allocation2 + $0x60] sm:$0xff]
        %v988 = vld [vmem:[#allocation2 + $0x68] sm:$0xff]
        %v989 = vld [vmem:[#allocation2 + $0x70] sm:$0xff]
        %v990 = vld [vmem:[#allocation2 + $0x78] sm:$0xff]
        %991 = vmax.xlane.f32.xlu0 %v913
        %v992 = vpop.xlane.xlu0 %991
        %993 = vmax.xlane.f32.xlu0 %v916
        %v994 = vpop.xlane.xlu0 %993
        %995 = vmax.xlane.f32.xlu0 %v921
        %v996 = vpop.xlane.xlu0 %995
        %997 = vmax.xlane.f32.xlu0 %v924
        %v998 = vpop.xlane.xlu0 %997
        %999 = vmax.xlane.f32.xlu0 %v929
        %v1000 = vpop.xlane.xlu0 %999
        %1001 = vmax.xlane.f32.xlu0 %v932
        %v1002 = vpop.xlane.xlu0 %1001
        %1003 = vmax.xlane.f32.xlu0 %v937
        %v1004 = vpop.xlane.xlu0 %1003
        %1005 = vmax.xlane.f32.xlu0 %v940
        %v1006 = vpop.xlane.xlu0 %1005
        %1007 = vmax.xlane.f32.xlu0 %v945
        %v1008 = vpop.xlane.xlu0 %1007
        %1009 = vmax.xlane.f32.xlu0 %v948
        %v1010 = vpop.xlane.xlu0 %1009
        %1011 = vmax.xlane.f32.xlu0 %v953
        %v1012 = vpop.xlane.xlu0 %1011
        %1013 = vmax.xlane.f32.xlu0 %v956
        %v1014 = vpop.xlane.xlu0 %1013
        %1015 = vmax.xlane.f32.xlu0 %v961
        %v1016 = vpop.xlane.xlu0 %1015
        %1017 = vmax.xlane.f32.xlu0 %v964
        %v1018 = vpop.xlane.xlu0 %1017
        %1019 = vmax.xlane.f32.xlu0 %v969
        %v1020 = vpop.xlane.xlu0 %1019
        %1021 = vmax.xlane.f32.xlu0 %v972
        %v1022 = vpop.xlane.xlu0 %1021
        %v1023 = vmax.f32 %v975, %v992
        %v1024 = vmax.f32 %v976, %v994
        %v1025 = vmax.f32 %v977, %v996
        %v1026 = vmax.f32 %v978, %v998
        %v1027 = vmax.f32 %v979, %v1000
        %v1028 = vmax.f32 %v980, %v1002
        %v1029 = vmax.f32 %v981, %v1004
        %v1030 = vmax.f32 %v982, %v1006
        %v1031 = vmax.f32 %v983, %v1008
        %v1032 = vmax.f32 %v984, %v1010
        %v1033 = vmax.f32 %v985, %v1012
        %v1034 = vmax.f32 %v986, %v1014
        %v1035 = vmax.f32 %v987, %v1016
        %v1036 = vmax.f32 %v988, %v1018
        %v1037 = vmax.f32 %v989, %v1020
        %v1038 = vmax.f32 %v990, %v1022
        %v1039 = vsub.f32 %v975, %v1023
        %v1040 = vsub.f32 %v976, %v1024
        %v1041 = vsub.f32 %v977, %v1025
        %v1042 = vsub.f32 %v978, %v1026
        %v1043 = vsub.f32 %v979, %v1027
        %v1044 = vsub.f32 %v980, %v1028
        %v1045 = vsub.f32 %v981, %v1029
        %v1046 = vsub.f32 %v982, %v1030
        %v1047 = vsub.f32 %v983, %v1031
        %v1048 = vsub.f32 %v984, %v1032
        %v1049 = vsub.f32 %v985, %v1033
        %v1050 = vsub.f32 %v986, %v1034
        %v1051 = vsub.f32 %v987, %v1035
        %v1052 = vsub.f32 %v988, %v1036
        %v1053 = vsub.f32 %v989, %v1037
        %v1054 = vsub.f32 %v990, %v1038
        %v1055 = vmul.f32 %v1039, 1.442695
        %v1056 = vpow.pop %v1055
        %v1057 = vmul.f32 %v1040, 1.442695
        %v1058 = vpow.pop %v1057
        %v1059 = vmul.f32 %v1041, 1.442695
        %v1060 = vpow.pop %v1059
        %v1061 = vmul.f32 %v1042, 1.442695
        %v1062 = vpow.pop %v1061
        %v1063 = vmul.f32 %v1043, 1.442695
        %v1064 = vpow.pop %v1063
        %v1065 = vmul.f32 %v1044, 1.442695
        %v1066 = vpow.pop %v1065
        %v1067 = vmul.f32 %v1045, 1.442695
        %v1068 = vpow.pop %v1067
        %v1069 = vmul.f32 %v1046, 1.442695
        %v1070 = vpow.pop %v1069
        %v1071 = vmul.f32 %v1047, 1.442695
        %v1072 = vpow.pop %v1071
        %v1073 = vmul.f32 %v1048, 1.442695
        %v1074 = vpow.pop %v1073
        %v1075 = vmul.f32 %v1049, 1.442695
        %v1076 = vpow.pop %v1075
        %v1077 = vmul.f32 %v1050, 1.442695
        %v1078 = vpow.pop %v1077
        %v1079 = vmul.f32 %v1051, 1.442695
        %v1080 = vpow.pop %v1079
        %v1081 = vmul.f32 %v1052, 1.442695
        %v1082 = vpow.pop %v1081
        %v1083 = vmul.f32 %v1053, 1.442695
        %v1084 = vpow.pop %v1083
        %v1085 = vmul.f32 %v1054, 1.442695
        %v1086 = vpow.pop %v1085
        %1088 = vset.pattern.permute.xlu0 0
        %1089 = vperm.xlu0 %1088, %v1023
        %v1090 = vpop.permute.xlu0 %1089
        %1093 = vset.pattern.permute.xlu0 0
        %1094 = vperm.xlu0 %1093, %v1024
        %v1095 = vpop.permute.xlu0 %1094
        %1098 = vset.pattern.permute.xlu0 0
        %1099 = vperm.xlu0 %1098, %v1025
        %v1100 = vpop.permute.xlu0 %1099
        %1103 = vset.pattern.permute.xlu0 0
        %1104 = vperm.xlu0 %1103, %v1026
        %v1105 = vpop.permute.xlu0 %1104
        %1108 = vset.pattern.permute.xlu0 0
        %1109 = vperm.xlu0 %1108, %v1027
        %v1110 = vpop.permute.xlu0 %1109
        %1113 = vset.pattern.permute.xlu0 0
        %1114 = vperm.xlu0 %1113, %v1028
        %v1115 = vpop.permute.xlu0 %1114
        %1118 = vset.pattern.permute.xlu0 0
        %1119 = vperm.xlu0 %1118, %v1029
        %v1120 = vpop.permute.xlu0 %1119
        %1123 = vset.pattern.permute.xlu0 0
        %1124 = vperm.xlu0 %1123, %v1030
        %v1125 = vpop.permute.xlu0 %1124
        %1128 = vset.pattern.permute.xlu0 0
        %1129 = vperm.xlu0 %1128, %v1031
        %v1130 = vpop.permute.xlu0 %1129
        %1133 = vset.pattern.permute.xlu0 0
        %1134 = vperm.xlu0 %1133, %v1032
        %v1135 = vpop.permute.xlu0 %1134
        %1138 = vset.pattern.permute.xlu0 0
        %1139 = vperm.xlu0 %1138, %v1033
        %v1140 = vpop.permute.xlu0 %1139
        %1143 = vset.pattern.permute.xlu0 0
        %1144 = vperm.xlu0 %1143, %v1034
        %v1145 = vpop.permute.xlu0 %1144
        %1148 = vset.pattern.permute.xlu0 0
        %1149 = vperm.xlu0 %1148, %v1035
        %v1150 = vpop.permute.xlu0 %1149
        %1153 = vset.pattern.permute.xlu0 0
        %1154 = vperm.xlu0 %1153, %v1036
        %v1155 = vpop.permute.xlu0 %1154
        %1158 = vset.pattern.permute.xlu0 0
        %1159 = vperm.xlu0 %1158, %v1037
        %v1160 = vpop.permute.xlu0 %1159
        %1163 = vset.pattern.permute.xlu0 0
        %1164 = vperm.xlu0 %1163, %v1038
        %v1165 = vpop.permute.xlu0 %1164
        %v1167 = vsub.f32 %v913, %v1090
        %v1168 = vsub.f32 %v916, %v1095
        %v1169 = vsub.f32 %v921, %v1100
        %v1170 = vsub.f32 %v924, %v1105
        %v1171 = vsub.f32 %v929, %v1110
        %v1172 = vsub.f32 %v932, %v1115
        %v1173 = vsub.f32 %v937, %v1120
        %v1174 = vsub.f32 %v940, %v1125
        %v1175 = vsub.f32 %v945, %v1130
        %v1176 = vsub.f32 %v948, %v1135
        %v1177 = vsub.f32 %v953, %v1140
        %v1178 = vsub.f32 %v956, %v1145
        %v1179 = vsub.f32 %v961, %v1150
        %v1180 = vsub.f32 %v964, %v1155
        %v1181 = vsub.f32 %v969, %v1160
        %v1182 = vsub.f32 %v972, %v1165
        %v1183 = vmul.f32 %v1167, 1.442695
        %v1184 = vpow.pop %v1183
        %v1185 = vmul.f32 %v1168, 1.442695
        %v1186 = vpow.pop %v1185
        %v1187 = vmul.f32 %v1169, 1.442695
        %v1188 = vpow.pop %v1187
        %v1189 = vmul.f32 %v1170, 1.442695
        %v1190 = vpow.pop %v1189
        %v1191 = vmul.f32 %v1171, 1.442695
        %v1192 = vpow.pop %v1191
        %v1193 = vmul.f32 %v1172, 1.442695
        %v1194 = vpow.pop %v1193
        %v1195 = vmul.f32 %v1173, 1.442695
        %v1196 = vpow.pop %v1195
        %v1197 = vmul.f32 %v1174, 1.442695
        %v1198 = vpow.pop %v1197
        %v1199 = vmul.f32 %v1175, 1.442695
        %v1200 = vpow.pop %v1199
        %v1201 = vmul.f32 %v1176, 1.442695
        %v1202 = vpow.pop %v1201
        %v1203 = vmul.f32 %v1177, 1.442695
        %v1204 = vpow.pop %v1203
        %v1205 = vmul.f32 %v1178, 1.442695
        %v1206 = vpow.pop %v1205
        %v1207 = vmul.f32 %v1179, 1.442695
        %v1208 = vpow.pop %v1207
        %v1209 = vmul.f32 %v1180, 1.442695
        %v1210 = vpow.pop %v1209
        %v1211 = vmul.f32 %v1181, 1.442695
        %v1212 = vpow.pop %v1211
        %v1213 = vmul.f32 %v1182, 1.442695
        %v1214 = vpow.pop %v1213
        %v1215 = vld [vmem:[#allocation3] sm:$0xff]
        %v1216 = vld [vmem:[#allocation3 + $0x8] sm:$0xff]
        %v1217 = vld [vmem:[#allocation3 + $0x10] sm:$0xff]
        %v1218 = vld [vmem:[#allocation3 + $0x18] sm:$0xff]
        %v1219 = vld [vmem:[#allocation3 + $0x20] sm:$0xff]
        %v1220 = vld [vmem:[#allocation3 + $0x28] sm:$0xff]
        %v1221 = vld [vmem:[#allocation3 + $0x30] sm:$0xff]
        %v1222 = vld [vmem:[#allocation3 + $0x38] sm:$0xff]
        %v1223 = vld [vmem:[#allocation3 + $0x40] sm:$0xff]
        %v1224 = vld [vmem:[#allocation3 + $0x48] sm:$0xff]
        %v1225 = vld [vmem:[#allocation3 + $0x50] sm:$0xff]
        %v1226 = vld [vmem:[#allocation3 + $0x58] sm:$0xff]
        %v1227 = vld [vmem:[#allocation3 + $0x60] sm:$0xff]
        %v1228 = vld [vmem:[#allocation3 + $0x68] sm:$0xff]
        %v1229 = vld [vmem:[#allocation3 + $0x70] sm:$0xff]
        %v1230 = vld [vmem:[#allocation3 + $0x78] sm:$0xff]
        %v1231 = vmul.f32 %v1056, %v1215
        %v1232 = vmul.f32 %v1058, %v1216
        %v1233 = vmul.f32 %v1060, %v1217
        %v1234 = vmul.f32 %v1062, %v1218
        %v1235 = vmul.f32 %v1064, %v1219
        %v1236 = vmul.f32 %v1066, %v1220
        %v1237 = vmul.f32 %v1068, %v1221
        %v1238 = vmul.f32 %v1070, %v1222
        %v1239 = vmul.f32 %v1072, %v1223
        %v1240 = vmul.f32 %v1074, %v1224
        %v1241 = vmul.f32 %v1076, %v1225
        %v1242 = vmul.f32 %v1078, %v1226
        %v1243 = vmul.f32 %v1080, %v1227
        %v1244 = vmul.f32 %v1082, %v1228
        %v1245 = vmul.f32 %v1084, %v1229
        %v1246 = vmul.f32 %v1086, %v1230
        %1247 = vadd.xlane.f32.xlu0 %v1184
        %v1248 = vpop.xlane.xlu0 %1247
        %1249 = vadd.xlane.f32.xlu0 %v1186
        %v1250 = vpop.xlane.xlu0 %1249
        %1251 = vadd.xlane.f32.xlu0 %v1188
        %v1252 = vpop.xlane.xlu0 %1251
        %1253 = vadd.xlane.f32.xlu0 %v1190
        %v1254 = vpop.xlane.xlu0 %1253
        %1255 = vadd.xlane.f32.xlu0 %v1192
        %v1256 = vpop.xlane.xlu0 %1255
        %1257 = vadd.xlane.f32.xlu0 %v1194
        %v1258 = vpop.xlane.xlu0 %1257
        %1259 = vadd.xlane.f32.xlu0 %v1196
        %v1260 = vpop.xlane.xlu0 %1259
        %1261 = vadd.xlane.f32.xlu0 %v1198
        %v1262 = vpop.xlane.xlu0 %1261
        %1263 = vadd.xlane.f32.xlu0 %v1200
        %v1264 = vpop.xlane.xlu0 %1263
        %1265 = vadd.xlane.f32.xlu0 %v1202
        %v1266 = vpop.xlane.xlu0 %1265
        %1267 = vadd.xlane.f32.xlu0 %v1204
        %v1268 = vpop.xlane.xlu0 %1267
        %1269 = vadd.xlane.f32.xlu0 %v1206
        %v1270 = vpop.xlane.xlu0 %1269
        %1271 = vadd.xlane.f32.xlu0 %v1208
        %v1272 = vpop.xlane.xlu0 %1271
        %1273 = vadd.xlane.f32.xlu0 %v1210
        %v1274 = vpop.xlane.xlu0 %1273
        %1275 = vadd.xlane.f32.xlu0 %v1212
        %v1276 = vpop.xlane.xlu0 %1275
        %1277 = vadd.xlane.f32.xlu0 %v1214
        %v1278 = vpop.xlane.xlu0 %1277
        %v1279 = vadd.f32 %v1231, %v1248
        %v1280 = vadd.f32 %v1232, %v1250
        %v1281 = vadd.f32 %v1233, %v1252
        %v1282 = vadd.f32 %v1234, %v1254
        %v1283 = vadd.f32 %v1235, %v1256
        %v1284 = vadd.f32 %v1236, %v1258
        %v1285 = vadd.f32 %v1237, %v1260
        %v1286 = vadd.f32 %v1238, %v1262
        %v1287 = vadd.f32 %v1239, %v1264
        %v1288 = vadd.f32 %v1240, %v1266
        %v1289 = vadd.f32 %v1241, %v1268
        %v1290 = vadd.f32 %v1242, %v1270
        %v1291 = vadd.f32 %v1243, %v1272
        %v1292 = vadd.f32 %v1244, %v1274
        %v1293 = vadd.f32 %v1245, %v1276
        %v1294 = vadd.f32 %v1246, %v1278
        %vm1295 = vcmask 7168
        %1296 = vst.msk [vmem:[#allocation3] sm:$0xff] %vm1295, %v1279
        %1297 = vst.msk [vmem:[#allocation3 + $0x8] sm:$0xff] %vm1295, %v1280
        %1298 = vst.msk [vmem:[#allocation3 + $0x10] sm:$0xff] %vm1295, %v1281
        %1299 = vst.msk [vmem:[#allocation3 + $0x18] sm:$0xff] %vm1295, %v1282
        %1300 = vst.msk [vmem:[#allocation3 + $0x20] sm:$0xff] %vm1295, %v1283
        %1301 = vst.msk [vmem:[#allocation3 + $0x28] sm:$0xff] %vm1295, %v1284
        %1302 = vst.msk [vmem:[#allocation3 + $0x30] sm:$0xff] %vm1295, %v1285
        %1303 = vst.msk [vmem:[#allocation3 + $0x38] sm:$0xff] %vm1295, %v1286
        %1304 = vst.msk [vmem:[#allocation3 + $0x40] sm:$0xff] %vm1295, %v1287
        %1305 = vst.msk [vmem:[#allocation3 + $0x48] sm:$0xff] %vm1295, %v1288
        %1306 = vst.msk [vmem:[#allocation3 + $0x50] sm:$0xff] %vm1295, %v1289
        %1307 = vst.msk [vmem:[#allocation3 + $0x58] sm:$0xff] %vm1295, %v1290
        %1308 = vst.msk [vmem:[#allocation3 + $0x60] sm:$0xff] %vm1295, %v1291
        %1309 = vst.msk [vmem:[#allocation3 + $0x68] sm:$0xff] %vm1295, %v1292
        %1310 = vst.msk [vmem:[#allocation3 + $0x70] sm:$0xff] %vm1295, %v1293
        %1311 = vst.msk [vmem:[#allocation3 + $0x78] sm:$0xff] %vm1295, %v1294
        %v1312 = vld [vmem:[#allocation4] sm:$0xff]
        %v1313 = vld [vmem:[#allocation4 + $0x8] sm:$0xff]
        %v1314 = vld [vmem:[#allocation4 + $0x10] sm:$0xff]
        %v1315 = vld [vmem:[#allocation4 + $0x18] sm:$0xff]
        %v1316 = vld [vmem:[#allocation4 + $0x20] sm:$0xff]
        %v1317 = vld [vmem:[#allocation4 + $0x28] sm:$0xff]
        %v1318 = vld [vmem:[#allocation4 + $0x30] sm:$0xff]
        %v1319 = vld [vmem:[#allocation4 + $0x38] sm:$0xff]
        %v1320 = vld [vmem:[#allocation4 + $0x40] sm:$0xff]
        %v1321 = vld [vmem:[#allocation4 + $0x48] sm:$0xff]
        %v1322 = vld [vmem:[#allocation4 + $0x50] sm:$0xff]
        %v1323 = vld [vmem:[#allocation4 + $0x58] sm:$0xff]
        %v1324 = vld [vmem:[#allocation4 + $0x60] sm:$0xff]
        %v1325 = vld [vmem:[#allocation4 + $0x68] sm:$0xff]
        %v1326 = vld [vmem:[#allocation4 + $0x70] sm:$0xff]
        %v1327 = vld [vmem:[#allocation4 + $0x78] sm:$0xff]
        %1329 = vset.pattern.permute.xlu0 0
        %1330 = vperm.xlu0 %1329, %v1056
        %v1331 = vpop.permute.xlu0 %1330
        %1334 = vset.pattern.permute.xlu0 0
        %1335 = vperm.xlu0 %1334, %v1058
        %v1336 = vpop.permute.xlu0 %1335
        %1339 = vset.pattern.permute.xlu0 0
        %1340 = vperm.xlu0 %1339, %v1060
        %v1341 = vpop.permute.xlu0 %1340
        %1344 = vset.pattern.permute.xlu0 0
        %1345 = vperm.xlu0 %1344, %v1062
        %v1346 = vpop.permute.xlu0 %1345
        %1349 = vset.pattern.permute.xlu0 0
        %1350 = vperm.xlu0 %1349, %v1064
        %v1351 = vpop.permute.xlu0 %1350
        %1354 = vset.pattern.permute.xlu0 0
        %1355 = vperm.xlu0 %1354, %v1066
        %v1356 = vpop.permute.xlu0 %1355
        %1359 = vset.pattern.permute.xlu0 0
        %1360 = vperm.xlu0 %1359, %v1068
        %v1361 = vpop.permute.xlu0 %1360
        %1364 = vset.pattern.permute.xlu0 0
        %1365 = vperm.xlu0 %1364, %v1070
        %v1366 = vpop.permute.xlu0 %1365
        %1369 = vset.pattern.permute.xlu0 0
        %1370 = vperm.xlu0 %1369, %v1072
        %v1371 = vpop.permute.xlu0 %1370
        %1374 = vset.pattern.permute.xlu0 0
        %1375 = vperm.xlu0 %1374, %v1074
        %v1376 = vpop.permute.xlu0 %1375
        %1379 = vset.pattern.permute.xlu0 0
        %1380 = vperm.xlu0 %1379, %v1076
        %v1381 = vpop.permute.xlu0 %1380
        %1384 = vset.pattern.permute.xlu0 0
        %1385 = vperm.xlu0 %1384, %v1078
        %v1386 = vpop.permute.xlu0 %1385
        %1389 = vset.pattern.permute.xlu0 0
        %1390 = vperm.xlu0 %1389, %v1080
        %v1391 = vpop.permute.xlu0 %1390
        %1394 = vset.pattern.permute.xlu0 0
        %1395 = vperm.xlu0 %1394, %v1082
        %v1396 = vpop.permute.xlu0 %1395
        %1399 = vset.pattern.permute.xlu0 0
        %1400 = vperm.xlu0 %1399, %v1084
        %v1401 = vpop.permute.xlu0 %1400
        %1404 = vset.pattern.permute.xlu0 0
        %1405 = vperm.xlu0 %1404, %v1086
        %v1406 = vpop.permute.xlu0 %1405
        %v1408 = vmul.f32 %v1331, %v1312
        %v1409 = vmul.f32 %v1336, %v1313
        %v1410 = vmul.f32 %v1341, %v1314
        %v1411 = vmul.f32 %v1346, %v1315
        %v1412 = vmul.f32 %v1351, %v1316
        %v1413 = vmul.f32 %v1356, %v1317
        %v1414 = vmul.f32 %v1361, %v1318
        %v1415 = vmul.f32 %v1366, %v1319
        %v1416 = vmul.f32 %v1371, %v1320
        %v1417 = vmul.f32 %v1376, %v1321
        %v1418 = vmul.f32 %v1381, %v1322
        %v1419 = vmul.f32 %v1386, %v1323
        %v1420 = vmul.f32 %v1391, %v1324
        %v1421 = vmul.f32 %v1396, %v1325
        %v1422 = vmul.f32 %v1401, %v1326
        %v1423 = vmul.f32 %v1406, %v1327
        %v1424 = vpack.c.bf16 %v1186, %v1184
        %v1425 = vpack.c.bf16 %v1190, %v1188
        %v1426 = vpack.c.bf16 %v1194, %v1192
        %v1427 = vpack.c.bf16 %v1198, %v1196
        %v1428 = vpack.c.bf16 %v1202, %v1200
        %v1429 = vpack.c.bf16 %v1206, %v1204
        %v1430 = vpack.c.bf16 %v1210, %v1208
        %v1431 = vpack.c.bf16 %v1214, %v1212
        %v1448 = vunpack.c.l.b16 %v766
        %v1449 = vunpack.c.l.b16 %v767
        %v1450 = vunpack.c.l.b16 %v768
        %v1451 = vunpack.c.l.b16 %v769
        %v1452 = vunpack.c.l.b16 %v770
        %v1453 = vunpack.c.l.b16 %v771
        %v1454 = vunpack.c.l.b16 %v772
        %v1455 = vunpack.c.l.b16 %v773
        %v1456 = vunpack.c.l.b16 %v774
        %v1457 = vunpack.c.l.b16 %v775
        %v1458 = vunpack.c.l.b16 %v776
        %v1459 = vunpack.c.l.b16 %v777
        %v1460 = vunpack.c.l.b16 %v778
        %v1461 = vunpack.c.l.b16 %v779
        %v1462 = vunpack.c.l.b16 %v780
        %v1463 = vunpack.c.l.b16 %v781
        %v1464 = vpack.c.b16 %v1449, %v1448
        %v1465 = vpack.c.b16 %v1451, %v1450
        %v1466 = vpack.c.b16 %v1453, %v1452
        %v1467 = vpack.c.b16 %v1455, %v1454
        %v1468 = vpack.c.b16 %v1457, %v1456
        %v1469 = vpack.c.b16 %v1459, %v1458
        %v1470 = vpack.c.b16 %v1461, %v1460
        %v1471 = vpack.c.b16 %v1463, %v1462
        %1480 = vmatprep.subr.bf16.mxu0 0
        %1481 = vmatpush1.bf16.msra.mxu0 %v1464
        %1482 = vmatprep.subr.bf16.mxu0 0
        %1483 = vmatpush1.bf16.msra.mxu0 %v1465
        %1484 = vmatprep.subr.bf16.mxu0 0
        %1485 = vmatpush1.bf16.msra.mxu0 %v1466
        %1486 = vmatprep.subr.bf16.mxu0 0
        %1487 = vmatpush1.bf16.msra.mxu0 %v1467
        %1488 = vmatprep.subr.bf16.mxu0 0
        %1489 = vmatpush1.bf16.msra.mxu0 %v1468
        %1490 = vmatprep.subr.bf16.mxu0 0
        %1491 = vmatpush1.bf16.msra.mxu0 %v1469
        %1492 = vmatprep.subr.bf16.mxu0 0
        %1493 = vmatpush1.bf16.msra.mxu0 %v1470
        %1494 = vmatprep.subr.bf16.mxu0 0
        %1495 = vmatpush1.bf16.msra.mxu0 %v1471
        %1496 = vmatprep.subr.bf16.mxu0 0
        %1497 = vmatpush1.bf16.msra.mxu0 0
        %1498 = vmatprep.subr.bf16.mxu0 0
        %1499 = vmatpush1.bf16.msra.mxu0 0
        %1500 = vmatprep.subr.bf16.mxu0 0
        %1501 = vmatpush1.bf16.msra.mxu0 0
        %1502 = vmatprep.subr.bf16.mxu0 0
        %1503 = vmatpush1.bf16.msra.mxu0 0
        %1504 = vmatprep.subr.bf16.mxu0 0
        %1505 = vmatpush1.bf16.msra.mxu0 0
        %1506 = vmatprep.subr.bf16.mxu0 0
        %1507 = vmatpush1.bf16.msra.mxu0 0
        %1508 = vmatprep.subr.bf16.mxu0 0
        %1509 = vmatpush1.bf16.msra.mxu0 0
        %1510 = vmatprep.subr.bf16.mxu0 0
        %1511 = vmatpush1.bf16.msra.mxu0 0
        %1512 = vmatprep.mubr.bf16.mxu0 0
        %1513 = vmatmul.mubr.bf16.gmra.mrb[0].mxu0 %v1424
        %v1514 = vpop.f32.mrb[0].mxu0
        %v1515 = vadd.f32 0.0, %v1514
        %v1516 = vpop.f32.mrb[0].mxu0
        %v1517 = vpop.f32.mrb[0].mxu0
        %v1518 = vadd.f32 0.0, %v1517
        %v1519 = vpop.f32.mrb[0].mxu0
        %1520 = vmatprep.mubr.bf16.mxu0 0
        %1521 = vmatmul.mubr.bf16.gmra.mrb[0].mxu0 %v1425
        %v1522 = vpop.f32.mrb[0].mxu0
        %v1523 = vadd.f32 0.0, %v1522
        %v1524 = vpop.f32.mrb[0].mxu0
        %v1525 = vpop.f32.mrb[0].mxu0
        %v1526 = vadd.f32 0.0, %v1525
        %v1527 = vpop.f32.mrb[0].mxu0
        %1528 = vmatprep.mubr.bf16.mxu0 0
        %1529 = vmatmul.mubr.bf16.gmra.mrb[0].mxu0 %v1426
        %v1530 = vpop.f32.mrb[0].mxu0
        %v1531 = vadd.f32 0.0, %v1530
        %v1532 = vpop.f32.mrb[0].mxu0
        %v1533 = vpop.f32.mrb[0].mxu0
        %v1534 = vadd.f32 0.0, %v1533
        %v1535 = vpop.f32.mrb[0].mxu0
        %1536 = vmatprep.mubr.bf16.mxu0 0
        %1537 = vmatmul.mubr.bf16.gmra.mrb[0].mxu0 %v1427
        %v1538 = vpop.f32.mrb[0].mxu0
        %v1539 = vadd.f32 0.0, %v1538
        %v1540 = vpop.f32.mrb[0].mxu0
        %v1541 = vpop.f32.mrb[0].mxu0
        %v1542 = vadd.f32 0.0, %v1541
        %v1543 = vpop.f32.mrb[0].mxu0
        %1544 = vmatprep.mubr.bf16.mxu0 0
        %1545 = vmatmul.mubr.bf16.gmra.mrb[0].mxu0 %v1428
        %v1546 = vpop.f32.mrb[0].mxu0
        %v1547 = vadd.f32 0.0, %v1546
        %v1548 = vpop.f32.mrb[0].mxu0
        %v1549 = vpop.f32.mrb[0].mxu0
        %v1550 = vadd.f32 0.0, %v1549
        %v1551 = vpop.f32.mrb[0].mxu0
        %1552 = vmatprep.mubr.bf16.mxu0 0
        %1553 = vmatmul.mubr.bf16.gmra.mrb[0].mxu0 %v1429
        %v1554 = vpop.f32.mrb[0].mxu0
        %v1555 = vadd.f32 0.0, %v1554
        %v1556 = vpop.f32.mrb[0].mxu0
        %v1557 = vpop.f32.mrb[0].mxu0
        %v1558 = vadd.f32 0.0, %v1557
        %v1559 = vpop.f32.mrb[0].mxu0
        %1560 = vmatprep.mubr.bf16.mxu0 0
        %1561 = vmatmul.mubr.bf16.gmra.mrb[0].mxu0 %v1430
        %v1562 = vpop.f32.mrb[0].mxu0
        %v1563 = vadd.f32 0.0, %v1562
        %v1564 = vpop.f32.mrb[0].mxu0
        %v1565 = vpop.f32.mrb[0].mxu0
        %v1566 = vadd.f32 0.0, %v1565
        %v1567 = vpop.f32.mrb[0].mxu0
        %1568 = vmatprep.mubr.bf16.mxu0 0
        %1569 = vmatmul.mubr.bf16.gmra.mrb[0].mxu0 %v1431
        %v1570 = vpop.f32.mrb[0].mxu0
        %v1571 = vadd.f32 0.0, %v1570
        %v1572 = vpop.f32.mrb[0].mxu0
        %v1573 = vpop.f32.mrb[0].mxu0
        %v1574 = vadd.f32 0.0, %v1573
        %v1575 = vpop.f32.mrb[0].mxu0
        %1576 = vdwg.mxu0
        %v1577 = vadd.f32 %v1408, %v1515
        %v1578 = vadd.f32 %v1409, %v1518
        %v1579 = vadd.f32 %v1410, %v1523
        %v1580 = vadd.f32 %v1411, %v1526
        %v1581 = vadd.f32 %v1412, %v1531
        %v1582 = vadd.f32 %v1413, %v1534
        %v1583 = vadd.f32 %v1414, %v1539
        %v1584 = vadd.f32 %v1415, %v1542
        %v1585 = vadd.f32 %v1416, %v1547
        %v1586 = vadd.f32 %v1417, %v1550
        %v1587 = vadd.f32 %v1418, %v1555
        %v1588 = vadd.f32 %v1419, %v1558
        %v1589 = vadd.f32 %v1420, %v1563
        %v1590 = vadd.f32 %v1421, %v1566
        %v1591 = vadd.f32 %v1422, %v1571
        %v1592 = vadd.f32 %v1423, %v1574
        %1593 = vst [vmem:[#allocation4] sm:$0xff] %v1577
        %1594 = vst [vmem:[#allocation4 + $0x8] sm:$0xff] %v1578
        %1595 = vst [vmem:[#allocation4 + $0x10] sm:$0xff] %v1579
        %1596 = vst [vmem:[#allocation4 + $0x18] sm:$0xff] %v1580
        %1597 = vst [vmem:[#allocation4 + $0x20] sm:$0xff] %v1581
        %1598 = vst [vmem:[#allocation4 + $0x28] sm:$0xff] %v1582
        %1599 = vst [vmem:[#allocation4 + $0x30] sm:$0xff] %v1583
        %1600 = vst [vmem:[#allocation4 + $0x38] sm:$0xff] %v1584
        %1601 = vst [vmem:[#allocation4 + $0x40] sm:$0xff] %v1585
        %1602 = vst [vmem:[#allocation4 + $0x48] sm:$0xff] %v1586
        %1603 = vst [vmem:[#allocation4 + $0x50] sm:$0xff] %v1587
        %1604 = vst [vmem:[#allocation4 + $0x58] sm:$0xff] %v1588
        %1605 = vst [vmem:[#allocation4 + $0x60] sm:$0xff] %v1589
        %1606 = vst [vmem:[#allocation4 + $0x68] sm:$0xff] %v1590
        %1607 = vst [vmem:[#allocation4 + $0x70] sm:$0xff] %v1591
        %1608 = vst [vmem:[#allocation4 + $0x78] sm:$0xff] %v1592
        %1609 = vst.msk [vmem:[#allocation2] sm:$0xff] %vm1295, %v1023
        %1610 = vst.msk [vmem:[#allocation2 + $0x8] sm:$0xff] %vm1295, %v1024
        %1611 = vst.msk [vmem:[#allocation2 + $0x10] sm:$0xff] %vm1295, %v1025
        %1612 = vst.msk [vmem:[#allocation2 + $0x18] sm:$0xff] %vm1295, %v1026
        %1613 = vst.msk [vmem:[#allocation2 + $0x20] sm:$0xff] %vm1295, %v1027
        %1614 = vst.msk [vmem:[#allocation2 + $0x28] sm:$0xff] %vm1295, %v1028
        %1615 = vst.msk [vmem:[#allocation2 + $0x30] sm:$0xff] %vm1295, %v1029
        %1616 = vst.msk [vmem:[#allocation2 + $0x38] sm:$0xff] %vm1295, %v1030
        %1617 = vst.msk [vmem:[#allocation2 + $0x40] sm:$0xff] %vm1295, %v1031
        %1618 = vst.msk [vmem:[#allocation2 + $0x48] sm:$0xff] %vm1295, %v1032
        %1619 = vst.msk [vmem:[#allocation2 + $0x50] sm:$0xff] %vm1295, %v1033
        %1620 = vst.msk [vmem:[#allocation2 + $0x58] sm:$0xff] %vm1295, %v1034
        %1621 = vst.msk [vmem:[#allocation2 + $0x60] sm:$0xff] %vm1295, %v1035
        %1622 = vst.msk [vmem:[#allocation2 + $0x68] sm:$0xff] %vm1295, %v1036
        %1623 = vst.msk [vmem:[#allocation2 + $0x70] sm:$0xff] %vm1295, %v1037
        %1624 = vst.msk [vmem:[#allocation2 + $0x78] sm:$0xff] %vm1295, %v1038
        // Predicated region
        $region168: #{sdp_attention_forward.3} parent=146 // pred_check
          %p1625 = pneg %p645
        $region169: #{sdp_attention_forward.3} parent=146 // pred_check_branch
          %1627 = sbr.rel (%p1625) target = $region171
        $region170: #{sdp_attention_forward.3} parent=146 // pred_region
          %v1628 = vld [vmem:[#allocation3] sm:$0xff]
          %v1629 = vld [vmem:[#allocation3 + $0x8] sm:$0xff]
          %v1630 = vld [vmem:[#allocation3 + $0x10] sm:$0xff]
          %v1631 = vld [vmem:[#allocation3 + $0x18] sm:$0xff]
          %v1632 = vld [vmem:[#allocation3 + $0x20] sm:$0xff]
          %v1633 = vld [vmem:[#allocation3 + $0x28] sm:$0xff]
          %v1634 = vld [vmem:[#allocation3 + $0x30] sm:$0xff]
          %v1635 = vld [vmem:[#allocation3 + $0x38] sm:$0xff]
          %v1636 = vld [vmem:[#allocation3 + $0x40] sm:$0xff]
          %v1637 = vld [vmem:[#allocation3 + $0x48] sm:$0xff]
          %v1638 = vld [vmem:[#allocation3 + $0x50] sm:$0xff]
          %v1639 = vld [vmem:[#allocation3 + $0x58] sm:$0xff]
          %v1640 = vld [vmem:[#allocation3 + $0x60] sm:$0xff]
          %v1641 = vld [vmem:[#allocation3 + $0x68] sm:$0xff]
          %v1642 = vld [vmem:[#allocation3 + $0x70] sm:$0xff]
          %v1643 = vld [vmem:[#allocation3 + $0x78] sm:$0xff]
          %v1644 = vrcp.pop %v1628
          %v1645 = vmul.f32 1.0, %v1644
          %v1646 = vrcp.pop %v1629
          %v1647 = vmul.f32 1.0, %v1646
          %v1648 = vrcp.pop %v1630
          %v1649 = vmul.f32 1.0, %v1648
          %v1650 = vrcp.pop %v1631
          %v1651 = vmul.f32 1.0, %v1650
          %v1652 = vrcp.pop %v1632
          %v1653 = vmul.f32 1.0, %v1652
          %v1654 = vrcp.pop %v1633
          %v1655 = vmul.f32 1.0, %v1654
          %v1656 = vrcp.pop %v1634
          %v1657 = vmul.f32 1.0, %v1656
          %v1658 = vrcp.pop %v1635
          %v1659 = vmul.f32 1.0, %v1658
          %v1660 = vrcp.pop %v1636
          %v1661 = vmul.f32 1.0, %v1660
          %v1662 = vrcp.pop %v1637
          %v1663 = vmul.f32 1.0, %v1662
          %v1664 = vrcp.pop %v1638
          %v1665 = vmul.f32 1.0, %v1664
          %v1666 = vrcp.pop %v1639
          %v1667 = vmul.f32 1.0, %v1666
          %v1668 = vrcp.pop %v1640
          %v1669 = vmul.f32 1.0, %v1668
          %v1670 = vrcp.pop %v1641
          %v1671 = vmul.f32 1.0, %v1670
          %v1672 = vrcp.pop %v1642
          %v1673 = vmul.f32 1.0, %v1672
          %v1674 = vrcp.pop %v1643
          %v1675 = vmul.f32 1.0, %v1674
          %v1676 = vld [vmem:[#allocation4] sm:$0xff]
          %v1677 = vld [vmem:[#allocation4 + $0x8] sm:$0xff]
          %v1678 = vld [vmem:[#allocation4 + $0x10] sm:$0xff]
          %v1679 = vld [vmem:[#allocation4 + $0x18] sm:$0xff]
          %v1680 = vld [vmem:[#allocation4 + $0x20] sm:$0xff]
          %v1681 = vld [vmem:[#allocation4 + $0x28] sm:$0xff]
          %v1682 = vld [vmem:[#allocation4 + $0x30] sm:$0xff]
          %v1683 = vld [vmem:[#allocation4 + $0x38] sm:$0xff]
          %v1684 = vld [vmem:[#allocation4 + $0x40] sm:$0xff]
          %v1685 = vld [vmem:[#allocation4 + $0x48] sm:$0xff]
          %v1686 = vld [vmem:[#allocation4 + $0x50] sm:$0xff]
          %v1687 = vld [vmem:[#allocation4 + $0x58] sm:$0xff]
          %v1688 = vld [vmem:[#allocation4 + $0x60] sm:$0xff]
          %v1689 = vld [vmem:[#allocation4 + $0x68] sm:$0xff]
          %v1690 = vld [vmem:[#allocation4 + $0x70] sm:$0xff]
          %v1691 = vld [vmem:[#allocation4 + $0x78] sm:$0xff]
          %1693 = vset.pattern.permute.xlu0 0
          %1694 = vperm.xlu0 %1693, %v1645
          %v1695 = vpop.permute.xlu0 %1694
          %1698 = vset.pattern.permute.xlu0 0
          %1699 = vperm.xlu0 %1698, %v1647
          %v1700 = vpop.permute.xlu0 %1699
          %1703 = vset.pattern.permute.xlu0 0
          %1704 = vperm.xlu0 %1703, %v1649
          %v1705 = vpop.permute.xlu0 %1704
          %1708 = vset.pattern.permute.xlu0 0
          %1709 = vperm.xlu0 %1708, %v1651
          %v1710 = vpop.permute.xlu0 %1709
          %1713 = vset.pattern.permute.xlu0 0
          %1714 = vperm.xlu0 %1713, %v1653
          %v1715 = vpop.permute.xlu0 %1714
          %1718 = vset.pattern.permute.xlu0 0
          %1719 = vperm.xlu0 %1718, %v1655
          %v1720 = vpop.permute.xlu0 %1719
          %1723 = vset.pattern.permute.xlu0 0
          %1724 = vperm.xlu0 %1723, %v1657
          %v1725 = vpop.permute.xlu0 %1724
          %1728 = vset.pattern.permute.xlu0 0
          %1729 = vperm.xlu0 %1728, %v1659
          %v1730 = vpop.permute.xlu0 %1729
          %1733 = vset.pattern.permute.xlu0 0
          %1734 = vperm.xlu0 %1733, %v1661
          %v1735 = vpop.permute.xlu0 %1734
          %1738 = vset.pattern.permute.xlu0 0
          %1739 = vperm.xlu0 %1738, %v1663
          %v1740 = vpop.permute.xlu0 %1739
          %1743 = vset.pattern.permute.xlu0 0
          %1744 = vperm.xlu0 %1743, %v1665
          %v1745 = vpop.permute.xlu0 %1744
          %1748 = vset.pattern.permute.xlu0 0
          %1749 = vperm.xlu0 %1748, %v1667
          %v1750 = vpop.permute.xlu0 %1749
          %1753 = vset.pattern.permute.xlu0 0
          %1754 = vperm.xlu0 %1753, %v1669
          %v1755 = vpop.permute.xlu0 %1754
          %1758 = vset.pattern.permute.xlu0 0
          %1759 = vperm.xlu0 %1758, %v1671
          %v1760 = vpop.permute.xlu0 %1759
          %1763 = vset.pattern.permute.xlu0 0
          %1764 = vperm.xlu0 %1763, %v1673
          %v1765 = vpop.permute.xlu0 %1764
          %1768 = vset.pattern.permute.xlu0 0
          %1769 = vperm.xlu0 %1768, %v1675
          %v1770 = vpop.permute.xlu0 %1769
          %v1772 = vmul.f32 %v1676, %v1695
          %v1773 = vmul.f32 %v1677, %v1700
          %v1774 = vmul.f32 %v1678, %v1705
          %v1775 = vmul.f32 %v1679, %v1710
          %v1776 = vmul.f32 %v1680, %v1715
          %v1777 = vmul.f32 %v1681, %v1720
          %v1778 = vmul.f32 %v1682, %v1725
          %v1779 = vmul.f32 %v1683, %v1730
          %v1780 = vmul.f32 %v1684, %v1735
          %v1781 = vmul.f32 %v1685, %v1740
          %v1782 = vmul.f32 %v1686, %v1745
          %v1783 = vmul.f32 %v1687, %v1750
          %v1784 = vmul.f32 %v1688, %v1755
          %v1785 = vmul.f32 %v1689, %v1760
          %v1786 = vmul.f32 %v1690, %v1765
          %v1787 = vmul.f32 %v1691, %v1770
          %v1788 = vpack.c.bf16 %v1773, %v1772
          %v1789 = vpack.c.bf16 %v1775, %v1774
          %v1790 = vpack.c.bf16 %v1777, %v1776
          %v1791 = vpack.c.bf16 %v1779, %v1778
          %v1792 = vpack.c.bf16 %v1781, %v1780
          %v1793 = vpack.c.bf16 %v1783, %v1782
          %v1794 = vpack.c.bf16 %v1785, %v1784
          %v1795 = vpack.c.bf16 %v1787, %v1786
          %v1796 = vld [vmem:[#allocation5] sm:$0xff]
          %v1797 = vld [vmem:[#allocation5 + $0x8] sm:$0xff]
          %v1798 = vld [vmem:[#allocation5 + $0x10] sm:$0xff]
          %v1799 = vld [vmem:[#allocation5 + $0x18] sm:$0xff]
          %v1800 = vld [vmem:[#allocation5 + $0x20] sm:$0xff]
          %v1801 = vld [vmem:[#allocation5 + $0x28] sm:$0xff]
          %v1802 = vld [vmem:[#allocation5 + $0x30] sm:$0xff]
          %v1803 = vld [vmem:[#allocation5 + $0x38] sm:$0xff]
          %v1804 = vld [vmem:[#allocation5 + $0x40] sm:$0xff]
          %v1805 = vld [vmem:[#allocation5 + $0x48] sm:$0xff]
          %v1806 = vld [vmem:[#allocation5 + $0x50] sm:$0xff]
          %v1807 = vld [vmem:[#allocation5 + $0x58] sm:$0xff]
          %v1808 = vld [vmem:[#allocation5 + $0x60] sm:$0xff]
          %v1809 = vld [vmem:[#allocation5 + $0x68] sm:$0xff]
          %v1810 = vld [vmem:[#allocation5 + $0x70] sm:$0xff]
          %v1811 = vld [vmem:[#allocation5 + $0x78] sm:$0xff]
          %v1812 = vld [vmem:[#allocation5 + $0x80] sm:$0xff]
          %v1813 = vld [vmem:[#allocation5 + $0x88] sm:$0xff]
          %v1814 = vld [vmem:[#allocation5 + $0x90] sm:$0xff]
          %v1815 = vld [vmem:[#allocation5 + $0x98] sm:$0xff]
          %v1816 = vld [vmem:[#allocation5 + $0xa0] sm:$0xff]
          %v1817 = vld [vmem:[#allocation5 + $0xa8] sm:$0xff]
          %v1818 = vld [vmem:[#allocation5 + $0xb0] sm:$0xff]
          %v1819 = vld [vmem:[#allocation5 + $0xb8] sm:$0xff]
          %v1820 = vld [vmem:[#allocation5 + $0xc0] sm:$0xff]
          %v1821 = vld [vmem:[#allocation5 + $0xc8] sm:$0xff]
          %v1822 = vld [vmem:[#allocation5 + $0xd0] sm:$0xff]
          %v1823 = vld [vmem:[#allocation5 + $0xd8] sm:$0xff]
          %v1824 = vld [vmem:[#allocation5 + $0xe0] sm:$0xff]
          %v1825 = vld [vmem:[#allocation5 + $0xe8] sm:$0xff]
          %v1826 = vld [vmem:[#allocation5 + $0xf0] sm:$0xff]
          %v1827 = vld [vmem:[#allocation5 + $0xf8] sm:$0xff]
          %v1828 = vld [vmem:[%s640] sm:$0xff]
          %v1829 = vld [vmem:[%s640 + $0x8] sm:$0xff]
          %v1830 = vld [vmem:[%s640 + $0x10] sm:$0xff]
          %v1831 = vld [vmem:[%s640 + $0x18] sm:$0xff]
          %v1832 = vld [vmem:[%s640 + $0x20] sm:$0xff]
          %v1833 = vld [vmem:[%s640 + $0x28] sm:$0xff]
          %v1834 = vld [vmem:[%s640 + $0x30] sm:$0xff]
          %v1835 = vld [vmem:[%s640 + $0x38] sm:$0xff]
          %v1836 = vld [vmem:[%s640 + $0x40] sm:$0xff]
          %v1837 = vld [vmem:[%s640 + $0x48] sm:$0xff]
          %v1838 = vld [vmem:[%s640 + $0x50] sm:$0xff]
          %v1839 = vld [vmem:[%s640 + $0x58] sm:$0xff]
          %v1840 = vld [vmem:[%s640 + $0x60] sm:$0xff]
          %v1841 = vld [vmem:[%s640 + $0x68] sm:$0xff]
          %v1842 = vld [vmem:[%s640 + $0x70] sm:$0xff]
          %v1843 = vld [vmem:[%s640 + $0x78] sm:$0xff]
          %v1860 = vunpack.c.l.b16 %v1828
          %v1861 = vunpack.c.h.b16 %v1828
          %v1862 = vunpack.c.l.b16 %v1829
          %v1863 = vunpack.c.h.b16 %v1829
          %v1864 = vunpack.c.l.b16 %v1830
          %v1865 = vunpack.c.h.b16 %v1830
          %v1866 = vunpack.c.l.b16 %v1831
          %v1867 = vunpack.c.h.b16 %v1831
          %v1868 = vunpack.c.l.b16 %v1832
          %v1869 = vunpack.c.h.b16 %v1832
          %v1870 = vunpack.c.l.b16 %v1833
          %v1871 = vunpack.c.h.b16 %v1833
          %v1872 = vunpack.c.l.b16 %v1834
          %v1873 = vunpack.c.h.b16 %v1834
          %v1874 = vunpack.c.l.b16 %v1835
          %v1875 = vunpack.c.h.b16 %v1835
          %v1876 = vunpack.c.l.b16 %v1836
          %v1877 = vunpack.c.h.b16 %v1836
          %v1878 = vunpack.c.l.b16 %v1837
          %v1879 = vunpack.c.h.b16 %v1837
          %v1880 = vunpack.c.l.b16 %v1838
          %v1881 = vunpack.c.h.b16 %v1838
          %v1882 = vunpack.c.l.b16 %v1839
          %v1883 = vunpack.c.h.b16 %v1839
          %v1884 = vunpack.c.l.b16 %v1840
          %v1885 = vunpack.c.h.b16 %v1840
          %v1886 = vunpack.c.l.b16 %v1841
          %v1887 = vunpack.c.h.b16 %v1841
          %v1888 = vunpack.c.l.b16 %v1842
          %v1889 = vunpack.c.h.b16 %v1842
          %v1890 = vunpack.c.l.b16 %v1843
          %v1891 = vunpack.c.h.b16 %v1843
          %v1892 = vpack.c.b16 %v1862, %v1860
          %v1893 = vpack.c.b16 %v1863, %v1861
          %v1894 = vpack.c.b16 %v1866, %v1864
          %v1895 = vpack.c.b16 %v1867, %v1865
          %v1896 = vpack.c.b16 %v1870, %v1868
          %v1897 = vpack.c.b16 %v1871, %v1869
          %v1898 = vpack.c.b16 %v1874, %v1872
          %v1899 = vpack.c.b16 %v1875, %v1873
          %v1900 = vpack.c.b16 %v1878, %v1876
          %v1901 = vpack.c.b16 %v1879, %v1877
          %v1902 = vpack.c.b16 %v1882, %v1880
          %v1903 = vpack.c.b16 %v1883, %v1881
          %v1904 = vpack.c.b16 %v1886, %v1884
          %v1905 = vpack.c.b16 %v1887, %v1885
          %v1906 = vpack.c.b16 %v1890, %v1888
          %v1907 = vpack.c.b16 %v1891, %v1889
          %1924 = vmatprep.subr.bf16.mxu0 %v1893
          %1925 = vmatpush1.bf16.msra.mxu0 %v1892
          %1926 = vmatprep.subr.bf16.mxu0 %v1895
          %1927 = vmatpush1.bf16.msra.mxu0 %v1894
          %1928 = vmatprep.subr.bf16.mxu0 %v1897
          %1929 = vmatpush1.bf16.msra.mxu0 %v1896
          %1930 = vmatprep.subr.bf16.mxu0 %v1899
          %1931 = vmatpush1.bf16.msra.mxu0 %v1898
          %1932 = vmatprep.subr.bf16.mxu0 %v1901
          %1933 = vmatpush1.bf16.msra.mxu0 %v1900
          %1934 = vmatprep.subr.bf16.mxu0 %v1903
          %1935 = vmatpush1.bf16.msra.mxu0 %v1902
          %1936 = vmatprep.subr.bf16.mxu0 %v1905
          %1937 = vmatpush1.bf16.msra.mxu0 %v1904
          %1938 = vmatprep.subr.bf16.mxu0 %v1907
          %1939 = vmatpush1.bf16.msra.mxu0 %v1906
          %1940 = vmatprep.subr.bf16.mxu0 0
          %1941 = vmatpush1.bf16.msra.mxu0 0
          %1942 = vmatprep.subr.bf16.mxu0 0
          %1943 = vmatpush1.bf16.msra.mxu0 0
          %1944 = vmatprep.subr.bf16.mxu0 0
          %1945 = vmatpush1.bf16.msra.mxu0 0
          %1946 = vmatprep.subr.bf16.mxu0 0
          %1947 = vmatpush1.bf16.msra.mxu0 0
          %1948 = vmatprep.subr.bf16.mxu0 0
          %1949 = vmatpush1.bf16.msra.mxu0 0
          %1950 = vmatprep.subr.bf16.mxu0 0
          %1951 = vmatpush1.bf16.msra.mxu0 0
          %1952 = vmatprep.subr.bf16.mxu0 0
          %1953 = vmatpush1.bf16.msra.mxu0 0
          %1954 = vmatprep.subr.bf16.mxu0 0
          %1955 = vmatpush1.bf16.msra.mxu0 0
          %1956 = vmatprep.mubr.bf16.mxu0 0
          %1957 = vmatmul.mubr.bf16.gmra.mrb[0].mxu0 %v1788
          %v1958 = vpop.f32.mrb[0].mxu0
          %v1959 = vadd.f32 0.0, %v1958
          %v1960 = vpop.f32.mrb[0].mxu0
          %v1961 = vadd.f32 0.0, %v1960
          %v1962 = vpop.f32.mrb[0].mxu0
          %v1963 = vadd.f32 0.0, %v1962
          %v1964 = vpop.f32.mrb[0].mxu0
          %v1965 = vadd.f32 0.0, %v1964
          %1966 = vmatprep.mubr.bf16.mxu0 0
          %1967 = vmatmul.mubr.bf16.gmra.mrb[0].mxu0 %v1789
          %v1968 = vpop.f32.mrb[0].mxu0
          %v1969 = vadd.f32 0.0, %v1968
          %v1970 = vpop.f32.mrb[0].mxu0
          %v1971 = vadd.f32 0.0, %v1970
          %v1972 = vpop.f32.mrb[0].mxu0
          %v1973 = vadd.f32 0.0, %v1972
          %v1974 = vpop.f32.mrb[0].mxu0
          %v1975 = vadd.f32 0.0, %v1974
          %1976 = vmatprep.mubr.bf16.mxu0 0
          %1977 = vmatmul.mubr.bf16.gmra.mrb[0].mxu0 %v1790
          %v1978 = vpop.f32.mrb[0].mxu0
          %v1979 = vadd.f32 0.0, %v1978
          %v1980 = vpop.f32.mrb[0].mxu0
          %v1981 = vadd.f32 0.0, %v1980
          %v1982 = vpop.f32.mrb[0].mxu0
          %v1983 = vadd.f32 0.0, %v1982
          %v1984 = vpop.f32.mrb[0].mxu0
          %v1985 = vadd.f32 0.0, %v1984
          %1986 = vmatprep.mubr.bf16.mxu0 0
          %1987 = vmatmul.mubr.bf16.gmra.mrb[0].mxu0 %v1791
          %v1988 = vpop.f32.mrb[0].mxu0
          %v1989 = vadd.f32 0.0, %v1988
          %v1990 = vpop.f32.mrb[0].mxu0
          %v1991 = vadd.f32 0.0, %v1990
          %v1992 = vpop.f32.mrb[0].mxu0
          %v1993 = vadd.f32 0.0, %v1992
          %v1994 = vpop.f32.mrb[0].mxu0
          %v1995 = vadd.f32 0.0, %v1994
          %1996 = vmatprep.mubr.bf16.mxu0 0
          %1997 = vmatmul.mubr.bf16.gmra.mrb[0].mxu0 %v1792
          %v1998 = vpop.f32.mrb[0].mxu0
          %v1999 = vadd.f32 0.0, %v1998
          %v2000 = vpop.f32.mrb[0].mxu0
          %v2001 = vadd.f32 0.0, %v2000
          %v2002 = vpop.f32.mrb[0].mxu0
          %v2003 = vadd.f32 0.0, %v2002
          %v2004 = vpop.f32.mrb[0].mxu0
          %v2005 = vadd.f32 0.0, %v2004
          %2006 = vmatprep.mubr.bf16.mxu0 0
          %2007 = vmatmul.mubr.bf16.gmra.mrb[0].mxu0 %v1793
          %v2008 = vpop.f32.mrb[0].mxu0
          %v2009 = vadd.f32 0.0, %v2008
          %v2010 = vpop.f32.mrb[0].mxu0
          %v2011 = vadd.f32 0.0, %v2010
          %v2012 = vpop.f32.mrb[0].mxu0
          %v2013 = vadd.f32 0.0, %v2012
          %v2014 = vpop.f32.mrb[0].mxu0
          %v2015 = vadd.f32 0.0, %v2014
          %2016 = vmatprep.mubr.bf16.mxu0 0
          %2017 = vmatmul.mubr.bf16.gmra.mrb[0].mxu0 %v1794
          %v2018 = vpop.f32.mrb[0].mxu0
          %v2019 = vadd.f32 0.0, %v2018
          %v2020 = vpop.f32.mrb[0].mxu0
          %v2021 = vadd.f32 0.0, %v2020
          %v2022 = vpop.f32.mrb[0].mxu0
          %v2023 = vadd.f32 0.0, %v2022
          %v2024 = vpop.f32.mrb[0].mxu0
          %v2025 = vadd.f32 0.0, %v2024
          %2026 = vmatprep.mubr.bf16.mxu0 0
          %2027 = vmatmul.mubr.bf16.gmra.mrb[0].mxu0 %v1795
          %v2028 = vpop.f32.mrb[0].mxu0
          %v2029 = vadd.f32 0.0, %v2028
          %v2030 = vpop.f32.mrb[0].mxu0
          %v2031 = vadd.f32 0.0, %v2030
          %v2032 = vpop.f32.mrb[0].mxu0
          %v2033 = vadd.f32 0.0, %v2032
          %v2034 = vpop.f32.mrb[0].mxu0
          %v2035 = vadd.f32 0.0, %v2034
          %2036 = vdwg.mxu0
          %v2037 = vadd.f32 %v1796, %v1959
          %v2038 = vadd.f32 %v1797, %v1961
          %v2039 = vadd.f32 %v1798, %v1963
          %v2040 = vadd.f32 %v1799, %v1965
          %v2041 = vadd.f32 %v1800, %v1969
          %v2042 = vadd.f32 %v1801, %v1971
          %v2043 = vadd.f32 %v1802, %v1973
          %v2044 = vadd.f32 %v1803, %v1975
          %v2045 = vadd.f32 %v1804, %v1979
          %v2046 = vadd.f32 %v1805, %v1981
          %v2047 = vadd.f32 %v1806, %v1983
          %v2048 = vadd.f32 %v1807, %v1985
          %v2049 = vadd.f32 %v1808, %v1989
          %v2050 = vadd.f32 %v1809, %v1991
          %v2051 = vadd.f32 %v1810, %v1993
          %v2052 = vadd.f32 %v1811, %v1995
          %v2053 = vadd.f32 %v1812, %v1999
          %v2054 = vadd.f32 %v1813, %v2001
          %v2055 = vadd.f32 %v1814, %v2003
          %v2056 = vadd.f32 %v1815, %v2005
          %v2057 = vadd.f32 %v1816, %v2009
          %v2058 = vadd.f32 %v1817, %v2011
          %v2059 = vadd.f32 %v1818, %v2013
          %v2060 = vadd.f32 %v1819, %v2015
          %v2061 = vadd.f32 %v1820, %v2019
          %v2062 = vadd.f32 %v1821, %v2021
          %v2063 = vadd.f32 %v1822, %v2023
          %v2064 = vadd.f32 %v1823, %v2025
          %v2065 = vadd.f32 %v1824, %v2029
          %v2066 = vadd.f32 %v1825, %v2031
          %v2067 = vadd.f32 %v1826, %v2033
          %v2068 = vadd.f32 %v1827, %v2035
          %2069 = vst [vmem:[#allocation5] sm:$0xff] %v2037
          %2070 = vst [vmem:[#allocation5 + $0x8] sm:$0xff] %v2038
          %2071 = vst [vmem:[#allocation5 + $0x10] sm:$0xff] %v2039
          %2072 = vst [vmem:[#allocation5 + $0x18] sm:$0xff] %v2040
          %2073 = vst [vmem:[#allocation5 + $0x20] sm:$0xff] %v2041
          %2074 = vst [vmem:[#allocation5 + $0x28] sm:$0xff] %v2042
          %2075 = vst [vmem:[#allocation5 + $0x30] sm:$0xff] %v2043
          %2076 = vst [vmem:[#allocation5 + $0x38] sm:$0xff] %v2044
          %2077 = vst [vmem:[#allocation5 + $0x40] sm:$0xff] %v2045
          %2078 = vst [vmem:[#allocation5 + $0x48] sm:$0xff] %v2046
          %2079 = vst [vmem:[#allocation5 + $0x50] sm:$0xff] %v2047
          %2080 = vst [vmem:[#allocation5 + $0x58] sm:$0xff] %v2048
          %2081 = vst [vmem:[#allocation5 + $0x60] sm:$0xff] %v2049
          %2082 = vst [vmem:[#allocation5 + $0x68] sm:$0xff] %v2050
          %2083 = vst [vmem:[#allocation5 + $0x70] sm:$0xff] %v2051
          %2084 = vst [vmem:[#allocation5 + $0x78] sm:$0xff] %v2052
          %2085 = vst [vmem:[#allocation5 + $0x80] sm:$0xff] %v2053
          %2086 = vst [vmem:[#allocation5 + $0x88] sm:$0xff] %v2054
          %2087 = vst [vmem:[#allocation5 + $0x90] sm:$0xff] %v2055
          %2088 = vst [vmem:[#allocation5 + $0x98] sm:$0xff] %v2056
          %2089 = vst [vmem:[#allocation5 + $0xa0] sm:$0xff] %v2057
          %2090 = vst [vmem:[#allocation5 + $0xa8] sm:$0xff] %v2058
          %2091 = vst [vmem:[#allocation5 + $0xb0] sm:$0xff] %v2059
          %2092 = vst [vmem:[#allocation5 + $0xb8] sm:$0xff] %v2060
          %2093 = vst [vmem:[#allocation5 + $0xc0] sm:$0xff] %v2061
          %2094 = vst [vmem:[#allocation5 + $0xc8] sm:$0xff] %v2062
          %2095 = vst [vmem:[#allocation5 + $0xd0] sm:$0xff] %v2063
          %2096 = vst [vmem:[#allocation5 + $0xd8] sm:$0xff] %v2064
          %2097 = vst [vmem:[#allocation5 + $0xe0] sm:$0xff] %v2065
          %2098 = vst [vmem:[#allocation5 + $0xe8] sm:$0xff] %v2066
          %2099 = vst [vmem:[#allocation5 + $0xf0] sm:$0xff] %v2067
          %2100 = vst [vmem:[#allocation5 + $0xf8] sm:$0xff] %v2068
        $region171: #{sdp_attention_forward.3} parent=146 // pred_fallthru
          _
        %p2101 = scmp.eq.s32.totalorder %s26, 1
        %p2102 = pnand %p2101, %p645
        %p2103 = pneg %p2102
        // Predicated region
        $region172: #{sdp_attention_forward.3} parent=146 // pred_check
          _
        $region173: #{sdp_attention_forward.3} parent=146 // pred_check_branch
          %2105 = sbr.rel (%p2102) target = $region175
        $region174: #{sdp_attention_forward.3} parent=146 // pred_region
          %v2106 = vld [vmem:[#allocation5] sm:$0xff]
          %v2107 = vld [vmem:[#allocation5 + $0x8] sm:$0xff]
          %v2108 = vld [vmem:[#allocation5 + $0x10] sm:$0xff]
          %v2109 = vld [vmem:[#allocation5 + $0x18] sm:$0xff]
          %v2110 = vld [vmem:[#allocation5 + $0x20] sm:$0xff]
          %v2111 = vld [vmem:[#allocation5 + $0x28] sm:$0xff]
          %v2112 = vld [vmem:[#allocation5 + $0x30] sm:$0xff]
          %v2113 = vld [vmem:[#allocation5 + $0x38] sm:$0xff]
          %v2114 = vld [vmem:[#allocation5 + $0x40] sm:$0xff]
          %v2115 = vld [vmem:[#allocation5 + $0x48] sm:$0xff]
          %v2116 = vld [vmem:[#allocation5 + $0x50] sm:$0xff]
          %v2117 = vld [vmem:[#allocation5 + $0x58] sm:$0xff]
          %v2118 = vld [vmem:[#allocation5 + $0x60] sm:$0xff]
          %v2119 = vld [vmem:[#allocation5 + $0x68] sm:$0xff]
          %v2120 = vld [vmem:[#allocation5 + $0x70] sm:$0xff]
          %v2121 = vld [vmem:[#allocation5 + $0x78] sm:$0xff]
          %v2122 = vld [vmem:[#allocation5 + $0x80] sm:$0xff]
          %v2123 = vld [vmem:[#allocation5 + $0x88] sm:$0xff]
          %v2124 = vld [vmem:[#allocation5 + $0x90] sm:$0xff]
          %v2125 = vld [vmem:[#allocation5 + $0x98] sm:$0xff]
          %v2126 = vld [vmem:[#allocation5 + $0xa0] sm:$0xff]
          %v2127 = vld [vmem:[#allocation5 + $0xa8] sm:$0xff]
          %v2128 = vld [vmem:[#allocation5 + $0xb0] sm:$0xff]
          %v2129 = vld [vmem:[#allocation5 + $0xb8] sm:$0xff]
          %v2130 = vld [vmem:[#allocation5 + $0xc0] sm:$0xff]
          %v2131 = vld [vmem:[#allocation5 + $0xc8] sm:$0xff]
          %v2132 = vld [vmem:[#allocation5 + $0xd0] sm:$0xff]
          %v2133 = vld [vmem:[#allocation5 + $0xd8] sm:$0xff]
          %v2134 = vld [vmem:[#allocation5 + $0xe0] sm:$0xff]
          %v2135 = vld [vmem:[#allocation5 + $0xe8] sm:$0xff]
          %v2136 = vld [vmem:[#allocation5 + $0xf0] sm:$0xff]
          %v2137 = vld [vmem:[#allocation5 + $0xf8] sm:$0xff]
          %2138 = vst [vmem:[%s626] sm:$0xff] %v2106
          %2139 = vst [vmem:[%s626 + $0x8] sm:$0xff] %v2107
          %2140 = vst [vmem:[%s626 + $0x10] sm:$0xff] %v2108
          %2141 = vst [vmem:[%s626 + $0x18] sm:$0xff] %v2109
          %2142 = vst [vmem:[%s626 + $0x20] sm:$0xff] %v2110
          %2143 = vst [vmem:[%s626 + $0x28] sm:$0xff] %v2111
          %2144 = vst [vmem:[%s626 + $0x30] sm:$0xff] %v2112
          %2145 = vst [vmem:[%s626 + $0x38] sm:$0xff] %v2113
          %2146 = vst [vmem:[%s626 + $0x40] sm:$0xff] %v2114
          %2147 = vst [vmem:[%s626 + $0x48] sm:$0xff] %v2115
          %2148 = vst [vmem:[%s626 + $0x50] sm:$0xff] %v2116
          %2149 = vst [vmem:[%s626 + $0x58] sm:$0xff] %v2117
          %2150 = vst [vmem:[%s626 + $0x60] sm:$0xff] %v2118
          %2151 = vst [vmem:[%s626 + $0x68] sm:$0xff] %v2119
          %2152 = vst [vmem:[%s626 + $0x70] sm:$0xff] %v2120
          %2153 = vst [vmem:[%s626 + $0x78] sm:$0xff] %v2121
          %2154 = vst [vmem:[%s626 + $0x80] sm:$0xff] %v2122
          %2155 = vst [vmem:[%s626 + $0x88] sm:$0xff] %v2123
          %2156 = vst [vmem:[%s626 + $0x90] sm:$0xff] %v2124
          %2157 = vst [vmem:[%s626 + $0x98] sm:$0xff] %v2125
          %2158 = vst [vmem:[%s626 + $0xa0] sm:$0xff] %v2126
          %2159 = vst [vmem:[%s626 + $0xa8] sm:$0xff] %v2127
          %2160 = vst [vmem:[%s626 + $0xb0] sm:$0xff] %v2128
          %2161 = vst [vmem:[%s626 + $0xb8] sm:$0xff] %v2129
          %2162 = vst [vmem:[%s626 + $0xc0] sm:$0xff] %v2130
          %2163 = vst [vmem:[%s626 + $0xc8] sm:$0xff] %v2131
          %2164 = vst [vmem:[%s626 + $0xd0] sm:$0xff] %v2132
          %2165 = vst [vmem:[%s626 + $0xd8] sm:$0xff] %v2133
          %2166 = vst [vmem:[%s626 + $0xe0] sm:$0xff] %v2134
          %2167 = vst [vmem:[%s626 + $0xe8] sm:$0xff] %v2135
          %2168 = vst [vmem:[%s626 + $0xf0] sm:$0xff] %v2136
          %2169 = vst [vmem:[%s626 + $0xf8] sm:$0xff] %v2137
        $region175: #{sdp_attention_forward.3} parent=146 // pred_fallthru
          _
        %s2170 = sand.u32 %s180, 1
        %s2171 = scalar_lea.sflag [#allocation10], %s2170
        %s2172 = sand.u32 %s180, 1
        %s2173 = smul.addr %s2172, 256
        %s2174 = scalar_lea.vmem [#allocation9], %s2173
        // Predicated region
        $region176: #{sdp_attention_forward.3} parent=146 // pred_check
          %p2175 = pneg %p190
        $region177: #{sdp_attention_forward.3} parent=146 // pred_check_branch
          %2177 = sbr.rel (%p2175) target = $region179
        $region178: #{sdp_attention_forward.3} parent=146 // pred_region
          %s2178 = smul.u32 16, %s25
          %s2180 = ssub.s32 4096, 4096
          %2181 = vsyncadd %s2171, %s2180
          %s2182 = smul.addr %s2178, 2
          %s2183 = smul.addr %s24, 32
          %s2184 = sadd.s32 %s2182, %s2183
          %s2185 = smul.addr %s2184, 128
          %s2186 = scalar_lea.hbm %s4, %s2185
          %s2187 = sshll.u32 %s2174, 4
          %s2188 = int_to_ptr.vmem [resolvable:$true] %s2187
          %2193 = dma.vmem_to_hbm [thread:$0]  %s2188, 4096, %s2186, %s2171, 256, 256, 16
        $region179: #{sdp_attention_forward.3} parent=146 // pred_fallthru
          _
      $region147: #{sdp_attention_forward.3} parent=5 // pred_fallthru
        _
      %p2194 = scmp.le.s32.totalorder 2, %s13
      // Predicated region
      $region180: #{sdp_attention_forward.3} parent=5 // pred_check
        %p2195 = pneg %p2194
      $region181: #{sdp_attention_forward.3} parent=5 // pred_check_branch
        %2197 = sbr.rel (%p2195) target = $region183
      $region182: #{sdp_attention_forward.3} parent=5 // pred_region
        %s2198 = ssub.s32 %s13, 2
        // Predicated region
        $region184: #{sdp_attention_forward.3} parent=182 // pred_check
          %p2199 = pneg %p196
        $region185: #{sdp_attention_forward.3} parent=182 // pred_check_branch
          %2201 = sbr.rel (%p2199) target = $region187
        $region186: #{sdp_attention_forward.3} parent=182 // pred_region
          %s2202 = sand.u32 %s181, 1
          %s2203 = scalar_lea.sflag [#allocation10], %s2202
          %s2204 = sand.u32 %s181, 1
          %s2205 = smul.addr %s2204, 256
          %s2206 = scalar_lea.vmem [#allocation9], %s2205
          %2207 = dma.done %s2203, 4096
        $region187: #{sdp_attention_forward.3} parent=182 // pred_fallthru
          _
      $region183: #{sdp_attention_forward.3} parent=5 // pred_fallthru
        _
    $region6: #{sdp_attention_forward.3} parent=1 // loop_footer
      %s17 = sadd.s32 1, %s13
    $region7: #{sdp_attention_forward.3} parent=1 // loop_footer_branch
      %12 = sbr.rel target = $region3
    $region8: #{sdp_attention_forward.3} parent=1 // loop_exit
      _
    %2208 = vsyncpa [#allocation10], 1
    %s2209 = scalar_lea.sflag [#allocation10], 1
    %2210 = vsyncpa %s2209, 1

// kernel: sdp_attention_forward.2
$region0: #{sdp_attention_forward.2}
  #allocation0 [shape = 'u32[]', space=smem, size = 0x4, offset = 0x4, fixed_abs, tag = 'smem constant byte address 0x4 - core index']
  #allocation1 [shape = 'u32[144,128]{1,0:T(1,128)}', space=vmem, size = 0x12000, scoped, tag = 'internal scratch']
  #allocation2 [shape = 'f32[256,384]{1,0:T(8,128)}', space=vmem, size = 0x60000, scoped, tag = 'scratch operand']
  %s0 = inlined_call_operand.vmem [shape: bf16[256,256], index: 0, kind: input, shape index: {}]
  %s1 = inlined_call_operand.vmem [shape: bf16[256,768], index: 1, kind: input, shape index: {}]
  %s2 = inlined_call_operand.vmem [shape: bf16[256,768], index: 2, kind: output, shape index: {}]
  %s3 = sld [smem:[#allocation0]]
  $region97: #{sdp_attention_forward.2} parent=0
    _
  %s5 = ssub.s32 1, %s3
  %s6 = scalar_select 0, %s5, %s3
  $region1: #{sdp_attention_forward.2} parent=0
    #allocation3 [shape = 'u8[393216]{0}', space=vmem, size = 0x60000, scoped, tag = 'input window, operand 1']
    #allocation4 [shape = 'u8[393216]{0}', space=vmem, size = 0x60000, scoped, tag = 'output window, operand 0']
    loop: start=0, step=1, limit=4
    $region2: #{sdp_attention_forward.2} parent=1 // loop_pre_header
      _
    $region3: #{sdp_attention_forward.2} parent=1 // loop_header
      %s8 = sphi 0, %s12
      %p9 = scmp.ge.s32.totalorder %s8, 4
      %s15 = sphi 0, %s34
      %s16 = sphi 0, %s30
      %s17 = sphi 0, %s26
      %s18 = sphi 0, %s15
      %s19 = sphi 0, %s16
      %s20 = sphi 0, %s17
      %s21 = sphi 0, %s18
      %s22 = sphi 0, %s19
      %s23 = sphi 0, %s20
      %s39 = sphi 0, %s41
      %s42 = sphi 0, %s39
      %s43 = sphi 0, %s42
      %s59 = sphi 0, %s43
      %s67 = sphi 0, %s69
      %s70 = sphi 0, %s67
      %s71 = sphi 0, %s70
      %s87 = sphi 0, %s71
      %s95 = sphi 0, %s97
      %s98 = sphi 0, %s95
      %s99 = sphi 0, %s98
      %s115 = sphi 0, %s99
    $region4: #{sdp_attention_forward.2} parent=1 // loop_header_branch
      %11 = sbr.rel (%p9) target = $region8
    $region5: #{sdp_attention_forward.2} parent=1 // loop_body
      %s13 = ssub.s32 %s8, 1
      %s14 = ssub.s32 %s8, 2
      %s24 = sadd.s32 1, %s17
      %p25 = scmp.ge.s32.totalorder %s24, 1
      %s26 = scalar_select %p25, 0, %s24
      %s27 = sadd.s32 1, %s16
      %s28 = scalar_select %p25, %s27, %s16
      %p29 = scmp.ge.s32.totalorder %s28, 2
      %s30 = scalar_select %p29, 0, %s28
      %s31 = sadd.s32 1, %s15
      %s32 = scalar_select %p29, %s31, %s15
      %p33 = scmp.ge.s32.totalorder %s32, 1
      %s34 = scalar_select %p33, 0, %s32
      %s35 = ssub.s32 %s15, %s34
      %s36 = ssub.s32 %s17, %s26
      %s37 = sor.u32 %s35, %s36
      %p38 = scmp.eq.s32.totalorder %s37, 0
      %s40 = sadd.s32 %s39, 1
      %s41 = scalar_select %p38, %s39, %s40
      %p44 = pneg %p38
      %p45 = scmp.eq.s32.totalorder %s8, 1
      %p46 = por %p44, %p45
      %p47 = scmp.ne.s32.totalorder %s39, %s42
      %p48 = scmp.eq.s32.totalorder %s8, 0
      %p49 = por %p47, %p48
      %p50 = scmp.ne.s32.totalorder %s39, %s42
      %p51 = scmp.eq.s32.totalorder %s13, 1
      %p52 = por %p50, %p51
      %p53 = scmp.ne.s32.totalorder %s42, %s43
      %p54 = scmp.eq.s32.totalorder %s13, 0
      %p55 = por %p53, %p54
      %p56 = scmp.ne.s32.totalorder %s42, %s43
      %p57 = scmp.eq.s32.totalorder %s14, 1
      %p58 = por %p56, %p57
      %p60 = scmp.ne.s32.totalorder %s43, %s59
      %p61 = scmp.eq.s32.totalorder %s14, 0
      %p62 = por %p60, %p61
      %s63 = ssub.s32 %s17, %s26
      %s64 = ssub.s32 %s16, %s30
      %s65 = sor.u32 %s63, %s64
      %p66 = scmp.eq.s32.totalorder %s65, 0
      %s68 = sadd.s32 %s67, 1
      %s69 = scalar_select %p66, %s67, %s68
      %p72 = pneg %p66
      %p73 = scmp.eq.s32.totalorder %s8, 1
      %p74 = por %p72, %p73
      %p75 = scmp.ne.s32.totalorder %s67, %s70
      %p76 = scmp.eq.s32.totalorder %s8, 0
      %p77 = por %p75, %p76
      %p78 = scmp.ne.s32.totalorder %s67, %s70
      %p79 = scmp.eq.s32.totalorder %s13, 1
      %p80 = por %p78, %p79
      %p81 = scmp.ne.s32.totalorder %s70, %s71
      %p82 = scmp.eq.s32.totalorder %s13, 0
      %p83 = por %p81, %p82
      %p84 = scmp.ne.s32.totalorder %s70, %s71
      %p85 = scmp.eq.s32.totalorder %s14, 1
      %p86 = por %p84, %p85
      %p88 = scmp.ne.s32.totalorder %s71, %s87
      %p89 = scmp.eq.s32.totalorder %s14, 0
      %p90 = por %p88, %p89
      %s91 = ssub.s32 %s15, %s34
      %s92 = ssub.s32 %s16, %s30
      %s93 = sor.u32 %s91, %s92
      %p94 = scmp.eq.s32.totalorder %s93, 0
      %s96 = sadd.s32 %s95, 1
      %s97 = scalar_select %p94, %s95, %s96
      %p100 = pneg %p94
      %p101 = scmp.eq.s32.totalorder %s8, 1
      %p102 = por %p100, %p101
      %p103 = scmp.ne.s32.totalorder %s95, %s98
      %p104 = scmp.eq.s32.totalorder %s8, 0
      %p105 = por %p103, %p104
      %p106 = scmp.ne.s32.totalorder %s95, %s98
      %p107 = scmp.eq.s32.totalorder %s13, 1
      %p108 = por %p106, %p107
      %p109 = scmp.ne.s32.totalorder %s98, %s99
      %p110 = scmp.eq.s32.totalorder %s13, 0
      %p111 = por %p109, %p110
      %p112 = scmp.ne.s32.totalorder %s98, %s99
      %p113 = scmp.eq.s32.totalorder %s14, 1
      %p114 = por %p112, %p113
      %p116 = scmp.ne.s32.totalorder %s99, %s115
      %p117 = scmp.eq.s32.totalorder %s14, 0
      %p118 = por %p116, %p117
      %p119 = scmp.le.s32.totalorder 1, %s8
      %p120 = scmp.lt.s32.totalorder %s8, 3
      %p121 = pnand %p119, %p120
      %p122 = pneg %p121
      // Predicated region
      $region9: #{sdp_attention_forward.2} parent=5 // pred_check
        _
      $region10: #{sdp_attention_forward.2} parent=5 // pred_check_branch
        %124 = sbr.rel (%p121) target = $region12
      $region11: #{sdp_attention_forward.2} parent=5 // pred_region
        %s125 = ssub.s32 %s8, 1
        // Predicated region
        $region13: #{sdp_attention_forward.2} parent=11 // pred_check
          %p126 = pneg %p55
        $region14: #{sdp_attention_forward.2} parent=11 // pred_check_branch
          %128 = sbr.rel (%p126) target = $region16
        $region15: #{sdp_attention_forward.2} parent=11 // pred_region
          %s129 = smul.u32 32, %s18
          %s130 = smul.u32 2, %s20
          %p131 = scmp.lt.s32.totalorder %s129, 31
          %s132 = scalar_select %p131, %s129, 31
          %p133 = scmp.lt.s32.totalorder %s130, 1
          %s134 = scalar_select %p133, %s130, 1
          %s135 = smul.addr %s132, 2
          %s136 = sadd.s32 %s134, %s135
          %s137 = smul.addr %s136, 4
          %s138 = scalar_lea.vmem %s0, %s137
          %s139 = smul.u32 32, %s18
          %s140 = smul.u32 2, %s20
        $region16: #{sdp_attention_forward.2} parent=11 // pred_fallthru
          _
      $region12: #{sdp_attention_forward.2} parent=5 // pred_fallthru
        _
      %p141 = scmp.lt.s32.totalorder %s8, 2
      // Predicated region
      $region17: #{sdp_attention_forward.2} parent=5 // pred_check
        %p142 = pneg %p141
      $region18: #{sdp_attention_forward.2} parent=5 // pred_check_branch
        %144 = sbr.rel (%p142) target = $region20
      $region19: #{sdp_attention_forward.2} parent=5 // pred_region
        // Predicated region
        $region21: #{sdp_attention_forward.2} parent=19 // pred_check
          %p145 = pneg %p77
        $region22: #{sdp_attention_forward.2} parent=19 // pred_check_branch
          %147 = sbr.rel (%p145) target = $region24
        $region23: #{sdp_attention_forward.2} parent=19 // pred_region
          %s148 = sand.u32 %s67, 1
          %s149 = sand.u32 %s67, 1
          %s150 = smul.addr %s149, 384
          %s151 = scalar_lea.vmem [#allocation3], %s150
          %s152 = smul.u32 32, %s17
          %s153 = smul.u32 3, %s16
          %s154 = smul.addr %s152, 6
          %s155 = sadd.s32 %s153, %s154
          %s156 = smul.addr %s155, 4
          %s157 = scalar_lea.vmem %s1, %s156
          // Predicated region
          $region25: #{sdp_attention_forward.2} parent=23 // pred_check
            _
          $region26: #{sdp_attention_forward.2} parent=23 // pred_check_branch
            %159 = sbr.rel (0) target = $region28
          $region27: #{sdp_attention_forward.2} parent=23 // pred_region
            // Predicated region
            $region29: #{sdp_attention_forward.2} parent=27 // pred_check
              _
            $region30: #{sdp_attention_forward.2} parent=27 // pred_check_branch
              %161 = sbr.rel (0) target = $region32
            $region31: #{sdp_attention_forward.2} parent=27 // pred_region
              %s162 = scalar_lea.vmem %s157, 8
              %s163 = scalar_lea.vmem %s151, 8 [#allocation3]
              loop: start=0, step=1, limit=1
              $region33: #{sdp_attention_forward.2} parent=31 // loop_pre_header
                _
              $region34: #{sdp_attention_forward.2} parent=31 // loop_header
                %s165 = sphi 0, %s169
                %p166 = scmp.ge.s32.totalorder %s165, 1
                %s170 = sphi %s157, %s157
                %s171 = sphi %s151, %s151
              $region35: #{sdp_attention_forward.2} parent=31 // loop_header_branch
                %168 = sbr.rel (%p166) target = $region39
              $region36: #{sdp_attention_forward.2} parent=31 // loop_body
                %v172 = vld [vmem:[%s170] sm:$0xff]
                %173 = vst [vmem:[%s171] sm:$0xff] %v172
                %v174 = vld [vmem:[%s170 + $0x18] sm:$0xff]
                %175 = vst [vmem:[%s171 + $0xc] sm:$0xff] %v174
                %v176 = vld [vmem:[%s170 + $0x30] sm:$0xff]
                %177 = vst [vmem:[%s171 + $0x18] sm:$0xff] %v176
                %v178 = vld [vmem:[%s170 + $0x48] sm:$0xff]
                %179 = vst [vmem:[%s171 + $0x24] sm:$0xff] %v178
                %v180 = vld [vmem:[%s170 + $0x60] sm:$0xff]
                %181 = vst [vmem:[%s171 + $0x30] sm:$0xff] %v180
                %v182 = vld [vmem:[%s170 + $0x78] sm:$0xff]
                %183 = vst [vmem:[%s171 + $0x3c] sm:$0xff] %v182
                %v184 = vld [vmem:[%s170 + $0x90] sm:$0xff]
                %185 = vst [vmem:[%s171 + $0x48] sm:$0xff] %v184
                %v186 = vld [vmem:[%s170 + $0xa8] sm:$0xff]
                %187 = vst [vmem:[%s171 + $0x54] sm:$0xff] %v186
                %v188 = vld [vmem:[%s170 + $0xc0] sm:$0xff]
                %189 = vst [vmem:[%s171 + $0x60] sm:$0xff] %v188
                %v190 = vld [vmem:[%s170 + $0xd8] sm:$0xff]
                %191 = vst [vmem:[%s171 + $0x6c] sm:$0xff] %v190
                %v192 = vld [vmem:[%s170 + $0xf0] sm:$0xff]
                %193 = vst [vmem:[%s171 + $0x78] sm:$0xff] %v192
                %v194 = vld [vmem:[%s170 + $0x108] sm:$0xff]
                %195 = vst [vmem:[%s171 + $0x84] sm:$0xff] %v194
                %v196 = vld [vmem:[%s170 + $0x120] sm:$0xff]
                %197 = vst [vmem:[%s171 + $0x90] sm:$0xff] %v196
                %v198 = vld [vmem:[%s170 + $0x138] sm:$0xff]
                %199 = vst [vmem:[%s171 + $0x9c] sm:$0xff] %v198
                %v200 = vld [vmem:[%s170 + $0x150] sm:$0xff]
                %201 = vst [vmem:[%s171 + $0xa8] sm:$0xff] %v200
                %v202 = vld [vmem:[%s170 + $0x168] sm:$0xff]
                %203 = vst [vmem:[%s171 + $0xb4] sm:$0xff] %v202
                %v204 = vld [vmem:[%s170 + $0x180] sm:$0xff]
                %205 = vst [vmem:[%s171 + $0xc0] sm:$0xff] %v204
                %v206 = vld [vmem:[%s170 + $0x198] sm:$0xff]
                %207 = vst [vmem:[%s171 + $0xcc] sm:$0xff] %v206
                %v208 = vld [vmem:[%s170 + $0x1b0] sm:$0xff]
                %209 = vst [vmem:[%s171 + $0xd8] sm:$0xff] %v208
                %v210 = vld [vmem:[%s170 + $0x1c8] sm:$0xff]
                %211 = vst [vmem:[%s171 + $0xe4] sm:$0xff] %v210
                %v212 = vld [vmem:[%s170 + $0x1e0] sm:$0xff]
                %213 = vst [vmem:[%s171 + $0xf0] sm:$0xff] %v212
                %v214 = vld [vmem:[%s170 + $0x1f8] sm:$0xff]
                %215 = vst [vmem:[%s171 + $0xfc] sm:$0xff] %v214
                %v216 = vld [vmem:[%s170 + $0x210] sm:$0xff]
                %217 = vst [vmem:[%s171 + $0x108] sm:$0xff] %v216
                %v218 = vld [vmem:[%s170 + $0x228] sm:$0xff]
                %219 = vst [vmem:[%s171 + $0x114] sm:$0xff] %v218
                %v220 = vld [vmem:[%s170 + $0x240] sm:$0xff]
                %221 = vst [vmem:[%s171 + $0x120] sm:$0xff] %v220
                %v222 = vld [vmem:[%s170 + $0x258] sm:$0xff]
                %223 = vst [vmem:[%s171 + $0x12c] sm:$0xff] %v222
                %v224 = vld [vmem:[%s170 + $0x270] sm:$0xff]
                %225 = vst [vmem:[%s171 + $0x138] sm:$0xff] %v224
                %v226 = vld [vmem:[%s170 + $0x288] sm:$0xff]
                %227 = vst [vmem:[%s171 + $0x144] sm:$0xff] %v226
                %v228 = vld [vmem:[%s170 + $0x2a0] sm:$0xff]
                %229 = vst [vmem:[%s171 + $0x150] sm:$0xff] %v228
                %v230 = vld [vmem:[%s170 + $0x2b8] sm:$0xff]
                %231 = vst [vmem:[%s171 + $0x15c] sm:$0xff] %v230
                %v232 = vld [vmem:[%s170 + $0x2d0] sm:$0xff]
                %233 = vst [vmem:[%s171 + $0x168] sm:$0xff] %v232
                %v234 = vld [vmem:[%s170 + $0x2e8] sm:$0xff]
                %235 = vst [vmem:[%s171 + $0x174] sm:$0xff] %v234
              $region37: #{sdp_attention_forward.2} parent=31 // loop_footer
                %s169 = sadd.s32 1, %s165
              $region38: #{sdp_attention_forward.2} parent=31 // loop_footer_branch
                %164 = sbr.rel target = $region34
              $region39: #{sdp_attention_forward.2} parent=31 // loop_exit
                _
              loop: start=0, step=1, limit=1
              $region40: #{sdp_attention_forward.2} parent=31 // loop_pre_header
                _
              $region41: #{sdp_attention_forward.2} parent=31 // loop_header
                %s238 = sphi 0, %s242
                %p239 = scmp.ge.s32.totalorder %s238, 1
                %s243 = sphi %s162, %s162
                %s244 = sphi %s163, %s163
              $region42: #{sdp_attention_forward.2} parent=31 // loop_header_branch
                %241 = sbr.rel (%p239) target = $region46
              $region43: #{sdp_attention_forward.2} parent=31 // loop_body
                %v245 = vld [vmem:[%s243] sm:$0xf]
                %246 = vst [vmem:[%s244] sm:$0xf] %v245
                %v247 = vld [vmem:[%s243 + $0x18] sm:$0xf]
                %248 = vst [vmem:[%s244 + $0xc] sm:$0xf] %v247
                %v249 = vld [vmem:[%s243 + $0x30] sm:$0xf]
                %250 = vst [vmem:[%s244 + $0x18] sm:$0xf] %v249
                %v251 = vld [vmem:[%s243 + $0x48] sm:$0xf]
                %252 = vst [vmem:[%s244 + $0x24] sm:$0xf] %v251
                %v253 = vld [vmem:[%s243 + $0x60] sm:$0xf]
                %254 = vst [vmem:[%s244 + $0x30] sm:$0xf] %v253
                %v255 = vld [vmem:[%s243 + $0x78] sm:$0xf]
                %256 = vst [vmem:[%s244 + $0x3c] sm:$0xf] %v255
                %v257 = vld [vmem:[%s243 + $0x90] sm:$0xf]
                %258 = vst [vmem:[%s244 + $0x48] sm:$0xf] %v257
                %v259 = vld [vmem:[%s243 + $0xa8] sm:$0xf]
                %260 = vst [vmem:[%s244 + $0x54] sm:$0xf] %v259
                %v261 = vld [vmem:[%s243 + $0xc0] sm:$0xf]
                %262 = vst [vmem:[%s244 + $0x60] sm:$0xf] %v261
                %v263 = vld [vmem:[%s243 + $0xd8] sm:$0xf]
                %264 = vst [vmem:[%s244 + $0x6c] sm:$0xf] %v263
                %v265 = vld [vmem:[%s243 + $0xf0] sm:$0xf]
                %266 = vst [vmem:[%s244 + $0x78] sm:$0xf] %v265
                %v267 = vld [vmem:[%s243 + $0x108] sm:$0xf]
                %268 = vst [vmem:[%s244 + $0x84] sm:$0xf] %v267
                %v269 = vld [vmem:[%s243 + $0x120] sm:$0xf]
                %270 = vst [vmem:[%s244 + $0x90] sm:$0xf] %v269
                %v271 = vld [vmem:[%s243 + $0x138] sm:$0xf]
                %272 = vst [vmem:[%s244 + $0x9c] sm:$0xf] %v271
                %v273 = vld [vmem:[%s243 + $0x150] sm:$0xf]
                %274 = vst [vmem:[%s244 + $0xa8] sm:$0xf] %v273
                %v275 = vld [vmem:[%s243 + $0x168] sm:$0xf]
                %276 = vst [vmem:[%s244 + $0xb4] sm:$0xf] %v275
                %v277 = vld [vmem:[%s243 + $0x180] sm:$0xf]
                %278 = vst [vmem:[%s244 + $0xc0] sm:$0xf] %v277
                %v279 = vld [vmem:[%s243 + $0x198] sm:$0xf]
                %280 = vst [vmem:[%s244 + $0xcc] sm:$0xf] %v279
                %v281 = vld [vmem:[%s243 + $0x1b0] sm:$0xf]
                %282 = vst [vmem:[%s244 + $0xd8] sm:$0xf] %v281
                %v283 = vld [vmem:[%s243 + $0x1c8] sm:$0xf]
                %284 = vst [vmem:[%s244 + $0xe4] sm:$0xf] %v283
                %v285 = vld [vmem:[%s243 + $0x1e0] sm:$0xf]
                %286 = vst [vmem:[%s244 + $0xf0] sm:$0xf] %v285
                %v287 = vld [vmem:[%s243 + $0x1f8] sm:$0xf]
                %288 = vst [vmem:[%s244 + $0xfc] sm:$0xf] %v287
                %v289 = vld [vmem:[%s243 + $0x210] sm:$0xf]
                %290 = vst [vmem:[%s244 + $0x108] sm:$0xf] %v289
                %v291 = vld [vmem:[%s243 + $0x228] sm:$0xf]
                %292 = vst [vmem:[%s244 + $0x114] sm:$0xf] %v291
                %v293 = vld [vmem:[%s243 + $0x240] sm:$0xf]
                %294 = vst [vmem:[%s244 + $0x120] sm:$0xf] %v293
                %v295 = vld [vmem:[%s243 + $0x258] sm:$0xf]
                %296 = vst [vmem:[%s244 + $0x12c] sm:$0xf] %v295
                %v297 = vld [vmem:[%s243 + $0x270] sm:$0xf]
                %298 = vst [vmem:[%s244 + $0x138] sm:$0xf] %v297
                %v299 = vld [vmem:[%s243 + $0x288] sm:$0xf]
                %300 = vst [vmem:[%s244 + $0x144] sm:$0xf] %v299
                %v301 = vld [vmem:[%s243 + $0x2a0] sm:$0xf]
                %302 = vst [vmem:[%s244 + $0x150] sm:$0xf] %v301
                %v303 = vld [vmem:[%s243 + $0x2b8] sm:$0xf]
                %304 = vst [vmem:[%s244 + $0x15c] sm:$0xf] %v303
                %v305 = vld [vmem:[%s243 + $0x2d0] sm:$0xf]
                %306 = vst [vmem:[%s244 + $0x168] sm:$0xf] %v305
                %v307 = vld [vmem:[%s243 + $0x2e8] sm:$0xf]
                %308 = vst [vmem:[%s244 + $0x174] sm:$0xf] %v307
              $region44: #{sdp_attention_forward.2} parent=31 // loop_footer
                %s242 = sadd.s32 1, %s238
              $region45: #{sdp_attention_forward.2} parent=31 // loop_footer_branch
                %237 = sbr.rel target = $region41
              $region46: #{sdp_attention_forward.2} parent=31 // loop_exit
                _
            $region32: #{sdp_attention_forward.2} parent=27 // pred_fallthru
              _
          $region28: #{sdp_attention_forward.2} parent=23 // pred_fallthru
            _
          %309 = vnop
        $region24: #{sdp_attention_forward.2} parent=19 // pred_fallthru
          _
      $region20: #{sdp_attention_forward.2} parent=5 // pred_fallthru
        _
      %p310 = scmp.le.s32.totalorder 1, %s8
      %p311 = scmp.lt.s32.totalorder %s8, 3
      %p312 = pnand %p310, %p311
      %p313 = pneg %p312
      // Predicated region
      $region47: #{sdp_attention_forward.2} parent=5 // pred_check
        _
      $region48: #{sdp_attention_forward.2} parent=5 // pred_check_branch
        %315 = sbr.rel (%p312) target = $region50
      $region49: #{sdp_attention_forward.2} parent=5 // pred_region
        %s316 = ssub.s32 %s8, 1
        %s317 = sand.u32 %s70, 1
        %s318 = sand.u32 %s70, 1
        %s319 = smul.addr %s318, 384
        %s320 = scalar_lea.vmem [#allocation3], %s319
        // Predicated region
        $region51: #{sdp_attention_forward.2} parent=49 // pred_check
          %p321 = pneg %p83
        $region52: #{sdp_attention_forward.2} parent=49 // pred_check_branch
          %323 = sbr.rel (%p321) target = $region54
        $region53: #{sdp_attention_forward.2} parent=49 // pred_region
          _
        $region54: #{sdp_attention_forward.2} parent=49 // pred_fallthru
          _
        %s324 = smul.u32 32, %s18
        %s325 = smul.u32 2, %s20
        %p326 = scmp.lt.s32.totalorder %s324, 31
        %s327 = scalar_select %p326, %s324, 31
        %p328 = scmp.lt.s32.totalorder %s325, 1
        %s329 = scalar_select %p328, %s325, 1
        %s330 = smul.addr %s327, 2
        %s331 = sadd.s32 %s329, %s330
        %s332 = smul.addr %s331, 4
        %s333 = scalar_lea.vmem %s0, %s332
        %p334 = pneg %p55
        %p335 = pneg %p52
        %s336 = sand.u32 %s70, 1
        %s337 = sand.u32 %s70, 1
        %s338 = smul.addr %s337, 384
        %s339 = scalar_lea.vmem [#allocation3], %s338
        %p340 = pneg %p83
        %p341 = pneg %p80
        %p342 = pneg %p111
        %p343 = pneg %p108
        %s344 = sand.u32 %s98, 1
        %s345 = sand.u32 %s98, 1
        %s346 = smul.addr %s345, 384
        %s347 = scalar_lea.vmem [#allocation4], %s346
        %s348 = smul.u32 32, %s18
        %s349 = smul.u32 2, %s20
        %p350 = scmp.lt.s32.totalorder %s348, 31
        %s351 = scalar_select %p350, %s348, 31
        %p352 = scmp.lt.s32.totalorder %s349, 1
        %s353 = scalar_select %p352, %s349, 1
        %s354 = smul.addr %s351, 2
        %s355 = sadd.s32 %s353, %s354
        %s356 = smul.addr %s355, 4
        %s357 = scalar_lea.vmem %s0, %s356
        %s358 = smul.u32 32, %s18
        %s359 = smul.u32 2, %s20
        %s360 = smul.u32 32, %s20
        %s361 = smul.u32 3, %s19
        %s362 = smul.u32 32, %s18
        %s363 = smul.u32 3, %s19
        %p365 = scmp.eq.s32.totalorder %s20, 0
        // Predicated region
        $region55: #{sdp_attention_forward.2} parent=49 // pred_check
          %p366 = pneg %p365
        $region56: #{sdp_attention_forward.2} parent=49 // pred_check_branch
          %368 = sbr.rel (%p366) target = $region58
        $region57: #{sdp_attention_forward.2} parent=49 // pred_region
          %369 = vst [vmem:[#allocation2] sm:$0xff] 0.0
          %370 = vst [vmem:[#allocation2 + $0x8] sm:$0xff] 0.0
          %371 = vst [vmem:[#allocation2 + $0x10] sm:$0xff] 0.0
          %372 = vst [vmem:[#allocation2 + $0x18] sm:$0xff] 0.0
          %373 = vst [vmem:[#allocation2 + $0x20] sm:$0xff] 0.0
          %374 = vst [vmem:[#allocation2 + $0x28] sm:$0xff] 0.0
          %375 = vst [vmem:[#allocation2 + $0x30] sm:$0xff] 0.0
          %376 = vst [vmem:[#allocation2 + $0x38] sm:$0xff] 0.0
          %377 = vst [vmem:[#allocation2 + $0x40] sm:$0xff] 0.0
          %378 = vst [vmem:[#allocation2 + $0x48] sm:$0xff] 0.0
          %379 = vst [vmem:[#allocation2 + $0x50] sm:$0xff] 0.0
          %380 = vst [vmem:[#allocation2 + $0x58] sm:$0xff] 0.0
          %381 = vst [vmem:[#allocation2 + $0x60] sm:$0xff] 0.0
          %382 = vst [vmem:[#allocation2 + $0x68] sm:$0xff] 0.0
          %383 = vst [vmem:[#allocation2 + $0x70] sm:$0xff] 0.0
          %384 = vst [vmem:[#allocation2 + $0x78] sm:$0xff] 0.0
          %385 = vst [vmem:[#allocation2 + $0x80] sm:$0xff] 0.0
          %386 = vst [vmem:[#allocation2 + $0x88] sm:$0xff] 0.0
          %387 = vst [vmem:[#allocation2 + $0x90] sm:$0xff] 0.0
          %388 = vst [vmem:[#allocation2 + $0x98] sm:$0xff] 0.0
          %389 = vst [vmem:[#allocation2 + $0xa0] sm:$0xff] 0.0
          %390 = vst [vmem:[#allocation2 + $0xa8] sm:$0xff] 0.0
          %391 = vst [vmem:[#allocation2 + $0xb0] sm:$0xff] 0.0
          %392 = vst [vmem:[#allocation2 + $0xb8] sm:$0xff] 0.0
          %393 = vst [vmem:[#allocation2 + $0xc0] sm:$0xff] 0.0
          %394 = vst [vmem:[#allocation2 + $0xc8] sm:$0xff] 0.0
          %395 = vst [vmem:[#allocation2 + $0xd0] sm:$0xff] 0.0
          %396 = vst [vmem:[#allocation2 + $0xd8] sm:$0xff] 0.0
          %397 = vst [vmem:[#allocation2 + $0xe0] sm:$0xff] 0.0
          %398 = vst [vmem:[#allocation2 + $0xe8] sm:$0xff] 0.0
          %399 = vst [vmem:[#allocation2 + $0xf0] sm:$0xff] 0.0
          %400 = vst [vmem:[#allocation2 + $0xf8] sm:$0xff] 0.0
          %401 = vst [vmem:[#allocation2 + $0x100] sm:$0xff] 0.0
          %402 = vst [vmem:[#allocation2 + $0x108] sm:$0xff] 0.0
          %403 = vst [vmem:[#allocation2 + $0x110] sm:$0xff] 0.0
          %404 = vst [vmem:[#allocation2 + $0x118] sm:$0xff] 0.0
          %405 = vst [vmem:[#allocation2 + $0x120] sm:$0xff] 0.0
          %406 = vst [vmem:[#allocation2 + $0x128] sm:$0xff] 0.0
          %407 = vst [vmem:[#allocation2 + $0x130] sm:$0xff] 0.0
          %408 = vst [vmem:[#allocation2 + $0x138] sm:$0xff] 0.0
          %409 = vst [vmem:[#allocation2 + $0x140] sm:$0xff] 0.0
          %410 = vst [vmem:[#allocation2 + $0x148] sm:$0xff] 0.0
          %411 = vst [vmem:[#allocation2 + $0x150] sm:$0xff] 0.0
          %412 = vst [vmem:[#allocation2 + $0x158] sm:$0xff] 0.0
          %413 = vst [vmem:[#allocation2 + $0x160] sm:$0xff] 0.0
          %414 = vst [vmem:[#allocation2 + $0x168] sm:$0xff] 0.0
          %415 = vst [vmem:[#allocation2 + $0x170] sm:$0xff] 0.0
          %416 = vst [vmem:[#allocation2 + $0x178] sm:$0xff] 0.0
          %417 = vst [vmem:[#allocation2 + $0x180] sm:$0xff] 0.0
          %418 = vst [vmem:[#allocation2 + $0x188] sm:$0xff] 0.0
          %419 = vst [vmem:[#allocation2 + $0x190] sm:$0xff] 0.0
          %420 = vst [vmem:[#allocation2 + $0x198] sm:$0xff] 0.0
          %421 = vst [vmem:[#allocation2 + $0x1a0] sm:$0xff] 0.0
          %422 = vst [vmem:[#allocation2 + $0x1a8] sm:$0xff] 0.0
          %423 = vst [vmem:[#allocation2 + $0x1b0] sm:$0xff] 0.0
          %424 = vst [vmem:[#allocation2 + $0x1b8] sm:$0xff] 0.0
          %425 = vst [vmem:[#allocation2 + $0x1c0] sm:$0xff] 0.0
          %426 = vst [vmem:[#allocation2 + $0x1c8] sm:$0xff] 0.0
          %427 = vst [vmem:[#allocation2 + $0x1d0] sm:$0xff] 0.0
          %428 = vst [vmem:[#allocation2 + $0x1d8] sm:$0xff] 0.0
          %429 = vst [vmem:[#allocation2 + $0x1e0] sm:$0xff] 0.0
          %430 = vst [vmem:[#allocation2 + $0x1e8] sm:$0xff] 0.0
          %431 = vst [vmem:[#allocation2 + $0x1f0] sm:$0xff] 0.0
          %432 = vst [vmem:[#allocation2 + $0x1f8] sm:$0xff] 0.0
          %433 = vst [vmem:[#allocation2 + $0x200] sm:$0xff] 0.0
          %434 = vst [vmem:[#allocation2 + $0x208] sm:$0xff] 0.0
          %435 = vst [vmem:[#allocation2 + $0x210] sm:$0xff] 0.0
          %436 = vst [vmem:[#allocation2 + $0x218] sm:$0xff] 0.0
          %437 = vst [vmem:[#allocation2 + $0x220] sm:$0xff] 0.0
          %438 = vst [vmem:[#allocation2 + $0x228] sm:$0xff] 0.0
          %439 = vst [vmem:[#allocation2 + $0x230] sm:$0xff] 0.0
          %440 = vst [vmem:[#allocation2 + $0x238] sm:$0xff] 0.0
          %441 = vst [vmem:[#allocation2 + $0x240] sm:$0xff] 0.0
          %442 = vst [vmem:[#allocation2 + $0x248] sm:$0xff] 0.0
          %443 = vst [vmem:[#allocation2 + $0x250] sm:$0xff] 0.0
          %444 = vst [vmem:[#allocation2 + $0x258] sm:$0xff] 0.0
          %445 = vst [vmem:[#allocation2 + $0x260] sm:$0xff] 0.0
          %446 = vst [vmem:[#allocation2 + $0x268] sm:$0xff] 0.0
          %447 = vst [vmem:[#allocation2 + $0x270] sm:$0xff] 0.0
          %448 = vst [vmem:[#allocation2 + $0x278] sm:$0xff] 0.0
          %449 = vst [vmem:[#allocation2 + $0x280] sm:$0xff] 0.0
          %450 = vst [vmem:[#allocation2 + $0x288] sm:$0xff] 0.0
          %451 = vst [vmem:[#allocation2 + $0x290] sm:$0xff] 0.0
          %452 = vst [vmem:[#allocation2 + $0x298] sm:$0xff] 0.0
          %453 = vst [vmem:[#allocation2 + $0x2a0] sm:$0xff] 0.0
          %454 = vst [vmem:[#allocation2 + $0x2a8] sm:$0xff] 0.0
          %455 = vst [vmem:[#allocation2 + $0x2b0] sm:$0xff] 0.0
          %456 = vst [vmem:[#allocation2 + $0x2b8] sm:$0xff] 0.0
          %457 = vst [vmem:[#allocation2 + $0x2c0] sm:$0xff] 0.0
          %458 = vst [vmem:[#allocation2 + $0x2c8] sm:$0xff] 0.0
          %459 = vst [vmem:[#allocation2 + $0x2d0] sm:$0xff] 0.0
          %460 = vst [vmem:[#allocation2 + $0x2d8] sm:$0xff] 0.0
          %461 = vst [vmem:[#allocation2 + $0x2e0] sm:$0xff] 0.0
          %462 = vst [vmem:[#allocation2 + $0x2e8] sm:$0xff] 0.0
          %463 = vst [vmem:[#allocation2 + $0x2f0] sm:$0xff] 0.0
          %464 = vst [vmem:[#allocation2 + $0x2f8] sm:$0xff] 0.0
        $region58: #{sdp_attention_forward.2} parent=49 // pred_fallthru
          _
        %v465 = vld [vmem:[#allocation2] sm:$0xff]
        %v466 = vld [vmem:[#allocation2 + $0x8] sm:$0xff]
        %v467 = vld [vmem:[#allocation2 + $0x10] sm:$0xff]
        %v468 = vld [vmem:[#allocation2 + $0x18] sm:$0xff]
        %v469 = vld [vmem:[#allocation2 + $0x20] sm:$0xff]
        %v470 = vld [vmem:[#allocation2 + $0x28] sm:$0xff]
        %v471 = vld [vmem:[#allocation2 + $0x30] sm:$0xff]
        %v472 = vld [vmem:[#allocation2 + $0x38] sm:$0xff]
        %v473 = vld [vmem:[#allocation2 + $0x40] sm:$0xff]
        %v474 = vld [vmem:[#allocation2 + $0x48] sm:$0xff]
        %v475 = vld [vmem:[#allocation2 + $0x50] sm:$0xff]
        %v476 = vld [vmem:[#allocation2 + $0x58] sm:$0xff]
        %v477 = vld [vmem:[#allocation2 + $0x60] sm:$0xff]
        %v478 = vld [vmem:[#allocation2 + $0x68] sm:$0xff]
        %v479 = vld [vmem:[#allocation2 + $0x70] sm:$0xff]
        %v480 = vld [vmem:[#allocation2 + $0x78] sm:$0xff]
        %v481 = vld [vmem:[#allocation2 + $0x80] sm:$0xff]
        %v482 = vld [vmem:[#allocation2 + $0x88] sm:$0xff]
        %v483 = vld [vmem:[#allocation2 + $0x90] sm:$0xff]
        %v484 = vld [vmem:[#allocation2 + $0x98] sm:$0xff]
        %v485 = vld [vmem:[#allocation2 + $0xa0] sm:$0xff]
        %v486 = vld [vmem:[#allocation2 + $0xa8] sm:$0xff]
        %v487 = vld [vmem:[#allocation2 + $0xb0] sm:$0xff]
        %v488 = vld [vmem:[#allocation2 + $0xb8] sm:$0xff]
        %v489 = vld [vmem:[#allocation2 + $0xc0] sm:$0xff]
        %v490 = vld [vmem:[#allocation2 + $0xc8] sm:$0xff]
        %v491 = vld [vmem:[#allocation2 + $0xd0] sm:$0xff]
        %v492 = vld [vmem:[#allocation2 + $0xd8] sm:$0xff]
        %v493 = vld [vmem:[#allocation2 + $0xe0] sm:$0xff]
        %v494 = vld [vmem:[#allocation2 + $0xe8] sm:$0xff]
        %v495 = vld [vmem:[#allocation2 + $0xf0] sm:$0xff]
        %v496 = vld [vmem:[#allocation2 + $0xf8] sm:$0xff]
        %v497 = vld [vmem:[#allocation2 + $0x100] sm:$0xff]
        %v498 = vld [vmem:[#allocation2 + $0x108] sm:$0xff]
        %v499 = vld [vmem:[#allocation2 + $0x110] sm:$0xff]
        %v500 = vld [vmem:[#allocation2 + $0x118] sm:$0xff]
        %v501 = vld [vmem:[#allocation2 + $0x120] sm:$0xff]
        %v502 = vld [vmem:[#allocation2 + $0x128] sm:$0xff]
        %v503 = vld [vmem:[#allocation2 + $0x130] sm:$0xff]
        %v504 = vld [vmem:[#allocation2 + $0x138] sm:$0xff]
        %v505 = vld [vmem:[#allocation2 + $0x140] sm:$0xff]
        %v506 = vld [vmem:[#allocation2 + $0x148] sm:$0xff]
        %v507 = vld [vmem:[#allocation2 + $0x150] sm:$0xff]
        %v508 = vld [vmem:[#allocation2 + $0x158] sm:$0xff]
        %v509 = vld [vmem:[#allocation2 + $0x160] sm:$0xff]
        %v510 = vld [vmem:[#allocation2 + $0x168] sm:$0xff]
        %v511 = vld [vmem:[#allocation2 + $0x170] sm:$0xff]
        %v512 = vld [vmem:[#allocation2 + $0x178] sm:$0xff]
        %v513 = vld [vmem:[#allocation2 + $0x180] sm:$0xff]
        %v514 = vld [vmem:[#allocation2 + $0x188] sm:$0xff]
        %v515 = vld [vmem:[#allocation2 + $0x190] sm:$0xff]
        %v516 = vld [vmem:[#allocation2 + $0x198] sm:$0xff]
        %v517 = vld [vmem:[#allocation2 + $0x1a0] sm:$0xff]
        %v518 = vld [vmem:[#allocation2 + $0x1a8] sm:$0xff]
        %v519 = vld [vmem:[#allocation2 + $0x1b0] sm:$0xff]
        %v520 = vld [vmem:[#allocation2 + $0x1b8] sm:$0xff]
        %v521 = vld [vmem:[#allocation2 + $0x1c0] sm:$0xff]
        %v522 = vld [vmem:[#allocation2 + $0x1c8] sm:$0xff]
        %v523 = vld [vmem:[#allocation2 + $0x1d0] sm:$0xff]
        %v524 = vld [vmem:[#allocation2 + $0x1d8] sm:$0xff]
        %v525 = vld [vmem:[#allocation2 + $0x1e0] sm:$0xff]
        %v526 = vld [vmem:[#allocation2 + $0x1e8] sm:$0xff]
        %v527 = vld [vmem:[#allocation2 + $0x1f0] sm:$0xff]
        %v528 = vld [vmem:[#allocation2 + $0x1f8] sm:$0xff]
        %v529 = vld [vmem:[#allocation2 + $0x200] sm:$0xff]
        %v530 = vld [vmem:[#allocation2 + $0x208] sm:$0xff]
        %v531 = vld [vmem:[#allocation2 + $0x210] sm:$0xff]
        %v532 = vld [vmem:[#allocation2 + $0x218] sm:$0xff]
        %v533 = vld [vmem:[#allocation2 + $0x220] sm:$0xff]
        %v534 = vld [vmem:[#allocation2 + $0x228] sm:$0xff]
        %v535 = vld [vmem:[#allocation2 + $0x230] sm:$0xff]
        %v536 = vld [vmem:[#allocation2 + $0x238] sm:$0xff]
        %v537 = vld [vmem:[#allocation2 + $0x240] sm:$0xff]
        %v538 = vld [vmem:[#allocation2 + $0x248] sm:$0xff]
        %v539 = vld [vmem:[#allocation2 + $0x250] sm:$0xff]
        %v540 = vld [vmem:[#allocation2 + $0x258] sm:$0xff]
        %v541 = vld [vmem:[#allocation2 + $0x260] sm:$0xff]
        %v542 = vld [vmem:[#allocation2 + $0x268] sm:$0xff]
        %v543 = vld [vmem:[#allocation2 + $0x270] sm:$0xff]
        %v544 = vld [vmem:[#allocation2 + $0x278] sm:$0xff]
        %v545 = vld [vmem:[#allocation2 + $0x280] sm:$0xff]
        %v546 = vld [vmem:[#allocation2 + $0x288] sm:$0xff]
        %v547 = vld [vmem:[#allocation2 + $0x290] sm:$0xff]
        %v548 = vld [vmem:[#allocation2 + $0x298] sm:$0xff]
        %v549 = vld [vmem:[#allocation2 + $0x2a0] sm:$0xff]
        %v550 = vld [vmem:[#allocation2 + $0x2a8] sm:$0xff]
        %v551 = vld [vmem:[#allocation2 + $0x2b0] sm:$0xff]
        %v552 = vld [vmem:[#allocation2 + $0x2b8] sm:$0xff]
        %v553 = vld [vmem:[#allocation2 + $0x2c0] sm:$0xff]
        %v554 = vld [vmem:[#allocation2 + $0x2c8] sm:$0xff]
        %v555 = vld [vmem:[#allocation2 + $0x2d0] sm:$0xff]
        %v556 = vld [vmem:[#allocation2 + $0x2d8] sm:$0xff]
        %v557 = vld [vmem:[#allocation2 + $0x2e0] sm:$0xff]
        %v558 = vld [vmem:[#allocation2 + $0x2e8] sm:$0xff]
        %v559 = vld [vmem:[#allocation2 + $0x2f0] sm:$0xff]
        %v560 = vld [vmem:[#allocation2 + $0x2f8] sm:$0xff]
        %v561 = vld [vmem:[%s357] sm:$0xff]
        %v562 = vld [vmem:[%s357 + $0x8] sm:$0xff]
        %v563 = vld [vmem:[%s357 + $0x10] sm:$0xff]
        %v564 = vld [vmem:[%s357 + $0x18] sm:$0xff]
        %v565 = vld [vmem:[%s357 + $0x20] sm:$0xff]
        %v566 = vld [vmem:[%s357 + $0x28] sm:$0xff]
        %v567 = vld [vmem:[%s357 + $0x30] sm:$0xff]
        %v568 = vld [vmem:[%s357 + $0x38] sm:$0xff]
        %v569 = vld [vmem:[%s357 + $0x40] sm:$0xff]
        %v570 = vld [vmem:[%s357 + $0x48] sm:$0xff]
        %v571 = vld [vmem:[%s357 + $0x50] sm:$0xff]
        %v572 = vld [vmem:[%s357 + $0x58] sm:$0xff]
        %v573 = vld [vmem:[%s357 + $0x60] sm:$0xff]
        %v574 = vld [vmem:[%s357 + $0x68] sm:$0xff]
        %v575 = vld [vmem:[%s357 + $0x70] sm:$0xff]
        %v576 = vld [vmem:[%s357 + $0x78] sm:$0xff]
        %v577 = vld [vmem:[%s357 + $0x80] sm:$0xff]
        %v578 = vld [vmem:[%s357 + $0x88] sm:$0xff]
        %v579 = vld [vmem:[%s357 + $0x90] sm:$0xff]
        %v580 = vld [vmem:[%s357 + $0x98] sm:$0xff]
        %v581 = vld [vmem:[%s357 + $0xa0] sm:$0xff]
        %v582 = vld [vmem:[%s357 + $0xa8] sm:$0xff]
        %v583 = vld [vmem:[%s357 + $0xb0] sm:$0xff]
        %v584 = vld [vmem:[%s357 + $0xb8] sm:$0xff]
        %v585 = vld [vmem:[%s357 + $0xc0] sm:$0xff]
        %v586 = vld [vmem:[%s357 + $0xc8] sm:$0xff]
        %v587 = vld [vmem:[%s357 + $0xd0] sm:$0xff]
        %v588 = vld [vmem:[%s357 + $0xd8] sm:$0xff]
        %v589 = vld [vmem:[%s357 + $0xe0] sm:$0xff]
        %v590 = vld [vmem:[%s357 + $0xe8] sm:$0xff]
        %v591 = vld [vmem:[%s357 + $0xf0] sm:$0xff]
        %v592 = vld [vmem:[%s357 + $0xf8] sm:$0xff]
        %v593 = vld [vmem:[%s320] sm:$0xff]
        %v594 = vld [vmem:[%s320 + $0x8] sm:$0xf]
        %v595 = vld [vmem:[%s320 + $0xc] sm:$0xff]
        %v596 = vld [vmem:[%s320 + $0x14] sm:$0xf]
        %v597 = vld [vmem:[%s320 + $0x18] sm:$0xff]
        %v598 = vld [vmem:[%s320 + $0x20] sm:$0xf]
        %v599 = vld [vmem:[%s320 + $0x24] sm:$0xff]
        %v600 = vld [vmem:[%s320 + $0x2c] sm:$0xf]
        %v601 = vld [vmem:[%s320 + $0x30] sm:$0xff]
        %v602 = vld [vmem:[%s320 + $0x38] sm:$0xf]
        %v603 = vld [vmem:[%s320 + $0x3c] sm:$0xff]
        %v604 = vld [vmem:[%s320 + $0x44] sm:$0xf]
        %v605 = vld [vmem:[%s320 + $0x48] sm:$0xff]
        %v606 = vld [vmem:[%s320 + $0x50] sm:$0xf]
        %v607 = vld [vmem:[%s320 + $0x54] sm:$0xff]
        %v608 = vld [vmem:[%s320 + $0x5c] sm:$0xf]
        %v609 = vld [vmem:[%s320 + $0x60] sm:$0xff]
        %v610 = vld [vmem:[%s320 + $0x68] sm:$0xf]
        %v611 = vld [vmem:[%s320 + $0x6c] sm:$0xff]
        %v612 = vld [vmem:[%s320 + $0x74] sm:$0xf]
        %v613 = vld [vmem:[%s320 + $0x78] sm:$0xff]
        %v614 = vld [vmem:[%s320 + $0x80] sm:$0xf]
        %v615 = vld [vmem:[%s320 + $0x84] sm:$0xff]
        %v616 = vld [vmem:[%s320 + $0x8c] sm:$0xf]
        %v617 = vld [vmem:[%s320 + $0x90] sm:$0xff]
        %v618 = vld [vmem:[%s320 + $0x98] sm:$0xf]
        %v619 = vld [vmem:[%s320 + $0x9c] sm:$0xff]
        %v620 = vld [vmem:[%s320 + $0xa4] sm:$0xf]
        %v621 = vld [vmem:[%s320 + $0xa8] sm:$0xff]
        %v622 = vld [vmem:[%s320 + $0xb0] sm:$0xf]
        %v623 = vld [vmem:[%s320 + $0xb4] sm:$0xff]
        %v624 = vld [vmem:[%s320 + $0xbc] sm:$0xf]
        %v625 = vld [vmem:[%s320 + $0xc0] sm:$0xff]
        %v626 = vld [vmem:[%s320 + $0xc8] sm:$0xf]
        %v627 = vld [vmem:[%s320 + $0xcc] sm:$0xff]
        %v628 = vld [vmem:[%s320 + $0xd4] sm:$0xf]
        %v629 = vld [vmem:[%s320 + $0xd8] sm:$0xff]
        %v630 = vld [vmem:[%s320 + $0xe0] sm:$0xf]
        %v631 = vld [vmem:[%s320 + $0xe4] sm:$0xff]
        %v632 = vld [vmem:[%s320 + $0xec] sm:$0xf]
        %v633 = vld [vmem:[%s320 + $0xf0] sm:$0xff]
        %v634 = vld [vmem:[%s320 + $0xf8] sm:$0xf]
        %v635 = vld [vmem:[%s320 + $0xfc] sm:$0xff]
        %v636 = vld [vmem:[%s320 + $0x104] sm:$0xf]
        %v637 = vld [vmem:[%s320 + $0x108] sm:$0xff]
        %v638 = vld [vmem:[%s320 + $0x110] sm:$0xf]
        %v639 = vld [vmem:[%s320 + $0x114] sm:$0xff]
        %v640 = vld [vmem:[%s320 + $0x11c] sm:$0xf]
        %v641 = vld [vmem:[%s320 + $0x120] sm:$0xff]
        %v642 = vld [vmem:[%s320 + $0x128] sm:$0xf]
        %v643 = vld [vmem:[%s320 + $0x12c] sm:$0xff]
        %v644 = vld [vmem:[%s320 + $0x134] sm:$0xf]
        %v645 = vld [vmem:[%s320 + $0x138] sm:$0xff]
        %v646 = vld [vmem:[%s320 + $0x140] sm:$0xf]
        %v647 = vld [vmem:[%s320 + $0x144] sm:$0xff]
        %v648 = vld [vmem:[%s320 + $0x14c] sm:$0xf]
        %v649 = vld [vmem:[%s320 + $0x150] sm:$0xff]
        %v650 = vld [vmem:[%s320 + $0x158] sm:$0xf]
        %v651 = vld [vmem:[%s320 + $0x15c] sm:$0xff]
        %v652 = vld [vmem:[%s320 + $0x164] sm:$0xf]
        %v653 = vld [vmem:[%s320 + $0x168] sm:$0xff]
        %v654 = vld [vmem:[%s320 + $0x170] sm:$0xf]
        %v655 = vld [vmem:[%s320 + $0x174] sm:$0xff]
        %v656 = vld [vmem:[%s320 + $0x17c] sm:$0xf]
        %v689 = vunpack.c.l.b16 %v561
        %v690 = vunpack.c.h.b16 %v561
        %v691 = vunpack.c.l.b16 %v562
        %v692 = vunpack.c.h.b16 %v562
        %v693 = vunpack.c.l.b16 %v563
        %v694 = vunpack.c.h.b16 %v563
        %v695 = vunpack.c.l.b16 %v564
        %v696 = vunpack.c.h.b16 %v564
        %v697 = vunpack.c.l.b16 %v565
        %v698 = vunpack.c.h.b16 %v565
        %v699 = vunpack.c.l.b16 %v566
        %v700 = vunpack.c.h.b16 %v566
        %v701 = vunpack.c.l.b16 %v567
        %v702 = vunpack.c.h.b16 %v567
        %v703 = vunpack.c.l.b16 %v568
        %v704 = vunpack.c.h.b16 %v568
        %v705 = vunpack.c.l.b16 %v569
        %v706 = vunpack.c.h.b16 %v569
        %v707 = vunpack.c.l.b16 %v570
        %v708 = vunpack.c.h.b16 %v570
        %v709 = vunpack.c.l.b16 %v571
        %v710 = vunpack.c.h.b16 %v571
        %v711 = vunpack.c.l.b16 %v572
        %v712 = vunpack.c.h.b16 %v572
        %v713 = vunpack.c.l.b16 %v573
        %v714 = vunpack.c.h.b16 %v573
        %v715 = vunpack.c.l.b16 %v574
        %v716 = vunpack.c.h.b16 %v574
        %v717 = vunpack.c.l.b16 %v575
        %v718 = vunpack.c.h.b16 %v575
        %v719 = vunpack.c.l.b16 %v576
        %v720 = vunpack.c.h.b16 %v576
        %v721 = vunpack.c.l.b16 %v577
        %v722 = vunpack.c.h.b16 %v577
        %v723 = vunpack.c.l.b16 %v578
        %v724 = vunpack.c.h.b16 %v578
        %v725 = vunpack.c.l.b16 %v579
        %v726 = vunpack.c.h.b16 %v579
        %v727 = vunpack.c.l.b16 %v580
        %v728 = vunpack.c.h.b16 %v580
        %v729 = vunpack.c.l.b16 %v581
        %v730 = vunpack.c.h.b16 %v581
        %v731 = vunpack.c.l.b16 %v582
        %v732 = vunpack.c.h.b16 %v582
        %v733 = vunpack.c.l.b16 %v583
        %v734 = vunpack.c.h.b16 %v583
        %v735 = vunpack.c.l.b16 %v584
        %v736 = vunpack.c.h.b16 %v584
        %v737 = vunpack.c.l.b16 %v585
        %v738 = vunpack.c.h.b16 %v585
        %v739 = vunpack.c.l.b16 %v586
        %v740 = vunpack.c.h.b16 %v586
        %v741 = vunpack.c.l.b16 %v587
        %v742 = vunpack.c.h.b16 %v587
        %v743 = vunpack.c.l.b16 %v588
        %v744 = vunpack.c.h.b16 %v588
        %v745 = vunpack.c.l.b16 %v589
        %v746 = vunpack.c.h.b16 %v589
        %v747 = vunpack.c.l.b16 %v590
        %v748 = vunpack.c.h.b16 %v590
        %v749 = vunpack.c.l.b16 %v591
        %v750 = vunpack.c.h.b16 %v591
        %v751 = vunpack.c.l.b16 %v592
        %v752 = vunpack.c.h.b16 %v592
        %v753 = vpack.c.b16 %v691, %v689
        %v754 = vpack.c.b16 %v692, %v690
        %v755 = vpack.c.b16 %v695, %v693
        %v756 = vpack.c.b16 %v696, %v694
        %v757 = vpack.c.b16 %v699, %v697
        %v758 = vpack.c.b16 %v700, %v698
        %v759 = vpack.c.b16 %v703, %v701
        %v760 = vpack.c.b16 %v704, %v702
        %v761 = vpack.c.b16 %v707, %v705
        %v762 = vpack.c.b16 %v708, %v706
        %v763 = vpack.c.b16 %v711, %v709
        %v764 = vpack.c.b16 %v712, %v710
        %v765 = vpack.c.b16 %v715, %v713
        %v766 = vpack.c.b16 %v716, %v714
        %v767 = vpack.c.b16 %v719, %v717
        %v768 = vpack.c.b16 %v720, %v718
        %v769 = vpack.c.b16 %v723, %v721
        %v770 = vpack.c.b16 %v724, %v722
        %v771 = vpack.c.b16 %v727, %v725
        %v772 = vpack.c.b16 %v728, %v726
        %v773 = vpack.c.b16 %v731, %v729
        %v774 = vpack.c.b16 %v732, %v730
        %v775 = vpack.c.b16 %v735, %v733
        %v776 = vpack.c.b16 %v736, %v734
        %v777 = vpack.c.b16 %v739, %v737
        %v778 = vpack.c.b16 %v740, %v738
        %v779 = vpack.c.b16 %v743, %v741
        %v780 = vpack.c.b16 %v744, %v742
        %v781 = vpack.c.b16 %v747, %v745
        %v782 = vpack.c.b16 %v748, %v746
        %v783 = vpack.c.b16 %v751, %v749
        %v784 = vpack.c.b16 %v752, %v750
        %v881 = vunpack.c.l.b16 %v593
        %v882 = vunpack.c.h.b16 %v593
        %v883 = vunpack.c.l.b16 %v594
        %v884 = vunpack.c.l.b16 %v595
        %v885 = vunpack.c.h.b16 %v595
        %v886 = vunpack.c.l.b16 %v596
        %v887 = vunpack.c.l.b16 %v597
        %v888 = vunpack.c.h.b16 %v597
        %v889 = vunpack.c.l.b16 %v598
        %v890 = vunpack.c.l.b16 %v599
        %v891 = vunpack.c.h.b16 %v599
        %v892 = vunpack.c.l.b16 %v600
        %v893 = vunpack.c.l.b16 %v601
        %v894 = vunpack.c.h.b16 %v601
        %v895 = vunpack.c.l.b16 %v602
        %v896 = vunpack.c.l.b16 %v603
        %v897 = vunpack.c.h.b16 %v603
        %v898 = vunpack.c.l.b16 %v604
        %v899 = vunpack.c.l.b16 %v605
        %v900 = vunpack.c.h.b16 %v605
        %v901 = vunpack.c.l.b16 %v606
        %v902 = vunpack.c.l.b16 %v607
        %v903 = vunpack.c.h.b16 %v607
        %v904 = vunpack.c.l.b16 %v608
        %v905 = vunpack.c.l.b16 %v609
        %v906 = vunpack.c.h.b16 %v609
        %v907 = vunpack.c.l.b16 %v610
        %v908 = vunpack.c.l.b16 %v611
        %v909 = vunpack.c.h.b16 %v611
        %v910 = vunpack.c.l.b16 %v612
        %v911 = vunpack.c.l.b16 %v613
        %v912 = vunpack.c.h.b16 %v613
        %v913 = vunpack.c.l.b16 %v614
        %v914 = vunpack.c.l.b16 %v615
        %v915 = vunpack.c.h.b16 %v615
        %v916 = vunpack.c.l.b16 %v616
        %v917 = vunpack.c.l.b16 %v617
        %v918 = vunpack.c.h.b16 %v617
        %v919 = vunpack.c.l.b16 %v618
        %v920 = vunpack.c.l.b16 %v619
        %v921 = vunpack.c.h.b16 %v619
        %v922 = vunpack.c.l.b16 %v620
        %v923 = vunpack.c.l.b16 %v621
        %v924 = vunpack.c.h.b16 %v621
        %v925 = vunpack.c.l.b16 %v622
        %v926 = vunpack.c.l.b16 %v623
        %v927 = vunpack.c.h.b16 %v623
        %v928 = vunpack.c.l.b16 %v624
        %v929 = vunpack.c.l.b16 %v625
        %v930 = vunpack.c.h.b16 %v625
        %v931 = vunpack.c.l.b16 %v626
        %v932 = vunpack.c.l.b16 %v627
        %v933 = vunpack.c.h.b16 %v627
        %v934 = vunpack.c.l.b16 %v628
        %v935 = vunpack.c.l.b16 %v629
        %v936 = vunpack.c.h.b16 %v629
        %v937 = vunpack.c.l.b16 %v630
        %v938 = vunpack.c.l.b16 %v631
        %v939 = vunpack.c.h.b16 %v631
        %v940 = vunpack.c.l.b16 %v632
        %v941 = vunpack.c.l.b16 %v633
        %v942 = vunpack.c.h.b16 %v633
        %v943 = vunpack.c.l.b16 %v634
        %v944 = vunpack.c.l.b16 %v635
        %v945 = vunpack.c.h.b16 %v635
        %v946 = vunpack.c.l.b16 %v636
        %v947 = vunpack.c.l.b16 %v637
        %v948 = vunpack.c.h.b16 %v637
        %v949 = vunpack.c.l.b16 %v638
        %v950 = vunpack.c.l.b16 %v639
        %v951 = vunpack.c.h.b16 %v639
        %v952 = vunpack.c.l.b16 %v640
        %v953 = vunpack.c.l.b16 %v641
        %v954 = vunpack.c.h.b16 %v641
        %v955 = vunpack.c.l.b16 %v642
        %v956 = vunpack.c.l.b16 %v643
        %v957 = vunpack.c.h.b16 %v643
        %v958 = vunpack.c.l.b16 %v644
        %v959 = vunpack.c.l.b16 %v645
        %v960 = vunpack.c.h.b16 %v645
        %v961 = vunpack.c.l.b16 %v646
        %v962 = vunpack.c.l.b16 %v647
        %v963 = vunpack.c.h.b16 %v647
        %v964 = vunpack.c.l.b16 %v648
        %v965 = vunpack.c.l.b16 %v649
        %v966 = vunpack.c.h.b16 %v649
        %v967 = vunpack.c.l.b16 %v650
        %v968 = vunpack.c.l.b16 %v651
        %v969 = vunpack.c.h.b16 %v651
        %v970 = vunpack.c.l.b16 %v652
        %v971 = vunpack.c.l.b16 %v653
        %v972 = vunpack.c.h.b16 %v653
        %v973 = vunpack.c.l.b16 %v654
        %v974 = vunpack.c.l.b16 %v655
        %v975 = vunpack.c.h.b16 %v655
        %v976 = vunpack.c.l.b16 %v656
        %v977 = vpack.c.b16 %v884, %v881
        %v978 = vpack.c.b16 %v885, %v882
        %v979 = vpack.c.b16 %v886, %v883
        %v980 = vpack.c.b16 %v890, %v887
        %v981 = vpack.c.b16 %v891, %v888
        %v982 = vpack.c.b16 %v892, %v889
        %v983 = vpack.c.b16 %v896, %v893
        %v984 = vpack.c.b16 %v897, %v894
        %v985 = vpack.c.b16 %v898, %v895
        %v986 = vpack.c.b16 %v902, %v899
        %v987 = vpack.c.b16 %v903, %v900
        %v988 = vpack.c.b16 %v904, %v901
        %v989 = vpack.c.b16 %v908, %v905
        %v990 = vpack.c.b16 %v909, %v906
        %v991 = vpack.c.b16 %v910, %v907
        %v992 = vpack.c.b16 %v914, %v911
        %v993 = vpack.c.b16 %v915, %v912
        %v994 = vpack.c.b16 %v916, %v913
        %v995 = vpack.c.b16 %v920, %v917
        %v996 = vpack.c.b16 %v921, %v918
        %v997 = vpack.c.b16 %v922, %v919
        %v998 = vpack.c.b16 %v926, %v923
        %v999 = vpack.c.b16 %v927, %v924
        %v1000 = vpack.c.b16 %v928, %v925
        %v1001 = vpack.c.b16 %v932, %v929
        %v1002 = vpack.c.b16 %v933, %v930
        %v1003 = vpack.c.b16 %v934, %v931
        %v1004 = vpack.c.b16 %v938, %v935
        %v1005 = vpack.c.b16 %v939, %v936
        %v1006 = vpack.c.b16 %v940, %v937
        %v1007 = vpack.c.b16 %v944, %v941
        %v1008 = vpack.c.b16 %v945, %v942
        %v1009 = vpack.c.b16 %v946, %v943
        %v1010 = vpack.c.b16 %v950, %v947
        %v1011 = vpack.c.b16 %v951, %v948
        %v1012 = vpack.c.b16 %v952, %v949
        %v1013 = vpack.c.b16 %v956, %v953
        %v1014 = vpack.c.b16 %v957, %v954
        %v1015 = vpack.c.b16 %v958, %v955
        %v1016 = vpack.c.b16 %v962, %v959
        %v1017 = vpack.c.b16 %v963, %v960
        %v1018 = vpack.c.b16 %v964, %v961
        %v1019 = vpack.c.b16 %v968, %v965
        %v1020 = vpack.c.b16 %v969, %v966
        %v1021 = vpack.c.b16 %v970, %v967
        %v1022 = vpack.c.b16 %v974, %v971
        %v1023 = vpack.c.b16 %v975, %v972
        %v1024 = vpack.c.b16 %v976, %v973
        %1073 = vmatprep.subr.bf16.mxu0 %v978
        %1074 = vmatpush1.bf16.msra.mxu0 %v977
        %1075 = vmatprep.subr.bf16.mxu0 %v981
        %1076 = vmatpush1.bf16.msra.mxu0 %v980
        %1077 = vmatprep.subr.bf16.mxu0 %v984
        %1078 = vmatpush1.bf16.msra.mxu0 %v983
        %1079 = vmatprep.subr.bf16.mxu0 %v987
        %1080 = vmatpush1.bf16.msra.mxu0 %v986
        %1081 = vmatprep.subr.bf16.mxu0 %v990
        %1082 = vmatpush1.bf16.msra.mxu0 %v989
        %1083 = vmatprep.subr.bf16.mxu0 %v993
        %1084 = vmatpush1.bf16.msra.mxu0 %v992
        %1085 = vmatprep.subr.bf16.mxu0 %v996
        %1086 = vmatpush1.bf16.msra.mxu0 %v995
        %1087 = vmatprep.subr.bf16.mxu0 %v999
        %1088 = vmatpush1.bf16.msra.mxu0 %v998
        %1089 = vmatprep.subr.bf16.mxu0 %v1002
        %1090 = vmatpush1.bf16.msra.mxu0 %v1001
        %1091 = vmatprep.subr.bf16.mxu0 %v1005
        %1092 = vmatpush1.bf16.msra.mxu0 %v1004
        %1093 = vmatprep.subr.bf16.mxu0 %v1008
        %1094 = vmatpush1.bf16.msra.mxu0 %v1007
        %1095 = vmatprep.subr.bf16.mxu0 %v1011
        %1096 = vmatpush1.bf16.msra.mxu0 %v1010
        %1097 = vmatprep.subr.bf16.mxu0 %v1014
        %1098 = vmatpush1.bf16.msra.mxu0 %v1013
        %1099 = vmatprep.subr.bf16.mxu0 %v1017
        %1100 = vmatpush1.bf16.msra.mxu0 %v1016
        %1101 = vmatprep.subr.bf16.mxu0 %v1020
        %1102 = vmatpush1.bf16.msra.mxu0 %v1019
        %1103 = vmatprep.subr.bf16.mxu0 %v1023
        %1104 = vmatpush1.bf16.msra.mxu0 %v1022
        %1105 = vmatprep.mubr.bf16.mxu0 %v754
        %1106 = vmatmul.mubr.bf16.gmra.mrb[0].mxu0 %v753
        %v1107 = vpop.f32.mrb[0].mxu0
        %v1108 = vadd.f32 0.0, %v1107
        %v1109 = vpop.f32.mrb[0].mxu0
        %v1110 = vadd.f32 0.0, %v1109
        %v1111 = vpop.f32.mrb[0].mxu0
        %v1112 = vadd.f32 0.0, %v1111
        %v1113 = vpop.f32.mrb[0].mxu0
        %v1114 = vadd.f32 0.0, %v1113
        %1115 = vmatprep.mubr.bf16.mxu0 %v756
        %1116 = vmatmul.mubr.bf16.gmra.mrb[0].mxu0 %v755
        %v1117 = vpop.f32.mrb[0].mxu0
        %v1118 = vadd.f32 0.0, %v1117
        %v1119 = vpop.f32.mrb[0].mxu0
        %v1120 = vadd.f32 0.0, %v1119
        %v1121 = vpop.f32.mrb[0].mxu0
        %v1122 = vadd.f32 0.0, %v1121
        %v1123 = vpop.f32.mrb[0].mxu0
        %v1124 = vadd.f32 0.0, %v1123
        %1125 = vmatprep.mubr.bf16.mxu0 %v758
        %1126 = vmatmul.mubr.bf16.gmra.mrb[0].mxu0 %v757
        %v1127 = vpop.f32.mrb[0].mxu0
        %v1128 = vadd.f32 0.0, %v1127
        %v1129 = vpop.f32.mrb[0].mxu0
        %v1130 = vadd.f32 0.0, %v1129
        %v1131 = vpop.f32.mrb[0].mxu0
        %v1132 = vadd.f32 0.0, %v1131
        %v1133 = vpop.f32.mrb[0].mxu0
        %v1134 = vadd.f32 0.0, %v1133
        %1135 = vmatprep.mubr.bf16.mxu0 %v760
        %1136 = vmatmul.mubr.bf16.gmra.mrb[0].mxu0 %v759
        %v1137 = vpop.f32.mrb[0].mxu0
        %v1138 = vadd.f32 0.0, %v1137
        %v1139 = vpop.f32.mrb[0].mxu0
        %v1140 = vadd.f32 0.0, %v1139
        %v1141 = vpop.f32.mrb[0].mxu0
        %v1142 = vadd.f32 0.0, %v1141
        %v1143 = vpop.f32.mrb[0].mxu0
        %v1144 = vadd.f32 0.0, %v1143
        %1145 = vmatprep.mubr.bf16.mxu0 %v762
        %1146 = vmatmul.mubr.bf16.gmra.mrb[0].mxu0 %v761
        %v1147 = vpop.f32.mrb[0].mxu0
        %v1148 = vadd.f32 0.0, %v1147
        %v1149 = vpop.f32.mrb[0].mxu0
        %v1150 = vadd.f32 0.0, %v1149
        %v1151 = vpop.f32.mrb[0].mxu0
        %v1152 = vadd.f32 0.0, %v1151
        %v1153 = vpop.f32.mrb[0].mxu0
        %v1154 = vadd.f32 0.0, %v1153
        %1155 = vmatprep.mubr.bf16.mxu0 %v764
        %1156 = vmatmul.mubr.bf16.gmra.mrb[0].mxu0 %v763
        %v1157 = vpop.f32.mrb[0].mxu0
        %v1158 = vadd.f32 0.0, %v1157
        %v1159 = vpop.f32.mrb[0].mxu0
        %v1160 = vadd.f32 0.0, %v1159
        %v1161 = vpop.f32.mrb[0].mxu0
        %v1162 = vadd.f32 0.0, %v1161
        %v1163 = vpop.f32.mrb[0].mxu0
        %v1164 = vadd.f32 0.0, %v1163
        %1165 = vmatprep.mubr.bf16.mxu0 %v766
        %1166 = vmatmul.mubr.bf16.gmra.mrb[0].mxu0 %v765
        %v1167 = vpop.f32.mrb[0].mxu0
        %v1168 = vadd.f32 0.0, %v1167
        %v1169 = vpop.f32.mrb[0].mxu0
        %v1170 = vadd.f32 0.0, %v1169
        %v1171 = vpop.f32.mrb[0].mxu0
        %v1172 = vadd.f32 0.0, %v1171
        %v1173 = vpop.f32.mrb[0].mxu0
        %v1174 = vadd.f32 0.0, %v1173
        %1175 = vmatprep.mubr.bf16.mxu0 %v768
        %1176 = vmatmul.mubr.bf16.gmra.mrb[0].mxu0 %v767
        %v1177 = vpop.f32.mrb[0].mxu0
        %v1178 = vadd.f32 0.0, %v1177
        %v1179 = vpop.f32.mrb[0].mxu0
        %v1180 = vadd.f32 0.0, %v1179
        %v1181 = vpop.f32.mrb[0].mxu0
        %v1182 = vadd.f32 0.0, %v1181
        %v1183 = vpop.f32.mrb[0].mxu0
        %v1184 = vadd.f32 0.0, %v1183
        %1185 = vmatprep.mubr.bf16.mxu0 %v770
        %1186 = vmatmul.mubr.bf16.gmra.mrb[0].mxu0 %v769
        %v1187 = vpop.f32.mrb[0].mxu0
        %v1188 = vadd.f32 0.0, %v1187
        %v1189 = vpop.f32.mrb[0].mxu0
        %v1190 = vadd.f32 0.0, %v1189
        %v1191 = vpop.f32.mrb[0].mxu0
        %v1192 = vadd.f32 0.0, %v1191
        %v1193 = vpop.f32.mrb[0].mxu0
        %v1194 = vadd.f32 0.0, %v1193
        %1195 = vmatprep.mubr.bf16.mxu0 %v772
        %1196 = vmatmul.mubr.bf16.gmra.mrb[0].mxu0 %v771
        %v1197 = vpop.f32.mrb[0].mxu0
        %v1198 = vadd.f32 0.0, %v1197
        %v1199 = vpop.f32.mrb[0].mxu0
        %v1200 = vadd.f32 0.0, %v1199
        %v1201 = vpop.f32.mrb[0].mxu0
        %v1202 = vadd.f32 0.0, %v1201
        %v1203 = vpop.f32.mrb[0].mxu0
        %v1204 = vadd.f32 0.0, %v1203
        %1205 = vmatprep.mubr.bf16.mxu0 %v774
        %1206 = vmatmul.mubr.bf16.gmra.mrb[0].mxu0 %v773
        %v1207 = vpop.f32.mrb[0].mxu0
        %v1208 = vadd.f32 0.0, %v1207
        %v1209 = vpop.f32.mrb[0].mxu0
        %v1210 = vadd.f32 0.0, %v1209
        %v1211 = vpop.f32.mrb[0].mxu0
        %v1212 = vadd.f32 0.0, %v1211
        %v1213 = vpop.f32.mrb[0].mxu0
        %v1214 = vadd.f32 0.0, %v1213
        %1215 = vmatprep.mubr.bf16.mxu0 %v776
        %1216 = vmatmul.mubr.bf16.gmra.mrb[0].mxu0 %v775
        %v1217 = vpop.f32.mrb[0].mxu0
        %v1218 = vadd.f32 0.0, %v1217
        %v1219 = vpop.f32.mrb[0].mxu0
        %v1220 = vadd.f32 0.0, %v1219
        %v1221 = vpop.f32.mrb[0].mxu0
        %v1222 = vadd.f32 0.0, %v1221
        %v1223 = vpop.f32.mrb[0].mxu0
        %v1224 = vadd.f32 0.0, %v1223
        %1225 = vmatprep.mubr.bf16.mxu0 %v778
        %1226 = vmatmul.mubr.bf16.gmra.mrb[0].mxu0 %v777
        %v1227 = vpop.f32.mrb[0].mxu0
        %v1228 = vadd.f32 0.0, %v1227
        %v1229 = vpop.f32.mrb[0].mxu0
        %v1230 = vadd.f32 0.0, %v1229
        %v1231 = vpop.f32.mrb[0].mxu0
        %v1232 = vadd.f32 0.0, %v1231
        %v1233 = vpop.f32.mrb[0].mxu0
        %v1234 = vadd.f32 0.0, %v1233
        %1235 = vmatprep.mubr.bf16.mxu0 %v780
        %1236 = vmatmul.mubr.bf16.gmra.mrb[0].mxu0 %v779
        %v1237 = vpop.f32.mrb[0].mxu0
        %v1238 = vadd.f32 0.0, %v1237
        %v1239 = vpop.f32.mrb[0].mxu0
        %v1240 = vadd.f32 0.0, %v1239
        %v1241 = vpop.f32.mrb[0].mxu0
        %v1242 = vadd.f32 0.0, %v1241
        %v1243 = vpop.f32.mrb[0].mxu0
        %v1244 = vadd.f32 0.0, %v1243
        %1245 = vmatprep.mubr.bf16.mxu0 %v782
        %1246 = vmatmul.mubr.bf16.gmra.mrb[0].mxu0 %v781
        %v1247 = vpop.f32.mrb[0].mxu0
        %v1248 = vadd.f32 0.0, %v1247
        %v1249 = vpop.f32.mrb[0].mxu0
        %v1250 = vadd.f32 0.0, %v1249
        %v1251 = vpop.f32.mrb[0].mxu0
        %v1252 = vadd.f32 0.0, %v1251
        %v1253 = vpop.f32.mrb[0].mxu0
        %v1254 = vadd.f32 0.0, %v1253
        %1255 = vmatprep.mubr.bf16.mxu0 %v784
        %1256 = vmatmul.mubr.bf16.gmra.mrb[0].mxu0 %v783
        %v1257 = vpop.f32.mrb[0].mxu0
        %v1258 = vadd.f32 0.0, %v1257
        %v1259 = vpop.f32.mrb[0].mxu0
        %v1260 = vadd.f32 0.0, %v1259
        %v1261 = vpop.f32.mrb[0].mxu0
        %v1262 = vadd.f32 0.0, %v1261
        %v1263 = vpop.f32.mrb[0].mxu0
        %v1264 = vadd.f32 0.0, %v1263
        %1265 = vdwg.mxu0
        %1266 = vmatprep.subr.bf16.mxu0 0
        %1267 = vmatpush1.bf16.msra.mxu0 %v979
        %1268 = vmatprep.subr.bf16.mxu0 0
        %1269 = vmatpush1.bf16.msra.mxu0 %v982
        %1270 = vmatprep.subr.bf16.mxu0 0
        %1271 = vmatpush1.bf16.msra.mxu0 %v985
        %1272 = vmatprep.subr.bf16.mxu0 0
        %1273 = vmatpush1.bf16.msra.mxu0 %v988
        %1274 = vmatprep.subr.bf16.mxu0 0
        %1275 = vmatpush1.bf16.msra.mxu0 %v991
        %1276 = vmatprep.subr.bf16.mxu0 0
        %1277 = vmatpush1.bf16.msra.mxu0 %v994
        %1278 = vmatprep.subr.bf16.mxu0 0
        %1279 = vmatpush1.bf16.msra.mxu0 %v997
        %1280 = vmatprep.subr.bf16.mxu0 0
        %1281 = vmatpush1.bf16.msra.mxu0 %v1000
        %1282 = vmatprep.subr.bf16.mxu0 0
        %1283 = vmatpush1.bf16.msra.mxu0 %v1003
        %1284 = vmatprep.subr.bf16.mxu0 0
        %1285 = vmatpush1.bf16.msra.mxu0 %v1006
        %1286 = vmatprep.subr.bf16.mxu0 0
        %1287 = vmatpush1.bf16.msra.mxu0 %v1009
        %1288 = vmatprep.subr.bf16.mxu0 0
        %1289 = vmatpush1.bf16.msra.mxu0 %v1012
        %1290 = vmatprep.subr.bf16.mxu0 0
        %1291 = vmatpush1.bf16.msra.mxu0 %v1015
        %1292 = vmatprep.subr.bf16.mxu0 0
        %1293 = vmatpush1.bf16.msra.mxu0 %v1018
        %1294 = vmatprep.subr.bf16.mxu0 0
        %1295 = vmatpush1.bf16.msra.mxu0 %v1021
        %1296 = vmatprep.subr.bf16.mxu0 0
        %1297 = vmatpush1.bf16.msra.mxu0 %v1024
        %1298 = vmatprep.mubr.bf16.mxu0 %v754
        %1299 = vmatmul.mubr.bf16.gmra.mrb[0].mxu0 %v753
        %v1300 = vpop.f32.mrb[0].mxu0
        %v1301 = vadd.f32 0.0, %v1300
        %v1302 = vpop.f32.mrb[0].mxu0
        %v1303 = vpop.f32.mrb[0].mxu0
        %v1304 = vadd.f32 0.0, %v1303
        %v1305 = vpop.f32.mrb[0].mxu0
        %1306 = vmatprep.mubr.bf16.mxu0 %v756
        %1307 = vmatmul.mubr.bf16.gmra.mrb[0].mxu0 %v755
        %v1308 = vpop.f32.mrb[0].mxu0
        %v1309 = vadd.f32 0.0, %v1308
        %v1310 = vpop.f32.mrb[0].mxu0
        %v1311 = vpop.f32.mrb[0].mxu0
        %v1312 = vadd.f32 0.0, %v1311
        %v1313 = vpop.f32.mrb[0].mxu0
        %1314 = vmatprep.mubr.bf16.mxu0 %v758
        %1315 = vmatmul.mubr.bf16.gmra.mrb[0].mxu0 %v757
        %v1316 = vpop.f32.mrb[0].mxu0
        %v1317 = vadd.f32 0.0, %v1316
        %v1318 = vpop.f32.mrb[0].mxu0
        %v1319 = vpop.f32.mrb[0].mxu0
        %v1320 = vadd.f32 0.0, %v1319
        %v1321 = vpop.f32.mrb[0].mxu0
        %1322 = vmatprep.mubr.bf16.mxu0 %v760
        %1323 = vmatmul.mubr.bf16.gmra.mrb[0].mxu0 %v759
        %v1324 = vpop.f32.mrb[0].mxu0
        %v1325 = vadd.f32 0.0, %v1324
        %v1326 = vpop.f32.mrb[0].mxu0
        %v1327 = vpop.f32.mrb[0].mxu0
        %v1328 = vadd.f32 0.0, %v1327
        %v1329 = vpop.f32.mrb[0].mxu0
        %1330 = vmatprep.mubr.bf16.mxu0 %v762
        %1331 = vmatmul.mubr.bf16.gmra.mrb[0].mxu0 %v761
        %v1332 = vpop.f32.mrb[0].mxu0
        %v1333 = vadd.f32 0.0, %v1332
        %v1334 = vpop.f32.mrb[0].mxu0
        %v1335 = vpop.f32.mrb[0].mxu0
        %v1336 = vadd.f32 0.0, %v1335
        %v1337 = vpop.f32.mrb[0].mxu0
        %1338 = vmatprep.mubr.bf16.mxu0 %v764
        %1339 = vmatmul.mubr.bf16.gmra.mrb[0].mxu0 %v763
        %v1340 = vpop.f32.mrb[0].mxu0
        %v1341 = vadd.f32 0.0, %v1340
        %v1342 = vpop.f32.mrb[0].mxu0
        %v1343 = vpop.f32.mrb[0].mxu0
        %v1344 = vadd.f32 0.0, %v1343
        %v1345 = vpop.f32.mrb[0].mxu0
        %1346 = vmatprep.mubr.bf16.mxu0 %v766
        %1347 = vmatmul.mubr.bf16.gmra.mrb[0].mxu0 %v765
        %v1348 = vpop.f32.mrb[0].mxu0
        %v1349 = vadd.f32 0.0, %v1348
        %v1350 = vpop.f32.mrb[0].mxu0
        %v1351 = vpop.f32.mrb[0].mxu0
        %v1352 = vadd.f32 0.0, %v1351
        %v1353 = vpop.f32.mrb[0].mxu0
        %1354 = vmatprep.mubr.bf16.mxu0 %v768
        %1355 = vmatmul.mubr.bf16.gmra.mrb[0].mxu0 %v767
        %v1356 = vpop.f32.mrb[0].mxu0
        %v1357 = vadd.f32 0.0, %v1356
        %v1358 = vpop.f32.mrb[0].mxu0
        %v1359 = vpop.f32.mrb[0].mxu0
        %v1360 = vadd.f32 0.0, %v1359
        %v1361 = vpop.f32.mrb[0].mxu0
        %1362 = vmatprep.mubr.bf16.mxu0 %v770
        %1363 = vmatmul.mubr.bf16.gmra.mrb[0].mxu0 %v769
        %v1364 = vpop.f32.mrb[0].mxu0
        %v1365 = vadd.f32 0.0, %v1364
        %v1366 = vpop.f32.mrb[0].mxu0
        %v1367 = vpop.f32.mrb[0].mxu0
        %v1368 = vadd.f32 0.0, %v1367
        %v1369 = vpop.f32.mrb[0].mxu0
        %1370 = vmatprep.mubr.bf16.mxu0 %v772
        %1371 = vmatmul.mubr.bf16.gmra.mrb[0].mxu0 %v771
        %v1372 = vpop.f32.mrb[0].mxu0
        %v1373 = vadd.f32 0.0, %v1372
        %v1374 = vpop.f32.mrb[0].mxu0
        %v1375 = vpop.f32.mrb[0].mxu0
        %v1376 = vadd.f32 0.0, %v1375
        %v1377 = vpop.f32.mrb[0].mxu0
        %1378 = vmatprep.mubr.bf16.mxu0 %v774
        %1379 = vmatmul.mubr.bf16.gmra.mrb[0].mxu0 %v773
        %v1380 = vpop.f32.mrb[0].mxu0
        %v1381 = vadd.f32 0.0, %v1380
        %v1382 = vpop.f32.mrb[0].mxu0
        %v1383 = vpop.f32.mrb[0].mxu0
        %v1384 = vadd.f32 0.0, %v1383
        %v1385 = vpop.f32.mrb[0].mxu0
        %1386 = vmatprep.mubr.bf16.mxu0 %v776
        %1387 = vmatmul.mubr.bf16.gmra.mrb[0].mxu0 %v775
        %v1388 = vpop.f32.mrb[0].mxu0
        %v1389 = vadd.f32 0.0, %v1388
        %v1390 = vpop.f32.mrb[0].mxu0
        %v1391 = vpop.f32.mrb[0].mxu0
        %v1392 = vadd.f32 0.0, %v1391
        %v1393 = vpop.f32.mrb[0].mxu0
        %1394 = vmatprep.mubr.bf16.mxu0 %v778
        %1395 = vmatmul.mubr.bf16.gmra.mrb[0].mxu0 %v777
        %v1396 = vpop.f32.mrb[0].mxu0
        %v1397 = vadd.f32 0.0, %v1396
        %v1398 = vpop.f32.mrb[0].mxu0
        %v1399 = vpop.f32.mrb[0].mxu0
        %v1400 = vadd.f32 0.0, %v1399
        %v1401 = vpop.f32.mrb[0].mxu0
        %1402 = vmatprep.mubr.bf16.mxu0 %v780
        %1403 = vmatmul.mubr.bf16.gmra.mrb[0].mxu0 %v779
        %v1404 = vpop.f32.mrb[0].mxu0
        %v1405 = vadd.f32 0.0, %v1404
        %v1406 = vpop.f32.mrb[0].mxu0
        %v1407 = vpop.f32.mrb[0].mxu0
        %v1408 = vadd.f32 0.0, %v1407
        %v1409 = vpop.f32.mrb[0].mxu0
        %1410 = vmatprep.mubr.bf16.mxu0 %v782
        %1411 = vmatmul.mubr.bf16.gmra.mrb[0].mxu0 %v781
        %v1412 = vpop.f32.mrb[0].mxu0
        %v1413 = vadd.f32 0.0, %v1412
        %v1414 = vpop.f32.mrb[0].mxu0
        %v1415 = vpop.f32.mrb[0].mxu0
        %v1416 = vadd.f32 0.0, %v1415
        %v1417 = vpop.f32.mrb[0].mxu0
        %1418 = vmatprep.mubr.bf16.mxu0 %v784
        %1419 = vmatmul.mubr.bf16.gmra.mrb[0].mxu0 %v783
        %v1420 = vpop.f32.mrb[0].mxu0
        %v1421 = vadd.f32 0.0, %v1420
        %v1422 = vpop.f32.mrb[0].mxu0
        %v1423 = vpop.f32.mrb[0].mxu0
        %v1424 = vadd.f32 0.0, %v1423
        %v1425 = vpop.f32.mrb[0].mxu0
        %1426 = vdwg.mxu0
        %v1427 = vadd.f32 %v465, %v1108
        %v1428 = vadd.f32 %v466, %v1110
        %v1429 = vadd.f32 %v467, %v1301
        %v1430 = vadd.f32 %v468, %v1112
        %v1431 = vadd.f32 %v469, %v1114
        %v1432 = vadd.f32 %v470, %v1304
        %v1433 = vadd.f32 %v471, %v1118
        %v1434 = vadd.f32 %v472, %v1120
        %v1435 = vadd.f32 %v473, %v1309
        %v1436 = vadd.f32 %v474, %v1122
        %v1437 = vadd.f32 %v475, %v1124
        %v1438 = vadd.f32 %v476, %v1312
        %v1439 = vadd.f32 %v477, %v1128
        %v1440 = vadd.f32 %v478, %v1130
        %v1441 = vadd.f32 %v479, %v1317
        %v1442 = vadd.f32 %v480, %v1132
        %v1443 = vadd.f32 %v481, %v1134
        %v1444 = vadd.f32 %v482, %v1320
        %v1445 = vadd.f32 %v483, %v1138
        %v1446 = vadd.f32 %v484, %v1140
        %v1447 = vadd.f32 %v485, %v1325
        %v1448 = vadd.f32 %v486, %v1142
        %v1449 = vadd.f32 %v487, %v1144
        %v1450 = vadd.f32 %v488, %v1328
        %v1451 = vadd.f32 %v489, %v1148
        %v1452 = vadd.f32 %v490, %v1150
        %v1453 = vadd.f32 %v491, %v1333
        %v1454 = vadd.f32 %v492, %v1152
        %v1455 = vadd.f32 %v493, %v1154
        %v1456 = vadd.f32 %v494, %v1336
        %v1457 = vadd.f32 %v495, %v1158
        %v1458 = vadd.f32 %v496, %v1160
        %v1459 = vadd.f32 %v497, %v1341
        %v1460 = vadd.f32 %v498, %v1162
        %v1461 = vadd.f32 %v499, %v1164
        %v1462 = vadd.f32 %v500, %v1344
        %v1463 = vadd.f32 %v501, %v1168
        %v1464 = vadd.f32 %v502, %v1170
        %v1465 = vadd.f32 %v503, %v1349
        %v1466 = vadd.f32 %v504, %v1172
        %v1467 = vadd.f32 %v505, %v1174
        %v1468 = vadd.f32 %v506, %v1352
        %v1469 = vadd.f32 %v507, %v1178
        %v1470 = vadd.f32 %v508, %v1180
        %v1471 = vadd.f32 %v509, %v1357
        %v1472 = vadd.f32 %v510, %v1182
        %v1473 = vadd.f32 %v511, %v1184
        %v1474 = vadd.f32 %v512, %v1360
        %v1475 = vadd.f32 %v513, %v1188
        %v1476 = vadd.f32 %v514, %v1190
        %v1477 = vadd.f32 %v515, %v1365
        %v1478 = vadd.f32 %v516, %v1192
        %v1479 = vadd.f32 %v517, %v1194
        %v1480 = vadd.f32 %v518, %v1368
        %v1481 = vadd.f32 %v519, %v1198
        %v1482 = vadd.f32 %v520, %v1200
        %v1483 = vadd.f32 %v521, %v1373
        %v1484 = vadd.f32 %v522, %v1202
        %v1485 = vadd.f32 %v523, %v1204
        %v1486 = vadd.f32 %v524, %v1376
        %v1487 = vadd.f32 %v525, %v1208
        %v1488 = vadd.f32 %v526, %v1210
        %v1489 = vadd.f32 %v527, %v1381
        %v1490 = vadd.f32 %v528, %v1212
        %v1491 = vadd.f32 %v529, %v1214
        %v1492 = vadd.f32 %v530, %v1384
        %v1493 = vadd.f32 %v531, %v1218
        %v1494 = vadd.f32 %v532, %v1220
        %v1495 = vadd.f32 %v533, %v1389
        %v1496 = vadd.f32 %v534, %v1222
        %v1497 = vadd.f32 %v535, %v1224
        %v1498 = vadd.f32 %v536, %v1392
        %v1499 = vadd.f32 %v537, %v1228
        %v1500 = vadd.f32 %v538, %v1230
        %v1501 = vadd.f32 %v539, %v1397
        %v1502 = vadd.f32 %v540, %v1232
        %v1503 = vadd.f32 %v541, %v1234
        %v1504 = vadd.f32 %v542, %v1400
        %v1505 = vadd.f32 %v543, %v1238
        %v1506 = vadd.f32 %v544, %v1240
        %v1507 = vadd.f32 %v545, %v1405
        %v1508 = vadd.f32 %v546, %v1242
        %v1509 = vadd.f32 %v547, %v1244
        %v1510 = vadd.f32 %v548, %v1408
        %v1511 = vadd.f32 %v549, %v1248
        %v1512 = vadd.f32 %v550, %v1250
        %v1513 = vadd.f32 %v551, %v1413
        %v1514 = vadd.f32 %v552, %v1252
        %v1515 = vadd.f32 %v553, %v1254
        %v1516 = vadd.f32 %v554, %v1416
        %v1517 = vadd.f32 %v555, %v1258
        %v1518 = vadd.f32 %v556, %v1260
        %v1519 = vadd.f32 %v557, %v1421
        %v1520 = vadd.f32 %v558, %v1262
        %v1521 = vadd.f32 %v559, %v1264
        %v1522 = vadd.f32 %v560, %v1424
        %1523 = vst [vmem:[#allocation2] sm:$0xff] %v1427
        %1524 = vst [vmem:[#allocation2 + $0x8] sm:$0xff] %v1428
        %1525 = vst [vmem:[#allocation2 + $0x10] sm:$0xff] %v1429
        %1526 = vst [vmem:[#allocation2 + $0x18] sm:$0xff] %v1430
        %1527 = vst [vmem:[#allocation2 + $0x20] sm:$0xff] %v1431
        %1528 = vst [vmem:[#allocation2 + $0x28] sm:$0xff] %v1432
        %1529 = vst [vmem:[#allocation2 + $0x30] sm:$0xff] %v1433
        %1530 = vst [vmem:[#allocation2 + $0x38] sm:$0xff] %v1434
        %1531 = vst [vmem:[#allocation2 + $0x40] sm:$0xff] %v1435
        %1532 = vst [vmem:[#allocation2 + $0x48] sm:$0xff] %v1436
        %1533 = vst [vmem:[#allocation2 + $0x50] sm:$0xff] %v1437
        %1534 = vst [vmem:[#allocation2 + $0x58] sm:$0xff] %v1438
        %1535 = vst [vmem:[#allocation2 + $0x60] sm:$0xff] %v1439
        %1536 = vst [vmem:[#allocation2 + $0x68] sm:$0xff] %v1440
        %1537 = vst [vmem:[#allocation2 + $0x70] sm:$0xff] %v1441
        %1538 = vst [vmem:[#allocation2 + $0x78] sm:$0xff] %v1442
        %1539 = vst [vmem:[#allocation2 + $0x80] sm:$0xff] %v1443
        %1540 = vst [vmem:[#allocation2 + $0x88] sm:$0xff] %v1444
        %1541 = vst [vmem:[#allocation2 + $0x90] sm:$0xff] %v1445
        %1542 = vst [vmem:[#allocation2 + $0x98] sm:$0xff] %v1446
        %1543 = vst [vmem:[#allocation2 + $0xa0] sm:$0xff] %v1447
        %1544 = vst [vmem:[#allocation2 + $0xa8] sm:$0xff] %v1448
        %1545 = vst [vmem:[#allocation2 + $0xb0] sm:$0xff] %v1449
        %1546 = vst [vmem:[#allocation2 + $0xb8] sm:$0xff] %v1450
        %1547 = vst [vmem:[#allocation2 + $0xc0] sm:$0xff] %v1451
        %1548 = vst [vmem:[#allocation2 + $0xc8] sm:$0xff] %v1452
        %1549 = vst [vmem:[#allocation2 + $0xd0] sm:$0xff] %v1453
        %1550 = vst [vmem:[#allocation2 + $0xd8] sm:$0xff] %v1454
        %1551 = vst [vmem:[#allocation2 + $0xe0] sm:$0xff] %v1455
        %1552 = vst [vmem:[#allocation2 + $0xe8] sm:$0xff] %v1456
        %1553 = vst [vmem:[#allocation2 + $0xf0] sm:$0xff] %v1457
        %1554 = vst [vmem:[#allocation2 + $0xf8] sm:$0xff] %v1458
        %1555 = vst [vmem:[#allocation2 + $0x100] sm:$0xff] %v1459
        %1556 = vst [vmem:[#allocation2 + $0x108] sm:$0xff] %v1460
        %1557 = vst [vmem:[#allocation2 + $0x110] sm:$0xff] %v1461
        %1558 = vst [vmem:[#allocation2 + $0x118] sm:$0xff] %v1462
        %1559 = vst [vmem:[#allocation2 + $0x120] sm:$0xff] %v1463
        %1560 = vst [vmem:[#allocation2 + $0x128] sm:$0xff] %v1464
        %1561 = vst [vmem:[#allocation2 + $0x130] sm:$0xff] %v1465
        %1562 = vst [vmem:[#allocation2 + $0x138] sm:$0xff] %v1466
        %1563 = vst [vmem:[#allocation2 + $0x140] sm:$0xff] %v1467
        %1564 = vst [vmem:[#allocation2 + $0x148] sm:$0xff] %v1468
        %1565 = vst [vmem:[#allocation2 + $0x150] sm:$0xff] %v1469
        %1566 = vst [vmem:[#allocation2 + $0x158] sm:$0xff] %v1470
        %1567 = vst [vmem:[#allocation2 + $0x160] sm:$0xff] %v1471
        %1568 = vst [vmem:[#allocation2 + $0x168] sm:$0xff] %v1472
        %1569 = vst [vmem:[#allocation2 + $0x170] sm:$0xff] %v1473
        %1570 = vst [vmem:[#allocation2 + $0x178] sm:$0xff] %v1474
        %1571 = vst [vmem:[#allocation2 + $0x180] sm:$0xff] %v1475
        %1572 = vst [vmem:[#allocation2 + $0x188] sm:$0xff] %v1476
        %1573 = vst [vmem:[#allocation2 + $0x190] sm:$0xff] %v1477
        %1574 = vst [vmem:[#allocation2 + $0x198] sm:$0xff] %v1478
        %1575 = vst [vmem:[#allocation2 + $0x1a0] sm:$0xff] %v1479
        %1576 = vst [vmem:[#allocation2 + $0x1a8] sm:$0xff] %v1480
        %1577 = vst [vmem:[#allocation2 + $0x1b0] sm:$0xff] %v1481
        %1578 = vst [vmem:[#allocation2 + $0x1b8] sm:$0xff] %v1482
        %1579 = vst [vmem:[#allocation2 + $0x1c0] sm:$0xff] %v1483
        %1580 = vst [vmem:[#allocation2 + $0x1c8] sm:$0xff] %v1484
        %1581 = vst [vmem:[#allocation2 + $0x1d0] sm:$0xff] %v1485
        %1582 = vst [vmem:[#allocation2 + $0x1d8] sm:$0xff] %v1486
        %1583 = vst [vmem:[#allocation2 + $0x1e0] sm:$0xff] %v1487
        %1584 = vst [vmem:[#allocation2 + $0x1e8] sm:$0xff] %v1488
        %1585 = vst [vmem:[#allocation2 + $0x1f0] sm:$0xff] %v1489
        %1586 = vst [vmem:[#allocation2 + $0x1f8] sm:$0xff] %v1490
        %1587 = vst [vmem:[#allocation2 + $0x200] sm:$0xff] %v1491
        %1588 = vst [vmem:[#allocation2 + $0x208] sm:$0xff] %v1492
        %1589 = vst [vmem:[#allocation2 + $0x210] sm:$0xff] %v1493
        %1590 = vst [vmem:[#allocation2 + $0x218] sm:$0xff] %v1494
        %1591 = vst [vmem:[#allocation2 + $0x220] sm:$0xff] %v1495
        %1592 = vst [vmem:[#allocation2 + $0x228] sm:$0xff] %v1496
        %1593 = vst [vmem:[#allocation2 + $0x230] sm:$0xff] %v1497
        %1594 = vst [vmem:[#allocation2 + $0x238] sm:$0xff] %v1498
        %1595 = vst [vmem:[#allocation2 + $0x240] sm:$0xff] %v1499
        %1596 = vst [vmem:[#allocation2 + $0x248] sm:$0xff] %v1500
        %1597 = vst [vmem:[#allocation2 + $0x250] sm:$0xff] %v1501
        %1598 = vst [vmem:[#allocation2 + $0x258] sm:$0xff] %v1502
        %1599 = vst [vmem:[#allocation2 + $0x260] sm:$0xff] %v1503
        %1600 = vst [vmem:[#allocation2 + $0x268] sm:$0xff] %v1504
        %1601 = vst [vmem:[#allocation2 + $0x270] sm:$0xff] %v1505
        %1602 = vst [vmem:[#allocation2 + $0x278] sm:$0xff] %v1506
        %1603 = vst [vmem:[#allocation2 + $0x280] sm:$0xff] %v1507
        %1604 = vst [vmem:[#allocation2 + $0x288] sm:$0xff] %v1508
        %1605 = vst [vmem:[#allocation2 + $0x290] sm:$0xff] %v1509
        %1606 = vst [vmem:[#allocation2 + $0x298] sm:$0xff] %v1510
        %1607 = vst [vmem:[#allocation2 + $0x2a0] sm:$0xff] %v1511
        %1608 = vst [vmem:[#allocation2 + $0x2a8] sm:$0xff] %v1512
        %1609 = vst [vmem:[#allocation2 + $0x2b0] sm:$0xff] %v1513
        %1610 = vst [vmem:[#allocation2 + $0x2b8] sm:$0xff] %v1514
        %1611 = vst [vmem:[#allocation2 + $0x2c0] sm:$0xff] %v1515
        %1612 = vst [vmem:[#allocation2 + $0x2c8] sm:$0xff] %v1516
        %1613 = vst [vmem:[#allocation2 + $0x2d0] sm:$0xff] %v1517
        %1614 = vst [vmem:[#allocation2 + $0x2d8] sm:$0xff] %v1518
        %1615 = vst [vmem:[#allocation2 + $0x2e0] sm:$0xff] %v1519
        %1616 = vst [vmem:[#allocation2 + $0x2e8] sm:$0xff] %v1520
        %1617 = vst [vmem:[#allocation2 + $0x2f0] sm:$0xff] %v1521
        %1618 = vst [vmem:[#allocation2 + $0x2f8] sm:$0xff] %v1522
        // Predicated region
        $region59: #{sdp_attention_forward.2} parent=49 // pred_check
          %p1619 = pneg %p365
        $region60: #{sdp_attention_forward.2} parent=49 // pred_check_branch
          %1621 = sbr.rel (%p1619) target = $region62
        $region61: #{sdp_attention_forward.2} parent=49 // pred_region
          %v1622 = vld [vmem:[#allocation2] sm:$0xff]
          %v1623 = vld [vmem:[#allocation2 + $0x8] sm:$0xff]
          %v1624 = vld [vmem:[#allocation2 + $0x10] sm:$0xff]
          %v1625 = vld [vmem:[#allocation2 + $0x18] sm:$0xff]
          %v1626 = vld [vmem:[#allocation2 + $0x20] sm:$0xff]
          %v1627 = vld [vmem:[#allocation2 + $0x28] sm:$0xff]
          %v1628 = vld [vmem:[#allocation2 + $0x30] sm:$0xff]
          %v1629 = vld [vmem:[#allocation2 + $0x38] sm:$0xff]
          %v1630 = vld [vmem:[#allocation2 + $0x40] sm:$0xff]
          %v1631 = vld [vmem:[#allocation2 + $0x48] sm:$0xff]
          %v1632 = vld [vmem:[#allocation2 + $0x50] sm:$0xff]
          %v1633 = vld [vmem:[#allocation2 + $0x58] sm:$0xff]
          %v1634 = vld [vmem:[#allocation2 + $0x60] sm:$0xff]
          %v1635 = vld [vmem:[#allocation2 + $0x68] sm:$0xff]
          %v1636 = vld [vmem:[#allocation2 + $0x70] sm:$0xff]
          %v1637 = vld [vmem:[#allocation2 + $0x78] sm:$0xff]
          %v1638 = vld [vmem:[#allocation2 + $0x80] sm:$0xff]
          %v1639 = vld [vmem:[#allocation2 + $0x88] sm:$0xff]
          %v1640 = vld [vmem:[#allocation2 + $0x90] sm:$0xff]
          %v1641 = vld [vmem:[#allocation2 + $0x98] sm:$0xff]
          %v1642 = vld [vmem:[#allocation2 + $0xa0] sm:$0xff]
          %v1643 = vld [vmem:[#allocation2 + $0xa8] sm:$0xff]
          %v1644 = vld [vmem:[#allocation2 + $0xb0] sm:$0xff]
          %v1645 = vld [vmem:[#allocation2 + $0xb8] sm:$0xff]
          %v1646 = vld [vmem:[#allocation2 + $0xc0] sm:$0xff]
          %v1647 = vld [vmem:[#allocation2 + $0xc8] sm:$0xff]
          %v1648 = vld [vmem:[#allocation2 + $0xd0] sm:$0xff]
          %v1649 = vld [vmem:[#allocation2 + $0xd8] sm:$0xff]
          %v1650 = vld [vmem:[#allocation2 + $0xe0] sm:$0xff]
          %v1651 = vld [vmem:[#allocation2 + $0xe8] sm:$0xff]
          %v1652 = vld [vmem:[#allocation2 + $0xf0] sm:$0xff]
          %v1653 = vld [vmem:[#allocation2 + $0xf8] sm:$0xff]
          %v1654 = vld [vmem:[#allocation2 + $0x100] sm:$0xff]
          %v1655 = vld [vmem:[#allocation2 + $0x108] sm:$0xff]
          %v1656 = vld [vmem:[#allocation2 + $0x110] sm:$0xff]
          %v1657 = vld [vmem:[#allocation2 + $0x118] sm:$0xff]
          %v1658 = vld [vmem:[#allocation2 + $0x120] sm:$0xff]
          %v1659 = vld [vmem:[#allocation2 + $0x128] sm:$0xff]
          %v1660 = vld [vmem:[#allocation2 + $0x130] sm:$0xff]
          %v1661 = vld [vmem:[#allocation2 + $0x138] sm:$0xff]
          %v1662 = vld [vmem:[#allocation2 + $0x140] sm:$0xff]
          %v1663 = vld [vmem:[#allocation2 + $0x148] sm:$0xff]
          %v1664 = vld [vmem:[#allocation2 + $0x150] sm:$0xff]
          %v1665 = vld [vmem:[#allocation2 + $0x158] sm:$0xff]
          %v1666 = vld [vmem:[#allocation2 + $0x160] sm:$0xff]
          %v1667 = vld [vmem:[#allocation2 + $0x168] sm:$0xff]
          %v1668 = vld [vmem:[#allocation2 + $0x170] sm:$0xff]
          %v1669 = vld [vmem:[#allocation2 + $0x178] sm:$0xff]
          %v1670 = vld [vmem:[#allocation2 + $0x180] sm:$0xff]
          %v1671 = vld [vmem:[#allocation2 + $0x188] sm:$0xff]
          %v1672 = vld [vmem:[#allocation2 + $0x190] sm:$0xff]
          %v1673 = vld [vmem:[#allocation2 + $0x198] sm:$0xff]
          %v1674 = vld [vmem:[#allocation2 + $0x1a0] sm:$0xff]
          %v1675 = vld [vmem:[#allocation2 + $0x1a8] sm:$0xff]
          %v1676 = vld [vmem:[#allocation2 + $0x1b0] sm:$0xff]
          %v1677 = vld [vmem:[#allocation2 + $0x1b8] sm:$0xff]
          %v1678 = vld [vmem:[#allocation2 + $0x1c0] sm:$0xff]
          %v1679 = vld [vmem:[#allocation2 + $0x1c8] sm:$0xff]
          %v1680 = vld [vmem:[#allocation2 + $0x1d0] sm:$0xff]
          %v1681 = vld [vmem:[#allocation2 + $0x1d8] sm:$0xff]
          %v1682 = vld [vmem:[#allocation2 + $0x1e0] sm:$0xff]
          %v1683 = vld [vmem:[#allocation2 + $0x1e8] sm:$0xff]
          %v1684 = vld [vmem:[#allocation2 + $0x1f0] sm:$0xff]
          %v1685 = vld [vmem:[#allocation2 + $0x1f8] sm:$0xff]
          %v1686 = vld [vmem:[#allocation2 + $0x200] sm:$0xff]
          %v1687 = vld [vmem:[#allocation2 + $0x208] sm:$0xff]
          %v1688 = vld [vmem:[#allocation2 + $0x210] sm:$0xff]
          %v1689 = vld [vmem:[#allocation2 + $0x218] sm:$0xff]
          %v1690 = vld [vmem:[#allocation2 + $0x220] sm:$0xff]
          %v1691 = vld [vmem:[#allocation2 + $0x228] sm:$0xff]
          %v1692 = vld [vmem:[#allocation2 + $0x230] sm:$0xff]
          %v1693 = vld [vmem:[#allocation2 + $0x238] sm:$0xff]
          %v1694 = vld [vmem:[#allocation2 + $0x240] sm:$0xff]
          %v1695 = vld [vmem:[#allocation2 + $0x248] sm:$0xff]
          %v1696 = vld [vmem:[#allocation2 + $0x250] sm:$0xff]
          %v1697 = vld [vmem:[#allocation2 + $0x258] sm:$0xff]
          %v1698 = vld [vmem:[#allocation2 + $0x260] sm:$0xff]
          %v1699 = vld [vmem:[#allocation2 + $0x268] sm:$0xff]
          %v1700 = vld [vmem:[#allocation2 + $0x270] sm:$0xff]
          %v1701 = vld [vmem:[#allocation2 + $0x278] sm:$0xff]
          %v1702 = vld [vmem:[#allocation2 + $0x280] sm:$0xff]
          %v1703 = vld [vmem:[#allocation2 + $0x288] sm:$0xff]
          %v1704 = vld [vmem:[#allocation2 + $0x290] sm:$0xff]
          %v1705 = vld [vmem:[#allocation2 + $0x298] sm:$0xff]
          %v1706 = vld [vmem:[#allocation2 + $0x2a0] sm:$0xff]
          %v1707 = vld [vmem:[#allocation2 + $0x2a8] sm:$0xff]
          %v1708 = vld [vmem:[#allocation2 + $0x2b0] sm:$0xff]
          %v1709 = vld [vmem:[#allocation2 + $0x2b8] sm:$0xff]
          %v1710 = vld [vmem:[#allocation2 + $0x2c0] sm:$0xff]
          %v1711 = vld [vmem:[#allocation2 + $0x2c8] sm:$0xff]
          %v1712 = vld [vmem:[#allocation2 + $0x2d0] sm:$0xff]
          %v1713 = vld [vmem:[#allocation2 + $0x2d8] sm:$0xff]
          %v1714 = vld [vmem:[#allocation2 + $0x2e0] sm:$0xff]
          %v1715 = vld [vmem:[#allocation2 + $0x2e8] sm:$0xff]
          %v1716 = vld [vmem:[#allocation2 + $0x2f0] sm:$0xff]
          %v1717 = vld [vmem:[#allocation2 + $0x2f8] sm:$0xff]
          %v1718 = vpack.c.bf16 %v1625, %v1622
          %v1719 = vpack.c.bf16 %v1626, %v1623
          %v1720 = vpack.c.bf16 %v1627, %v1624
          %v1721 = vpack.c.bf16 %v1631, %v1628
          %v1722 = vpack.c.bf16 %v1632, %v1629
          %v1723 = vpack.c.bf16 %v1633, %v1630
          %v1724 = vpack.c.bf16 %v1637, %v1634
          %v1725 = vpack.c.bf16 %v1638, %v1635
          %v1726 = vpack.c.bf16 %v1639, %v1636
          %v1727 = vpack.c.bf16 %v1643, %v1640
          %v1728 = vpack.c.bf16 %v1644, %v1641
          %v1729 = vpack.c.bf16 %v1645, %v1642
          %v1730 = vpack.c.bf16 %v1649, %v1646
          %v1731 = vpack.c.bf16 %v1650, %v1647
          %v1732 = vpack.c.bf16 %v1651, %v1648
          %v1733 = vpack.c.bf16 %v1655, %v1652
          %v1734 = vpack.c.bf16 %v1656, %v1653
          %v1735 = vpack.c.bf16 %v1657, %v1654
          %v1736 = vpack.c.bf16 %v1661, %v1658
          %v1737 = vpack.c.bf16 %v1662, %v1659
          %v1738 = vpack.c.bf16 %v1663, %v1660
          %v1739 = vpack.c.bf16 %v1667, %v1664
          %v1740 = vpack.c.bf16 %v1668, %v1665
          %v1741 = vpack.c.bf16 %v1669, %v1666
          %v1742 = vpack.c.bf16 %v1673, %v1670
          %v1743 = vpack.c.bf16 %v1674, %v1671
          %v1744 = vpack.c.bf16 %v1675, %v1672
          %v1745 = vpack.c.bf16 %v1679, %v1676
          %v1746 = vpack.c.bf16 %v1680, %v1677
          %v1747 = vpack.c.bf16 %v1681, %v1678
          %v1748 = vpack.c.bf16 %v1685, %v1682
          %v1749 = vpack.c.bf16 %v1686, %v1683
          %v1750 = vpack.c.bf16 %v1687, %v1684
          %v1751 = vpack.c.bf16 %v1691, %v1688
          %v1752 = vpack.c.bf16 %v1692, %v1689
          %v1753 = vpack.c.bf16 %v1693, %v1690
          %v1754 = vpack.c.bf16 %v1697, %v1694
          %v1755 = vpack.c.bf16 %v1698, %v1695
          %v1756 = vpack.c.bf16 %v1699, %v1696
          %v1757 = vpack.c.bf16 %v1703, %v1700
          %v1758 = vpack.c.bf16 %v1704, %v1701
          %v1759 = vpack.c.bf16 %v1705, %v1702
          %v1760 = vpack.c.bf16 %v1709, %v1706
          %v1761 = vpack.c.bf16 %v1710, %v1707
          %v1762 = vpack.c.bf16 %v1711, %v1708
          %v1763 = vpack.c.bf16 %v1715, %v1712
          %v1764 = vpack.c.bf16 %v1716, %v1713
          %v1765 = vpack.c.bf16 %v1717, %v1714
          %v1814 = vunpack.c.l.b16 %v1718
          %v1815 = vunpack.c.l.b16 %v1719
          %v1816 = vunpack.c.l.b16 %v1720
          %v1817 = vunpack.c.h.b16 %v1718
          %v1818 = vunpack.c.h.b16 %v1719
          %v1819 = vunpack.c.h.b16 %v1720
          %v1820 = vunpack.c.l.b16 %v1721
          %v1821 = vunpack.c.l.b16 %v1722
          %v1822 = vunpack.c.l.b16 %v1723
          %v1823 = vunpack.c.h.b16 %v1721
          %v1824 = vunpack.c.h.b16 %v1722
          %v1825 = vunpack.c.h.b16 %v1723
          %v1826 = vunpack.c.l.b16 %v1724
          %v1827 = vunpack.c.l.b16 %v1725
          %v1828 = vunpack.c.l.b16 %v1726
          %v1829 = vunpack.c.h.b16 %v1724
          %v1830 = vunpack.c.h.b16 %v1725
          %v1831 = vunpack.c.h.b16 %v1726
          %v1832 = vunpack.c.l.b16 %v1727
          %v1833 = vunpack.c.l.b16 %v1728
          %v1834 = vunpack.c.l.b16 %v1729
          %v1835 = vunpack.c.h.b16 %v1727
          %v1836 = vunpack.c.h.b16 %v1728
          %v1837 = vunpack.c.h.b16 %v1729
          %v1838 = vunpack.c.l.b16 %v1730
          %v1839 = vunpack.c.l.b16 %v1731
          %v1840 = vunpack.c.l.b16 %v1732
          %v1841 = vunpack.c.h.b16 %v1730
          %v1842 = vunpack.c.h.b16 %v1731
          %v1843 = vunpack.c.h.b16 %v1732
          %v1844 = vunpack.c.l.b16 %v1733
          %v1845 = vunpack.c.l.b16 %v1734
          %v1846 = vunpack.c.l.b16 %v1735
          %v1847 = vunpack.c.h.b16 %v1733
          %v1848 = vunpack.c.h.b16 %v1734
          %v1849 = vunpack.c.h.b16 %v1735
          %v1850 = vunpack.c.l.b16 %v1736
          %v1851 = vunpack.c.l.b16 %v1737
          %v1852 = vunpack.c.l.b16 %v1738
          %v1853 = vunpack.c.h.b16 %v1736
          %v1854 = vunpack.c.h.b16 %v1737
          %v1855 = vunpack.c.h.b16 %v1738
          %v1856 = vunpack.c.l.b16 %v1739
          %v1857 = vunpack.c.l.b16 %v1740
          %v1858 = vunpack.c.l.b16 %v1741
          %v1859 = vunpack.c.h.b16 %v1739
          %v1860 = vunpack.c.h.b16 %v1740
          %v1861 = vunpack.c.h.b16 %v1741
          %v1862 = vunpack.c.l.b16 %v1742
          %v1863 = vunpack.c.l.b16 %v1743
          %v1864 = vunpack.c.l.b16 %v1744
          %v1865 = vunpack.c.h.b16 %v1742
          %v1866 = vunpack.c.h.b16 %v1743
          %v1867 = vunpack.c.h.b16 %v1744
          %v1868 = vunpack.c.l.b16 %v1745
          %v1869 = vunpack.c.l.b16 %v1746
          %v1870 = vunpack.c.l.b16 %v1747
          %v1871 = vunpack.c.h.b16 %v1745
          %v1872 = vunpack.c.h.b16 %v1746
          %v1873 = vunpack.c.h.b16 %v1747
          %v1874 = vunpack.c.l.b16 %v1748
          %v1875 = vunpack.c.l.b16 %v1749
          %v1876 = vunpack.c.l.b16 %v1750
          %v1877 = vunpack.c.h.b16 %v1748
          %v1878 = vunpack.c.h.b16 %v1749
          %v1879 = vunpack.c.h.b16 %v1750
          %v1880 = vunpack.c.l.b16 %v1751
          %v1881 = vunpack.c.l.b16 %v1752
          %v1882 = vunpack.c.l.b16 %v1753
          %v1883 = vunpack.c.h.b16 %v1751
          %v1884 = vunpack.c.h.b16 %v1752
          %v1885 = vunpack.c.h.b16 %v1753
          %v1886 = vunpack.c.l.b16 %v1754
          %v1887 = vunpack.c.l.b16 %v1755
          %v1888 = vunpack.c.l.b16 %v1756
          %v1889 = vunpack.c.h.b16 %v1754
          %v1890 = vunpack.c.h.b16 %v1755
          %v1891 = vunpack.c.h.b16 %v1756
          %v1892 = vunpack.c.l.b16 %v1757
          %v1893 = vunpack.c.l.b16 %v1758
          %v1894 = vunpack.c.l.b16 %v1759
          %v1895 = vunpack.c.h.b16 %v1757
          %v1896 = vunpack.c.h.b16 %v1758
          %v1897 = vunpack.c.h.b16 %v1759
          %v1898 = vunpack.c.l.b16 %v1760
          %v1899 = vunpack.c.l.b16 %v1761
          %v1900 = vunpack.c.l.b16 %v1762
          %v1901 = vunpack.c.h.b16 %v1760
          %v1902 = vunpack.c.h.b16 %v1761
          %v1903 = vunpack.c.h.b16 %v1762
          %v1904 = vunpack.c.l.b16 %v1763
          %v1905 = vunpack.c.l.b16 %v1764
          %v1906 = vunpack.c.l.b16 %v1765
          %v1907 = vunpack.c.h.b16 %v1763
          %v1908 = vunpack.c.h.b16 %v1764
          %v1909 = vunpack.c.h.b16 %v1765
          %v1910 = vpack.c.b16 %v1815, %v1814
          %v1911 = vpack.c.b16 %v1816, %v1816
          %v1912 = vpack.c.b16 %v1818, %v1817
          %v1913 = vpack.c.b16 %v1819, %v1819
          %v1914 = vpack.c.b16 %v1821, %v1820
          %v1915 = vpack.c.b16 %v1822, %v1822
          %v1916 = vpack.c.b16 %v1824, %v1823
          %v1917 = vpack.c.b16 %v1825, %v1825
          %v1918 = vpack.c.b16 %v1827, %v1826
          %v1919 = vpack.c.b16 %v1828, %v1828
          %v1920 = vpack.c.b16 %v1830, %v1829
          %v1921 = vpack.c.b16 %v1831, %v1831
          %v1922 = vpack.c.b16 %v1833, %v1832
          %v1923 = vpack.c.b16 %v1834, %v1834
          %v1924 = vpack.c.b16 %v1836, %v1835
          %v1925 = vpack.c.b16 %v1837, %v1837
          %v1926 = vpack.c.b16 %v1839, %v1838
          %v1927 = vpack.c.b16 %v1840, %v1840
          %v1928 = vpack.c.b16 %v1842, %v1841
          %v1929 = vpack.c.b16 %v1843, %v1843
          %v1930 = vpack.c.b16 %v1845, %v1844
          %v1931 = vpack.c.b16 %v1846, %v1846
          %v1932 = vpack.c.b16 %v1848, %v1847
          %v1933 = vpack.c.b16 %v1849, %v1849
          %v1934 = vpack.c.b16 %v1851, %v1850
          %v1935 = vpack.c.b16 %v1852, %v1852
          %v1936 = vpack.c.b16 %v1854, %v1853
          %v1937 = vpack.c.b16 %v1855, %v1855
          %v1938 = vpack.c.b16 %v1857, %v1856
          %v1939 = vpack.c.b16 %v1858, %v1858
          %v1940 = vpack.c.b16 %v1860, %v1859
          %v1941 = vpack.c.b16 %v1861, %v1861
          %v1942 = vpack.c.b16 %v1863, %v1862
          %v1943 = vpack.c.b16 %v1864, %v1864
          %v1944 = vpack.c.b16 %v1866, %v1865
          %v1945 = vpack.c.b16 %v1867, %v1867
          %v1946 = vpack.c.b16 %v1869, %v1868
          %v1947 = vpack.c.b16 %v1870, %v1870
          %v1948 = vpack.c.b16 %v1872, %v1871
          %v1949 = vpack.c.b16 %v1873, %v1873
          %v1950 = vpack.c.b16 %v1875, %v1874
          %v1951 = vpack.c.b16 %v1876, %v1876
          %v1952 = vpack.c.b16 %v1878, %v1877
          %v1953 = vpack.c.b16 %v1879, %v1879
          %v1954 = vpack.c.b16 %v1881, %v1880
          %v1955 = vpack.c.b16 %v1882, %v1882
          %v1956 = vpack.c.b16 %v1884, %v1883
          %v1957 = vpack.c.b16 %v1885, %v1885
          %v1958 = vpack.c.b16 %v1887, %v1886
          %v1959 = vpack.c.b16 %v1888, %v1888
          %v1960 = vpack.c.b16 %v1890, %v1889
          %v1961 = vpack.c.b16 %v1891, %v1891
          %v1962 = vpack.c.b16 %v1893, %v1892
          %v1963 = vpack.c.b16 %v1894, %v1894
          %v1964 = vpack.c.b16 %v1896, %v1895
          %v1965 = vpack.c.b16 %v1897, %v1897
          %v1966 = vpack.c.b16 %v1899, %v1898
          %v1967 = vpack.c.b16 %v1900, %v1900
          %v1968 = vpack.c.b16 %v1902, %v1901
          %v1969 = vpack.c.b16 %v1903, %v1903
          %v1970 = vpack.c.b16 %v1905, %v1904
          %v1971 = vpack.c.b16 %v1906, %v1906
          %v1972 = vpack.c.b16 %v1908, %v1907
          %v1973 = vpack.c.b16 %v1909, %v1909
          %2038 = vst [vmem:[%s347] sm:$0xff] %v1910
          %2039 = vst [vmem:[%s347 + $0x8] sm:$0xf] %v1911
          %2040 = vst [vmem:[%s347 + $0xc] sm:$0xff] %v1912
          %2041 = vst [vmem:[%s347 + $0x14] sm:$0xf] %v1913
          %2042 = vst [vmem:[%s347 + $0x18] sm:$0xff] %v1914
          %2043 = vst [vmem:[%s347 + $0x20] sm:$0xf] %v1915
          %2044 = vst [vmem:[%s347 + $0x24] sm:$0xff] %v1916
          %2045 = vst [vmem:[%s347 + $0x2c] sm:$0xf] %v1917
          %2046 = vst [vmem:[%s347 + $0x30] sm:$0xff] %v1918
          %2047 = vst [vmem:[%s347 + $0x38] sm:$0xf] %v1919
          %2048 = vst [vmem:[%s347 + $0x3c] sm:$0xff] %v1920
          %2049 = vst [vmem:[%s347 + $0x44] sm:$0xf] %v1921
          %2050 = vst [vmem:[%s347 + $0x48] sm:$0xff] %v1922
          %2051 = vst [vmem:[%s347 + $0x50] sm:$0xf] %v1923
          %2052 = vst [vmem:[%s347 + $0x54] sm:$0xff] %v1924
          %2053 = vst [vmem:[%s347 + $0x5c] sm:$0xf] %v1925
          %2054 = vst [vmem:[%s347 + $0x60] sm:$0xff] %v1926
          %2055 = vst [vmem:[%s347 + $0x68] sm:$0xf] %v1927
          %2056 = vst [vmem:[%s347 + $0x6c] sm:$0xff] %v1928
          %2057 = vst [vmem:[%s347 + $0x74] sm:$0xf] %v1929
          %2058 = vst [vmem:[%s347 + $0x78] sm:$0xff] %v1930
          %2059 = vst [vmem:[%s347 + $0x80] sm:$0xf] %v1931
          %2060 = vst [vmem:[%s347 + $0x84] sm:$0xff] %v1932
          %2061 = vst [vmem:[%s347 + $0x8c] sm:$0xf] %v1933
          %2062 = vst [vmem:[%s347 + $0x90] sm:$0xff] %v1934
          %2063 = vst [vmem:[%s347 + $0x98] sm:$0xf] %v1935
          %2064 = vst [vmem:[%s347 + $0x9c] sm:$0xff] %v1936
          %2065 = vst [vmem:[%s347 + $0xa4] sm:$0xf] %v1937
          %2066 = vst [vmem:[%s347 + $0xa8] sm:$0xff] %v1938
          %2067 = vst [vmem:[%s347 + $0xb0] sm:$0xf] %v1939
          %2068 = vst [vmem:[%s347 + $0xb4] sm:$0xff] %v1940
          %2069 = vst [vmem:[%s347 + $0xbc] sm:$0xf] %v1941
          %2070 = vst [vmem:[%s347 + $0xc0] sm:$0xff] %v1942
          %2071 = vst [vmem:[%s347 + $0xc8] sm:$0xf] %v1943
          %2072 = vst [vmem:[%s347 + $0xcc] sm:$0xff] %v1944
          %2073 = vst [vmem:[%s347 + $0xd4] sm:$0xf] %v1945
          %2074 = vst [vmem:[%s347 + $0xd8] sm:$0xff] %v1946
          %2075 = vst [vmem:[%s347 + $0xe0] sm:$0xf] %v1947
          %2076 = vst [vmem:[%s347 + $0xe4] sm:$0xff] %v1948
          %2077 = vst [vmem:[%s347 + $0xec] sm:$0xf] %v1949
          %2078 = vst [vmem:[%s347 + $0xf0] sm:$0xff] %v1950
          %2079 = vst [vmem:[%s347 + $0xf8] sm:$0xf] %v1951
          %2080 = vst [vmem:[%s347 + $0xfc] sm:$0xff] %v1952
          %2081 = vst [vmem:[%s347 + $0x104] sm:$0xf] %v1953
          %2082 = vst [vmem:[%s347 + $0x108] sm:$0xff] %v1954
          %2083 = vst [vmem:[%s347 + $0x110] sm:$0xf] %v1955
          %2084 = vst [vmem:[%s347 + $0x114] sm:$0xff] %v1956
          %2085 = vst [vmem:[%s347 + $0x11c] sm:$0xf] %v1957
          %2086 = vst [vmem:[%s347 + $0x120] sm:$0xff] %v1958
          %2087 = vst [vmem:[%s347 + $0x128] sm:$0xf] %v1959
          %2088 = vst [vmem:[%s347 + $0x12c] sm:$0xff] %v1960
          %2089 = vst [vmem:[%s347 + $0x134] sm:$0xf] %v1961
          %2090 = vst [vmem:[%s347 + $0x138] sm:$0xff] %v1962
          %2091 = vst [vmem:[%s347 + $0x140] sm:$0xf] %v1963
          %2092 = vst [vmem:[%s347 + $0x144] sm:$0xff] %v1964
          %2093 = vst [vmem:[%s347 + $0x14c] sm:$0xf] %v1965
          %2094 = vst [vmem:[%s347 + $0x150] sm:$0xff] %v1966
          %2095 = vst [vmem:[%s347 + $0x158] sm:$0xf] %v1967
          %2096 = vst [vmem:[%s347 + $0x15c] sm:$0xff] %v1968
          %2097 = vst [vmem:[%s347 + $0x164] sm:$0xf] %v1969
          %2098 = vst [vmem:[%s347 + $0x168] sm:$0xff] %v1970
          %2099 = vst [vmem:[%s347 + $0x170] sm:$0xf] %v1971
          %2100 = vst [vmem:[%s347 + $0x174] sm:$0xff] %v1972
          %2101 = vst [vmem:[%s347 + $0x17c] sm:$0xf] %v1973
        $region62: #{sdp_attention_forward.2} parent=49 // pred_fallthru
          _
        %s2102 = sand.u32 %s98, 1
        %s2103 = sand.u32 %s98, 1
        %s2104 = smul.addr %s2103, 384
        %s2105 = scalar_lea.vmem [#allocation4], %s2104
        // Predicated region
        $region63: #{sdp_attention_forward.2} parent=49 // pred_check
          %p2106 = pneg %p108
        $region64: #{sdp_attention_forward.2} parent=49 // pred_check_branch
          %2108 = sbr.rel (%p2106) target = $region66
        $region65: #{sdp_attention_forward.2} parent=49 // pred_region
          %s2109 = smul.u32 32, %s18
          %s2110 = smul.u32 3, %s19
          %s2111 = smul.addr %s2109, 6
          %s2112 = sadd.s32 %s2110, %s2111
          %s2113 = smul.addr %s2112, 4
          %s2114 = scalar_lea.vmem %s2, %s2113
          // Predicated region
          $region67: #{sdp_attention_forward.2} parent=65 // pred_check
            _
          $region68: #{sdp_attention_forward.2} parent=65 // pred_check_branch
            %2116 = sbr.rel (0) target = $region70
          $region69: #{sdp_attention_forward.2} parent=65 // pred_region
            // Predicated region
            $region71: #{sdp_attention_forward.2} parent=69 // pred_check
              _
            $region72: #{sdp_attention_forward.2} parent=69 // pred_check_branch
              %2118 = sbr.rel (0) target = $region74
            $region73: #{sdp_attention_forward.2} parent=69 // pred_region
              %s2119 = scalar_lea.vmem %s2105, 8 [#allocation4]
              %s2120 = scalar_lea.vmem %s2114, 8
              loop: start=0, step=1, limit=1
              $region75: #{sdp_attention_forward.2} parent=73 // loop_pre_header
                _
              $region76: #{sdp_attention_forward.2} parent=73 // loop_header
                %s2122 = sphi 0, %s2126
                %p2123 = scmp.ge.s32.totalorder %s2122, 1
                %s2127 = sphi %s2105, %s2105
                %s2128 = sphi %s2114, %s2114
              $region77: #{sdp_attention_forward.2} parent=73 // loop_header_branch
                %2125 = sbr.rel (%p2123) target = $region81
              $region78: #{sdp_attention_forward.2} parent=73 // loop_body
                %v2129 = vld [vmem:[%s2127] sm:$0xff]
                %2130 = vst [vmem:[%s2128] sm:$0xff] %v2129
                %v2131 = vld [vmem:[%s2127 + $0xc] sm:$0xff]
                %2132 = vst [vmem:[%s2128 + $0x18] sm:$0xff] %v2131
                %v2133 = vld [vmem:[%s2127 + $0x18] sm:$0xff]
                %2134 = vst [vmem:[%s2128 + $0x30] sm:$0xff] %v2133
                %v2135 = vld [vmem:[%s2127 + $0x24] sm:$0xff]
                %2136 = vst [vmem:[%s2128 + $0x48] sm:$0xff] %v2135
                %v2137 = vld [vmem:[%s2127 + $0x30] sm:$0xff]
                %2138 = vst [vmem:[%s2128 + $0x60] sm:$0xff] %v2137
                %v2139 = vld [vmem:[%s2127 + $0x3c] sm:$0xff]
                %2140 = vst [vmem:[%s2128 + $0x78] sm:$0xff] %v2139
                %v2141 = vld [vmem:[%s2127 + $0x48] sm:$0xff]
                %2142 = vst [vmem:[%s2128 + $0x90] sm:$0xff] %v2141
                %v2143 = vld [vmem:[%s2127 + $0x54] sm:$0xff]
                %2144 = vst [vmem:[%s2128 + $0xa8] sm:$0xff] %v2143
                %v2145 = vld [vmem:[%s2127 + $0x60] sm:$0xff]
                %2146 = vst [vmem:[%s2128 + $0xc0] sm:$0xff] %v2145
                %v2147 = vld [vmem:[%s2127 + $0x6c] sm:$0xff]
                %2148 = vst [vmem:[%s2128 + $0xd8] sm:$0xff] %v2147
                %v2149 = vld [vmem:[%s2127 + $0x78] sm:$0xff]
                %2150 = vst [vmem:[%s2128 + $0xf0] sm:$0xff] %v2149
                %v2151 = vld [vmem:[%s2127 + $0x84] sm:$0xff]
                %2152 = vst [vmem:[%s2128 + $0x108] sm:$0xff] %v2151
                %v2153 = vld [vmem:[%s2127 + $0x90] sm:$0xff]
                %2154 = vst [vmem:[%s2128 + $0x120] sm:$0xff] %v2153
                %v2155 = vld [vmem:[%s2127 + $0x9c] sm:$0xff]
                %2156 = vst [vmem:[%s2128 + $0x138] sm:$0xff] %v2155
                %v2157 = vld [vmem:[%s2127 + $0xa8] sm:$0xff]
                %2158 = vst [vmem:[%s2128 + $0x150] sm:$0xff] %v2157
                %v2159 = vld [vmem:[%s2127 + $0xb4] sm:$0xff]
                %2160 = vst [vmem:[%s2128 + $0x168] sm:$0xff] %v2159
                %v2161 = vld [vmem:[%s2127 + $0xc0] sm:$0xff]
                %2162 = vst [vmem:[%s2128 + $0x180] sm:$0xff] %v2161
                %v2163 = vld [vmem:[%s2127 + $0xcc] sm:$0xff]
                %2164 = vst [vmem:[%s2128 + $0x198] sm:$0xff] %v2163
                %v2165 = vld [vmem:[%s2127 + $0xd8] sm:$0xff]
                %2166 = vst [vmem:[%s2128 + $0x1b0] sm:$0xff] %v2165
                %v2167 = vld [vmem:[%s2127 + $0xe4] sm:$0xff]
                %2168 = vst [vmem:[%s2128 + $0x1c8] sm:$0xff] %v2167
                %v2169 = vld [vmem:[%s2127 + $0xf0] sm:$0xff]
                %2170 = vst [vmem:[%s2128 + $0x1e0] sm:$0xff] %v2169
                %v2171 = vld [vmem:[%s2127 + $0xfc] sm:$0xff]
                %2172 = vst [vmem:[%s2128 + $0x1f8] sm:$0xff] %v2171
                %v2173 = vld [vmem:[%s2127 + $0x108] sm:$0xff]
                %2174 = vst [vmem:[%s2128 + $0x210] sm:$0xff] %v2173
                %v2175 = vld [vmem:[%s2127 + $0x114] sm:$0xff]
                %2176 = vst [vmem:[%s2128 + $0x228] sm:$0xff] %v2175
                %v2177 = vld [vmem:[%s2127 + $0x120] sm:$0xff]
                %2178 = vst [vmem:[%s2128 + $0x240] sm:$0xff] %v2177
                %v2179 = vld [vmem:[%s2127 + $0x12c] sm:$0xff]
                %2180 = vst [vmem:[%s2128 + $0x258] sm:$0xff] %v2179
                %v2181 = vld [vmem:[%s2127 + $0x138] sm:$0xff]
                %2182 = vst [vmem:[%s2128 + $0x270] sm:$0xff] %v2181
                %v2183 = vld [vmem:[%s2127 + $0x144] sm:$0xff]
                %2184 = vst [vmem:[%s2128 + $0x288] sm:$0xff] %v2183
                %v2185 = vld [vmem:[%s2127 + $0x150] sm:$0xff]
                %2186 = vst [vmem:[%s2128 + $0x2a0] sm:$0xff] %v2185
                %v2187 = vld [vmem:[%s2127 + $0x15c] sm:$0xff]
                %2188 = vst [vmem:[%s2128 + $0x2b8] sm:$0xff] %v2187
                %v2189 = vld [vmem:[%s2127 + $0x168] sm:$0xff]
                %2190 = vst [vmem:[%s2128 + $0x2d0] sm:$0xff] %v2189
                %v2191 = vld [vmem:[%s2127 + $0x174] sm:$0xff]
                %2192 = vst [vmem:[%s2128 + $0x2e8] sm:$0xff] %v2191
              $region79: #{sdp_attention_forward.2} parent=73 // loop_footer
                %s2126 = sadd.s32 1, %s2122
              $region80: #{sdp_attention_forward.2} parent=73 // loop_footer_branch
                %2121 = sbr.rel target = $region76
              $region81: #{sdp_attention_forward.2} parent=73 // loop_exit
                _
              loop: start=0, step=1, limit=1
              $region82: #{sdp_attention_forward.2} parent=73 // loop_pre_header
                _
              $region83: #{sdp_attention_forward.2} parent=73 // loop_header
                %s2195 = sphi 0, %s2199
                %p2196 = scmp.ge.s32.totalorder %s2195, 1
                %s2200 = sphi %s2119, %s2119
                %s2201 = sphi %s2120, %s2120
              $region84: #{sdp_attention_forward.2} parent=73 // loop_header_branch
                %2198 = sbr.rel (%p2196) target = $region88
              $region85: #{sdp_attention_forward.2} parent=73 // loop_body
                %v2202 = vld [vmem:[%s2200] sm:$0xf]
                %2203 = vst [vmem:[%s2201] sm:$0xf] %v2202
                %v2204 = vld [vmem:[%s2200 + $0xc] sm:$0xf]
                %2205 = vst [vmem:[%s2201 + $0x18] sm:$0xf] %v2204
                %v2206 = vld [vmem:[%s2200 + $0x18] sm:$0xf]
                %2207 = vst [vmem:[%s2201 + $0x30] sm:$0xf] %v2206
                %v2208 = vld [vmem:[%s2200 + $0x24] sm:$0xf]
                %2209 = vst [vmem:[%s2201 + $0x48] sm:$0xf] %v2208
                %v2210 = vld [vmem:[%s2200 + $0x30] sm:$0xf]
                %2211 = vst [vmem:[%s2201 + $0x60] sm:$0xf] %v2210
                %v2212 = vld [vmem:[%s2200 + $0x3c] sm:$0xf]
                %2213 = vst [vmem:[%s2201 + $0x78] sm:$0xf] %v2212
                %v2214 = vld [vmem:[%s2200 + $0x48] sm:$0xf]
                %2215 = vst [vmem:[%s2201 + $0x90] sm:$0xf] %v2214
                %v2216 = vld [vmem:[%s2200 + $0x54] sm:$0xf]
                %2217 = vst [vmem:[%s2201 + $0xa8] sm:$0xf] %v2216
                %v2218 = vld [vmem:[%s2200 + $0x60] sm:$0xf]
                %2219 = vst [vmem:[%s2201 + $0xc0] sm:$0xf] %v2218
                %v2220 = vld [vmem:[%s2200 + $0x6c] sm:$0xf]
                %2221 = vst [vmem:[%s2201 + $0xd8] sm:$0xf] %v2220
                %v2222 = vld [vmem:[%s2200 + $0x78] sm:$0xf]
                %2223 = vst [vmem:[%s2201 + $0xf0] sm:$0xf] %v2222
                %v2224 = vld [vmem:[%s2200 + $0x84] sm:$0xf]
                %2225 = vst [vmem:[%s2201 + $0x108] sm:$0xf] %v2224
                %v2226 = vld [vmem:[%s2200 + $0x90] sm:$0xf]
                %2227 = vst [vmem:[%s2201 + $0x120] sm:$0xf] %v2226
                %v2228 = vld [vmem:[%s2200 + $0x9c] sm:$0xf]
                %2229 = vst [vmem:[%s2201 + $0x138] sm:$0xf] %v2228
                %v2230 = vld [vmem:[%s2200 + $0xa8] sm:$0xf]
                %2231 = vst [vmem:[%s2201 + $0x150] sm:$0xf] %v2230
                %v2232 = vld [vmem:[%s2200 + $0xb4] sm:$0xf]
                %2233 = vst [vmem:[%s2201 + $0x168] sm:$0xf] %v2232
                %v2234 = vld [vmem:[%s2200 + $0xc0] sm:$0xf]
                %2235 = vst [vmem:[%s2201 + $0x180] sm:$0xf] %v2234
                %v2236 = vld [vmem:[%s2200 + $0xcc] sm:$0xf]
                %2237 = vst [vmem:[%s2201 + $0x198] sm:$0xf] %v2236
                %v2238 = vld [vmem:[%s2200 + $0xd8] sm:$0xf]
                %2239 = vst [vmem:[%s2201 + $0x1b0] sm:$0xf] %v2238
                %v2240 = vld [vmem:[%s2200 + $0xe4] sm:$0xf]
                %2241 = vst [vmem:[%s2201 + $0x1c8] sm:$0xf] %v2240
                %v2242 = vld [vmem:[%s2200 + $0xf0] sm:$0xf]
                %2243 = vst [vmem:[%s2201 + $0x1e0] sm:$0xf] %v2242
                %v2244 = vld [vmem:[%s2200 + $0xfc] sm:$0xf]
                %2245 = vst [vmem:[%s2201 + $0x1f8] sm:$0xf] %v2244
                %v2246 = vld [vmem:[%s2200 + $0x108] sm:$0xf]
                %2247 = vst [vmem:[%s2201 + $0x210] sm:$0xf] %v2246
                %v2248 = vld [vmem:[%s2200 + $0x114] sm:$0xf]
                %2249 = vst [vmem:[%s2201 + $0x228] sm:$0xf] %v2248
                %v2250 = vld [vmem:[%s2200 + $0x120] sm:$0xf]
                %2251 = vst [vmem:[%s2201 + $0x240] sm:$0xf] %v2250
                %v2252 = vld [vmem:[%s2200 + $0x12c] sm:$0xf]
                %2253 = vst [vmem:[%s2201 + $0x258] sm:$0xf] %v2252
                %v2254 = vld [vmem:[%s2200 + $0x138] sm:$0xf]
                %2255 = vst [vmem:[%s2201 + $0x270] sm:$0xf] %v2254
                %v2256 = vld [vmem:[%s2200 + $0x144] sm:$0xf]
                %2257 = vst [vmem:[%s2201 + $0x288] sm:$0xf] %v2256
                %v2258 = vld [vmem:[%s2200 + $0x150] sm:$0xf]
                %2259 = vst [vmem:[%s2201 + $0x2a0] sm:$0xf] %v2258
                %v2260 = vld [vmem:[%s2200 + $0x15c] sm:$0xf]
                %2261 = vst [vmem:[%s2201 + $0x2b8] sm:$0xf] %v2260
                %v2262 = vld [vmem:[%s2200 + $0x168] sm:$0xf]
                %2263 = vst [vmem:[%s2201 + $0x2d0] sm:$0xf] %v2262
                %v2264 = vld [vmem:[%s2200 + $0x174] sm:$0xf]
                %2265 = vst [vmem:[%s2201 + $0x2e8] sm:$0xf] %v2264
              $region86: #{sdp_attention_forward.2} parent=73 // loop_footer
                %s2199 = sadd.s32 1, %s2195
              $region87: #{sdp_attention_forward.2} parent=73 // loop_footer_branch
                %2194 = sbr.rel target = $region83
              $region88: #{sdp_attention_forward.2} parent=73 // loop_exit
                _
            $region74: #{sdp_attention_forward.2} parent=69 // pred_fallthru
              _
          $region70: #{sdp_attention_forward.2} parent=65 // pred_fallthru
            _
          %2266 = vnop
        $region66: #{sdp_attention_forward.2} parent=49 // pred_fallthru
          _
      $region50: #{sdp_attention_forward.2} parent=5 // pred_fallthru
        _
      %p2267 = scmp.le.s32.totalorder 2, %s8
      // Predicated region
      $region89: #{sdp_attention_forward.2} parent=5 // pred_check
        %p2268 = pneg %p2267
      $region90: #{sdp_attention_forward.2} parent=5 // pred_check_branch
        %2270 = sbr.rel (%p2268) target = $region92
      $region91: #{sdp_attention_forward.2} parent=5 // pred_region
        %s2271 = ssub.s32 %s8, 2
        // Predicated region
        $region93: #{sdp_attention_forward.2} parent=91 // pred_check
          %p2272 = pneg %p114
        $region94: #{sdp_attention_forward.2} parent=91 // pred_check_branch
          %2274 = sbr.rel (%p2272) target = $region96
        $region95: #{sdp_attention_forward.2} parent=91 // pred_region
          %s2275 = sand.u32 %s99, 1
          %s2276 = sand.u32 %s99, 1
          %s2277 = smul.addr %s2276, 384
          %s2278 = scalar_lea.vmem [#allocation4], %s2277
        $region96: #{sdp_attention_forward.2} parent=91 // pred_fallthru
          _
      $region92: #{sdp_attention_forward.2} parent=5 // pred_fallthru
        _
    $region6: #{sdp_attention_forward.2} parent=1 // loop_footer
      %s12 = sadd.s32 1, %s8
    $region7: #{sdp_attention_forward.2} parent=1 // loop_footer_branch
      %7 = sbr.rel target = $region3
    $region8: #{sdp_attention_forward.2} parent=1 // loop_exit
      _

</llo_original>
